<compile_context>
chip_gen: v6e
topology: v6e:2x2x1
jax: 0.10.0
libtpu: 0.0.40
codegen_flags: <defaults>
</compile_context>

<pallas_src>
import functools

import jax
import jax.numpy as jnp
from jax.experimental import pallas as pl
from jax.experimental.pallas import tpu as pltpu


# ---------------------------------------------------------------------------
# Generation-aware compiler params (queried once, cached)
# ---------------------------------------------------------------------------
@functools.lru_cache(maxsize=None)
def _vmem_limit_bytes():
    try:
        cap = int(pltpu.get_tpu_info().vmem_capacity_bytes)
        # 3/4 of physical, capped at 48 MiB: fits v5e/v6e (128 MiB) and v7x (64 MiB).
        return min((cap * 3) // 4, 48 << 20)
    except Exception:  # pragma: no cover - conservative fallback
        return 32 << 20


def _compiler_params(dims):
    return pltpu.CompilerParams(dimension_semantics=dims,
                                vmem_limit_bytes=_vmem_limit_bytes())


# ---------------------------------------------------------------------------
# Fused kernel: conv1 + ReLU + CA1 + SA1 + conv2 + ReLU + CA2 + SA2
# Layout inside the kernel: activations are (C, HW) with HW on the lane axis.
# ---------------------------------------------------------------------------
def _double_conv_cbam_kernel(x_ref, xcol_ref,
                             w1_ref, b1_ref, ca1w1_ref, ca1w2_ref, sa1_ref,
                             w2_ref, b2_ref, ca2w1_ref, ca2w2_ref, sa2_ref,
                             o_ref, *, h, w):
    hw = h * w
    xcol = xcol_ref[...]                       # (1, HW) int32, pixel column index

    def shifted_taps(xflat, ksize):
        """In-VMEM im2col: vertical zero-pad in flattened row-major space, one
        static lane-shifted slice per tap, column-wrap masked via xcol.
        Returns the tap stack (ksize*ksize*C, HW), tap-major / channel-minor rows."""
        c = xflat.shape[0]
        pad = ksize // 2
        zpad = jnp.zeros((c, pad * w + pad), jnp.float32)
        xp = jnp.concatenate([zpad, xflat, zpad], axis=1)   # (C, HW + 2*(pad*W+pad))
        taps = []
        for ky in range(ksize):
            for kx in range(ksize):
                s = ky * w + kx
                t = xp[:, s:s + hw]                          # (C, HW)
                dc = kx - pad
                if dc != 0:  # horizontal neighbours that wrapped into another row
                    valid = jnp.logical_and(xcol + dc >= 0, xcol + dc < w)
                    t = jnp.where(valid, t, 0.0)
                taps.append(t)
        return jnp.concatenate(taps, axis=0)                 # (k*k*C, HW)

    def conv3x3(xflat, wmat, bias):
        # Single MXU matmul: (Cout, 9C) @ (9C, HW) -> (Cout, HW), N=HW lane-dense.
        patches = shifted_taps(xflat, 3)
        y = jnp.dot(wmat, patches, preferred_element_type=jnp.float32)
        return y + bias

    def channel_attention(y, caw1, caw2):
        avg = jnp.mean(y, axis=1, keepdims=True)             # (Cout, 1) lane reduce
        mx = jnp.max(y, axis=1, keepdims=True)               # (Cout, 1)
        v = jnp.concatenate([avg, mx], axis=1)               # (Cout, 2) stacked pools
        hid = jnp.maximum(
            jnp.dot(caw1, v, preferred_element_type=jnp.float32), 0.0)   # (Cr, 2)
        o = jnp.dot(caw2, hid, preferred_element_type=jnp.float32)       # (Cout, 2)
        scale = jax.nn.sigmoid(o[:, 0:1] + o[:, 1:2])        # (Cout, 1)
        return y * scale

    def spatial_attention(y, saw):
        cmean = jnp.mean(y, axis=0, keepdims=True)           # (1, HW) sublane reduce
        cmax = jnp.max(y, axis=0, keepdims=True)             # (1, HW)
        am = jnp.concatenate([cmean, cmax], axis=0)          # (2, HW)
        stack = shifted_taps(am, 7)                          # (98, HW)
        # 7x7x2 conv on the VPU: broadcast-mul by the weight column + sublane sum.
        logit = jnp.sum(stack * saw, axis=0, keepdims=True)  # (1, HW)
        return y * jax.nn.sigmoid(logit)

    x = x_ref[0]                                             # (Cin, HW)

    y = jnp.maximum(conv3x3(x, w1_ref[...], b1_ref[...]), 0.0)
    y = channel_attention(y, ca1w1_ref[...], ca1w2_ref[...])
    y = spatial_attention(y, sa1_ref[...])

    y = jnp.maximum(conv3x3(y, w2_ref[...], b2_ref[...]), 0.0)
    y = channel_attention(y, ca2w1_ref[...], ca2w2_ref[...])
    y = spatial_attention(y, sa2_ref[...])

    o_ref[0] = y.astype(o_ref.dtype)                         # (Cout, HW) lane-dense store


# ---------------------------------------------------------------------------
# Weight folding (PyTorch layouts -> kernel layouts), done once in XLA
# ---------------------------------------------------------------------------
def _fold_conv_weight(wt):
    # (Cout, Cin, 3, 3) OIHW -> (Cout, 9*Cin); K row = (ky*3+kx)*Cin + ci.
    cout, cin = wt.shape[0], wt.shape[1]
    return jnp.transpose(wt, (0, 2, 3, 1)).reshape(cout, 9 * cin)


def _fold_sa_weight(wt):
    # (1, 2, 7, 7) OIHW -> (98, 1); row = (ky*7+kx)*2 + channel(0=mean, 1=max).
    return jnp.transpose(wt[0], (1, 2, 0)).reshape(-1, 1)


# ---------------------------------------------------------------------------
# Forward pass (matches DoubleConvCBAM.forward), NCHW in / NCHW out
# ---------------------------------------------------------------------------
def double_conv_cbam_forward(x_nchw, params):
    n, cin, h, w = x_nchw.shape
    hw = h * w
    cout = params["w1"].shape[0]
    cr = params["ca1_w1"].shape[0]

    xf = x_nchw.reshape(n, cin, hw).astype(jnp.float32)           # NCHW-native, flat HW
    xcol = (jnp.arange(hw, dtype=jnp.int32) % w).reshape(1, hw)   # column index per pixel

    w1m = _fold_conv_weight(params["w1"].astype(jnp.float32))
    w2m = _fold_conv_weight(params["w2"].astype(jnp.float32))
    b1 = params["b1"].astype(jnp.float32).reshape(cout, 1)
    b2 = params["b2"].astype(jnp.float32).reshape(cout, 1)
    sa1 = _fold_sa_weight(params["sa1_w"].astype(jnp.float32))
    sa2 = _fold_sa_weight(params["sa2_w"].astype(jnp.float32))
    ca1w1 = params["ca1_w1"].astype(jnp.float32)
    ca1w2 = params["ca1_w2"].astype(jnp.float32)
    ca2w1 = params["ca2_w1"].astype(jnp.float32)
    ca2w2 = params["ca2_w2"].astype(jnp.float32)

    bcast = lambda i: (0, 0)
    out = pl.pallas_call(
        functools.partial(_double_conv_cbam_kernel, h=h, w=w),
        out_shape=jax.ShapeDtypeStruct((n, cout, hw), jnp.float32),
        grid=(n,),
        in_specs=[
            pl.BlockSpec((1, cin, hw), lambda i: (i, 0, 0)),      # x (per-batch block)
            pl.BlockSpec(xcol.shape, bcast),                      # pixel column index
            pl.BlockSpec(w1m.shape, bcast),                       # conv1 weight
            pl.BlockSpec(b1.shape, bcast),                        # conv1 bias
            pl.BlockSpec(ca1w1.shape, bcast),                     # CA1 fc1
            pl.BlockSpec(ca1w2.shape, bcast),                     # CA1 fc2
            pl.BlockSpec(sa1.shape, bcast),                       # SA1 weight column
            pl.BlockSpec(w2m.shape, bcast),                       # conv2 weight
            pl.BlockSpec(b2.shape, bcast),                        # conv2 bias
            pl.BlockSpec(ca2w1.shape, bcast),                     # CA2 fc1
            pl.BlockSpec(ca2w2.shape, bcast),                     # CA2 fc2
            pl.BlockSpec(sa2.shape, bcast),                       # SA2 weight column
        ],
        out_specs=pl.BlockSpec((1, cout, hw), lambda i: (i, 0, 0)),
        compiler_params=_compiler_params(("parallel",)),
    )(xf, xcol, w1m, b1, ca1w1, ca1w2, sa1, w2m, b2, ca2w1, ca2w2, sa2)

    return out.reshape(n, cout, h, w)


# ---------------------------------------------------------------------------
# Parameters (deterministic, PyTorch-style uniform fan-in init, PyTorch layouts)
# ---------------------------------------------------------------------------
def init_params(key, in_channels, out_channels, reduction=16, sa_kernel=7):
    cr = max(out_channels // reduction, 1)

    def u(k, shape, fan_in):
        bound = 1.0 / float(fan_in) ** 0.5
        return jax.random.uniform(k, shape, jnp.float32, -bound, bound)

    ks = jax.random.split(key, 10)
    return dict(
        w1=u(ks[0], (out_channels, in_channels, 3, 3), in_channels * 9),
        b1=u(ks[1], (out_channels,), in_channels * 9),
        ca1_w1=u(ks[2], (cr, out_channels), out_channels),
        ca1_w2=u(ks[3], (out_channels, cr), cr),
        sa1_w=u(ks[4], (1, 2, sa_kernel, sa_kernel), 2 * sa_kernel * sa_kernel),
        w2=u(ks[5], (out_channels, out_channels, 3, 3), out_channels * 9),
        b2=u(ks[6], (out_channels,), out_channels * 9),
        ca2_w1=u(ks[7], (cr, out_channels), out_channels),
        ca2_w2=u(ks[8], (out_channels, cr), cr),
        sa2_w=u(ks[9], (1, 2, sa_kernel, sa_kernel), 2 * sa_kernel * sa_kernel),
    )


# ---------------------------------------------------------------------------
# Pure-JAX reference (for a tolerance check of the fused kernel)
# ---------------------------------------------------------------------------
def _reference_forward(x, params):
    hi = jax.lax.Precision.HIGHEST

    def conv3x3(xx, wt, b, pad):
        y = jax.lax.conv_general_dilated(
            xx, wt, (1, 1), ((pad, pad), (pad, pad)),
            dimension_numbers=("NCHW", "OIHW", "NCHW"), precision=hi)
        return y if b is None else y + b.reshape(1, -1, 1, 1)

    def cbam(xx, caw1, caw2, saw):
        avg = jnp.mean(xx, axis=(2, 3), keepdims=True)
        mx = jnp.max(xx, axis=(2, 3), keepdims=True)

        def fc(v):
            hmid = jnp.maximum(jnp.einsum("rc,ncij->nrij", caw1, v, precision=hi), 0.0)
            return jnp.einsum("cr,nrij->ncij", caw2, hmid, precision=hi)

        xx = jax.nn.sigmoid(fc(avg) + fc(mx)) * xx
        cm = jnp.mean(xx, axis=1, keepdims=True)
        cx = jnp.max(xx, axis=1, keepdims=True)
        att = jax.nn.sigmoid(conv3x3(jnp.concatenate([cm, cx], axis=1), saw, None, 3))
        return att * xx

    y = jnp.maximum(conv3x3(x, params["w1"], params["b1"], 1), 0.0)
    y = cbam(y, params["ca1_w1"], params["ca1_w2"], params["sa1_w"])
    y = jnp.maximum(conv3x3(y, params["w2"], params["b2"], 1), 0.0)
    y = cbam(y, params["ca2_w1"], params["ca2_w2"], params["sa2_w"])
    return y


if __name__ == "__main__":
    IN_CHANNELS = 4
    OUT_CHANNELS = 32
    H = W = 16
    N = 2

    key = jax.random.PRNGKey(0)
    k_params, k_x = jax.random.split(key)
    params = init_params(k_params, IN_CHANNELS, OUT_CHANNELS)

    # NCHW input, matching the PyTorch module's convention.
    x = jax.random.normal(k_x, (N, IN_CHANNELS, H, W), jnp.float32)

    fwd = jax.jit(double_conv_cbam_forward)
    out = fwd(x, params)
    jax.block_until_ready(out)

    assert out.shape == (N, OUT_CHANNELS, H, W), out.shape
    assert out.dtype == jnp.float32
    assert bool(jnp.all(jnp.isfinite(out)))

    # Tolerance check vs. pure-JAX reference (loose tol: MXU f32 pass count differs
    # from XLA's conv precision, both are near-f32).
    ref = _reference_forward(x.astype(jnp.float32), params)
    err = float(jnp.max(jnp.abs(out - ref)))
    assert err < 5e-2, f"max abs err vs reference: {err}"

    print("KERNEL_OK")
</pallas_src>

<mosaic_0001>
module attributes {stable_mosaic.version = 11 : i64} {
  func.func @_double_conv_cbam_kernel(%arg0: i32, %arg1: memref<1x4x256xf32, #tpu.memory_space<vmem>>, %arg2: memref<1x256xi32, #tpu.memory_space<vmem>>, %arg3: memref<32x36xf32, #tpu.memory_space<vmem>>, %arg4: memref<32x1xf32, #tpu.memory_space<vmem>>, %arg5: memref<2x32xf32, #tpu.memory_space<vmem>>, %arg6: memref<32x2xf32, #tpu.memory_space<vmem>>, %arg7: memref<98x1xf32, #tpu.memory_space<vmem>>, %arg8: memref<32x288xf32, #tpu.memory_space<vmem>>, %arg9: memref<32x1xf32, #tpu.memory_space<vmem>>, %arg10: memref<2x32xf32, #tpu.memory_space<vmem>>, %arg11: memref<32x2xf32, #tpu.memory_space<vmem>>, %arg12: memref<98x1xf32, #tpu.memory_space<vmem>>, %arg13: memref<1x32x256xf32, #tpu.memory_space<vmem>>) attributes {dimension_semantics = [#tpu.dimension_semantics<parallel>], iteration_bounds = array<i64: 2>, scalar_prefetch = 0 : i64, scratch_operands = 0 : i64, tpu.core_type = #tpu.core_type<tc>, window_params = [{transform_indices = @transform_0, window_bounds = array<i64: 1, 4, 256>}, {pipeline_mode = #tpu.pipeline_mode<synchronous>, transform_indices = @transform_1, window_bounds = array<i64: 1, 256>}, {pipeline_mode = #tpu.pipeline_mode<synchronous>, transform_indices = @transform_2, window_bounds = array<i64: 32, 36>}, {pipeline_mode = #tpu.pipeline_mode<synchronous>, transform_indices = @transform_3, window_bounds = array<i64: 32, 1>}, {pipeline_mode = #tpu.pipeline_mode<synchronous>, transform_indices = @transform_4, window_bounds = array<i64: 2, 32>}, {pipeline_mode = #tpu.pipeline_mode<synchronous>, transform_indices = @transform_5, window_bounds = array<i64: 32, 2>}, {pipeline_mode = #tpu.pipeline_mode<synchronous>, transform_indices = @transform_6, window_bounds = array<i64: 98, 1>}, {pipeline_mode = #tpu.pipeline_mode<synchronous>, transform_indices = @transform_7, window_bounds = array<i64: 32, 288>}, {pipeline_mode = #tpu.pipeline_mode<synchronous>, transform_indices = @transform_8, window_bounds = array<i64: 32, 1>}, {pipeline_mode = #tpu.pipeline_mode<synchronous>, transform_indices = @transform_9, window_bounds = array<i64: 2, 32>}, {pipeline_mode = #tpu.pipeline_mode<synchronous>, transform_indices = @transform_10, window_bounds = array<i64: 32, 2>}, {pipeline_mode = #tpu.pipeline_mode<synchronous>, transform_indices = @transform_11, window_bounds = array<i64: 98, 1>}, {transform_indices = @transform_12, window_bounds = array<i64: 1, 32, 256>}]} {
    %c0 = arith.constant 0 : index
    %c0_0 = arith.constant 0 : index
    %0 = vector.load %arg2[%c0, %c0_0] : memref<1x256xi32, #tpu.memory_space<vmem>>, vector<1x256xi32>
    %c0_1 = arith.constant 0 : index
    %c0_2 = arith.constant 0 : index
    %c0_3 = arith.constant 0 : index
    %1 = vector.load %arg1[%c0_1, %c0_2, %c0_3] : memref<1x4x256xf32, #tpu.memory_space<vmem>>, vector<1x4x256xf32>
    %2 = vector.shape_cast %1 : vector<1x4x256xf32> to vector<4x256xf32>
    %c0_4 = arith.constant 0 : index
    %c0_5 = arith.constant 0 : index
    %3 = vector.load %arg3[%c0_4, %c0_5] : memref<32x36xf32, #tpu.memory_space<vmem>>, vector<32x36xf32>
    %c0_6 = arith.constant 0 : index
    %c0_7 = arith.constant 0 : index
    %4 = vector.load %arg4[%c0_6, %c0_7] : memref<32x1xf32, #tpu.memory_space<vmem>>, vector<32x1xf32>
    %cst = arith.constant 0.000000e+00 : f32
    %5 = vector.broadcast %cst : f32 to vector<4x17xf32>
    %6 = tpu.concatenate %5, %2, %5 in 1 : vector<4x17xf32>, vector<4x256xf32>, vector<4x17xf32> -> vector<4x290xf32>
    %7 = vector.extract_strided_slice %6 {offsets = [0, 0], sizes = [4, 256], strides = [1, 1]} : vector<4x290xf32> to vector<4x256xf32>
    %c-1_i32 = arith.constant -1 : i32
    %8 = vector.broadcast %c-1_i32 : i32 to vector<1x256xi32>
    %9 = arith.addi %0, %8 : vector<1x256xi32>
    %c0_i32 = arith.constant 0 : i32
    %10 = vector.broadcast %c0_i32 : i32 to vector<1x256xi32>
    %11 = arith.cmpi sge, %9, %10 : vector<1x256xi32>
    %c-1_i32_8 = arith.constant -1 : i32
    %12 = vector.broadcast %c-1_i32_8 : i32 to vector<1x256xi32>
    %13 = arith.addi %0, %12 : vector<1x256xi32>
    %c16_i32 = arith.constant 16 : i32
    %14 = vector.broadcast %c16_i32 : i32 to vector<1x256xi32>
    %15 = arith.cmpi slt, %13, %14 : vector<1x256xi32>
    %16 = arith.andi %11, %15 : vector<1x256xi1>
    %cst_9 = arith.constant 0.000000e+00 : f32
    %17 = vector.shape_cast %16 : vector<1x256xi1> to vector<1x256xi1>
    %18 = vector.broadcast %17 : vector<1x256xi1> to vector<4x256xi1>
    %19 = vector.broadcast %cst_9 : f32 to vector<4x256xf32>
    %20 = arith.select %18, %7, %19 : vector<4x256xi1>, vector<4x256xf32>
    %21 = vector.extract_strided_slice %6 {offsets = [0, 1], sizes = [4, 256], strides = [1, 1]} : vector<4x290xf32> to vector<4x256xf32>
    %22 = vector.extract_strided_slice %6 {offsets = [0, 2], sizes = [4, 256], strides = [1, 1]} : vector<4x290xf32> to vector<4x256xf32>
    %c1_i32 = arith.constant 1 : i32
    %23 = vector.broadcast %c1_i32 : i32 to vector<1x256xi32>
    %24 = arith.addi %0, %23 : vector<1x256xi32>
    %c0_i32_10 = arith.constant 0 : i32
    %25 = vector.broadcast %c0_i32_10 : i32 to vector<1x256xi32>
    %26 = arith.cmpi sge, %24, %25 : vector<1x256xi32>
    %c1_i32_11 = arith.constant 1 : i32
    %27 = vector.broadcast %c1_i32_11 : i32 to vector<1x256xi32>
    %28 = arith.addi %0, %27 : vector<1x256xi32>
    %c16_i32_12 = arith.constant 16 : i32
    %29 = vector.broadcast %c16_i32_12 : i32 to vector<1x256xi32>
    %30 = arith.cmpi slt, %28, %29 : vector<1x256xi32>
    %31 = arith.andi %26, %30 : vector<1x256xi1>
    %cst_13 = arith.constant 0.000000e+00 : f32
    %32 = vector.shape_cast %31 : vector<1x256xi1> to vector<1x256xi1>
    %33 = vector.broadcast %32 : vector<1x256xi1> to vector<4x256xi1>
    %34 = vector.broadcast %cst_13 : f32 to vector<4x256xf32>
    %35 = arith.select %33, %22, %34 : vector<4x256xi1>, vector<4x256xf32>
    %36 = vector.extract_strided_slice %6 {offsets = [0, 16], sizes = [4, 256], strides = [1, 1]} : vector<4x290xf32> to vector<4x256xf32>
    %c-1_i32_14 = arith.constant -1 : i32
    %37 = vector.broadcast %c-1_i32_14 : i32 to vector<1x256xi32>
    %38 = arith.addi %0, %37 : vector<1x256xi32>
    %c0_i32_15 = arith.constant 0 : i32
    %39 = vector.broadcast %c0_i32_15 : i32 to vector<1x256xi32>
    %40 = arith.cmpi sge, %38, %39 : vector<1x256xi32>
    %c-1_i32_16 = arith.constant -1 : i32
    %41 = vector.broadcast %c-1_i32_16 : i32 to vector<1x256xi32>
    %42 = arith.addi %0, %41 : vector<1x256xi32>
    %c16_i32_17 = arith.constant 16 : i32
    %43 = vector.broadcast %c16_i32_17 : i32 to vector<1x256xi32>
    %44 = arith.cmpi slt, %42, %43 : vector<1x256xi32>
    %45 = arith.andi %40, %44 : vector<1x256xi1>
    %cst_18 = arith.constant 0.000000e+00 : f32
    %46 = vector.shape_cast %45 : vector<1x256xi1> to vector<1x256xi1>
    %47 = vector.broadcast %46 : vector<1x256xi1> to vector<4x256xi1>
    %48 = vector.broadcast %cst_18 : f32 to vector<4x256xf32>
    %49 = arith.select %47, %36, %48 : vector<4x256xi1>, vector<4x256xf32>
    %50 = vector.extract_strided_slice %6 {offsets = [0, 17], sizes = [4, 256], strides = [1, 1]} : vector<4x290xf32> to vector<4x256xf32>
    %51 = vector.extract_strided_slice %6 {offsets = [0, 18], sizes = [4, 256], strides = [1, 1]} : vector<4x290xf32> to vector<4x256xf32>
    %c1_i32_19 = arith.constant 1 : i32
    %52 = vector.broadcast %c1_i32_19 : i32 to vector<1x256xi32>
    %53 = arith.addi %0, %52 : vector<1x256xi32>
    %c0_i32_20 = arith.constant 0 : i32
    %54 = vector.broadcast %c0_i32_20 : i32 to vector<1x256xi32>
    %55 = arith.cmpi sge, %53, %54 : vector<1x256xi32>
    %c1_i32_21 = arith.constant 1 : i32
    %56 = vector.broadcast %c1_i32_21 : i32 to vector<1x256xi32>
    %57 = arith.addi %0, %56 : vector<1x256xi32>
    %c16_i32_22 = arith.constant 16 : i32
    %58 = vector.broadcast %c16_i32_22 : i32 to vector<1x256xi32>
    %59 = arith.cmpi slt, %57, %58 : vector<1x256xi32>
    %60 = arith.andi %55, %59 : vector<1x256xi1>
    %cst_23 = arith.constant 0.000000e+00 : f32
    %61 = vector.shape_cast %60 : vector<1x256xi1> to vector<1x256xi1>
    %62 = vector.broadcast %61 : vector<1x256xi1> to vector<4x256xi1>
    %63 = vector.broadcast %cst_23 : f32 to vector<4x256xf32>
    %64 = arith.select %62, %51, %63 : vector<4x256xi1>, vector<4x256xf32>
    %65 = vector.extract_strided_slice %6 {offsets = [0, 32], sizes = [4, 256], strides = [1, 1]} : vector<4x290xf32> to vector<4x256xf32>
    %c-1_i32_24 = arith.constant -1 : i32
    %66 = vector.broadcast %c-1_i32_24 : i32 to vector<1x256xi32>
    %67 = arith.addi %0, %66 : vector<1x256xi32>
    %c0_i32_25 = arith.constant 0 : i32
    %68 = vector.broadcast %c0_i32_25 : i32 to vector<1x256xi32>
    %69 = arith.cmpi sge, %67, %68 : vector<1x256xi32>
    %c-1_i32_26 = arith.constant -1 : i32
    %70 = vector.broadcast %c-1_i32_26 : i32 to vector<1x256xi32>
    %71 = arith.addi %0, %70 : vector<1x256xi32>
    %c16_i32_27 = arith.constant 16 : i32
    %72 = vector.broadcast %c16_i32_27 : i32 to vector<1x256xi32>
    %73 = arith.cmpi slt, %71, %72 : vector<1x256xi32>
    %74 = arith.andi %69, %73 : vector<1x256xi1>
    %cst_28 = arith.constant 0.000000e+00 : f32
    %75 = vector.shape_cast %74 : vector<1x256xi1> to vector<1x256xi1>
    %76 = vector.broadcast %75 : vector<1x256xi1> to vector<4x256xi1>
    %77 = vector.broadcast %cst_28 : f32 to vector<4x256xf32>
    %78 = arith.select %76, %65, %77 : vector<4x256xi1>, vector<4x256xf32>
    %79 = vector.extract_strided_slice %6 {offsets = [0, 33], sizes = [4, 256], strides = [1, 1]} : vector<4x290xf32> to vector<4x256xf32>
    %80 = vector.extract_strided_slice %6 {offsets = [0, 34], sizes = [4, 256], strides = [1, 1]} : vector<4x290xf32> to vector<4x256xf32>
    %c1_i32_29 = arith.constant 1 : i32
    %81 = vector.broadcast %c1_i32_29 : i32 to vector<1x256xi32>
    %82 = arith.addi %0, %81 : vector<1x256xi32>
    %c0_i32_30 = arith.constant 0 : i32
    %83 = vector.broadcast %c0_i32_30 : i32 to vector<1x256xi32>
    %84 = arith.cmpi sge, %82, %83 : vector<1x256xi32>
    %c1_i32_31 = arith.constant 1 : i32
    %85 = vector.broadcast %c1_i32_31 : i32 to vector<1x256xi32>
    %86 = arith.addi %0, %85 : vector<1x256xi32>
    %c16_i32_32 = arith.constant 16 : i32
    %87 = vector.broadcast %c16_i32_32 : i32 to vector<1x256xi32>
    %88 = arith.cmpi slt, %86, %87 : vector<1x256xi32>
    %89 = arith.andi %84, %88 : vector<1x256xi1>
    %cst_33 = arith.constant 0.000000e+00 : f32
    %90 = vector.shape_cast %89 : vector<1x256xi1> to vector<1x256xi1>
    %91 = vector.broadcast %90 : vector<1x256xi1> to vector<4x256xi1>
    %92 = vector.broadcast %cst_33 : f32 to vector<4x256xf32>
    %93 = arith.select %91, %80, %92 : vector<4x256xi1>, vector<4x256xf32>
    %94 = tpu.concatenate %20, %21, %35, %49, %50, %64, %78, %79, %93 in 0 : vector<4x256xf32>, vector<4x256xf32>, vector<4x256xf32>, vector<4x256xf32>, vector<4x256xf32>, vector<4x256xf32>, vector<4x256xf32>, vector<4x256xf32>, vector<4x256xf32> -> vector<36x256xf32>
    %cst_34 = arith.constant dense<0.000000e+00> : vector<32x256xf32>
    %95 = tpu.matmul %3, %94, %cst_34 {dimension_numbers = #tpu.dot_dimension_numbers<[1], [0], [0], [1], [0, 0, 1, 1], [], []>} : vector<32x36xf32>, vector<36x256xf32>, vector<32x256xf32> -> vector<32x256xf32>
    %96 = vector.broadcast %4 : vector<32x1xf32> to vector<32x256xf32>
    %97 = arith.addf %95, %96 : vector<32x256xf32>
    %cst_35 = arith.constant 0.000000e+00 : f32
    %98 = vector.broadcast %cst_35 : f32 to vector<32x256xf32>
    %99 = arith.maximumf %97, %98 : vector<32x256xf32>
    %c0_36 = arith.constant 0 : index
    %c0_37 = arith.constant 0 : index
    %100 = vector.load %arg5[%c0_36, %c0_37] : memref<2x32xf32, #tpu.memory_space<vmem>>, vector<2x32xf32>
    %c0_38 = arith.constant 0 : index
    %c0_39 = arith.constant 0 : index
    %101 = vector.load %arg6[%c0_38, %c0_39] : memref<32x2xf32, #tpu.memory_space<vmem>>, vector<32x2xf32>
    %cst_40 = arith.constant dense<0.000000e+00> : vector<32xf32>
    %102 = vector.multi_reduction <add>, %99, %cst_40 [1] : vector<32x256xf32> to vector<32xf32>
    %103 = vector.shape_cast %102 : vector<32xf32> to vector<32x1xf32>
    %cst_41 = arith.constant 2.560000e+02 : f32
    %104 = vector.broadcast %cst_41 : f32 to vector<32x1xf32>
    %105 = arith.divf %103, %104 : vector<32x1xf32>
    %cst_42 = arith.constant dense<0xFF800000> : vector<32xf32>
    %106 = vector.multi_reduction <maximumf>, %99, %cst_42 [1] : vector<32x256xf32> to vector<32xf32>
    %107 = vector.shape_cast %106 : vector<32xf32> to vector<32x1xf32>
    %108 = tpu.concatenate %105, %107 in 1 : vector<32x1xf32>, vector<32x1xf32> -> vector<32x2xf32>
    %cst_43 = arith.constant dense<0.000000e+00> : vector<2x2xf32>
    %109 = tpu.matmul %100, %108, %cst_43 {dimension_numbers = #tpu.dot_dimension_numbers<[1], [0], [0], [1], [0, 0, 1, 1], [], []>} : vector<2x32xf32>, vector<32x2xf32>, vector<2x2xf32> -> vector<2x2xf32>
    %cst_44 = arith.constant 0.000000e+00 : f32
    %110 = vector.broadcast %cst_44 : f32 to vector<2x2xf32>
    %111 = arith.maximumf %109, %110 : vector<2x2xf32>
    %cst_45 = arith.constant dense<0.000000e+00> : vector<32x2xf32>
    %112 = tpu.matmul %101, %111, %cst_45 {dimension_numbers = #tpu.dot_dimension_numbers<[1], [0], [0], [1], [0, 0, 1, 1], [], []>} : vector<32x2xf32>, vector<2x2xf32>, vector<32x2xf32> -> vector<32x2xf32>
    %113 = vector.extract_strided_slice %112 {offsets = [0, 0], sizes = [32, 1], strides = [1, 1]} : vector<32x2xf32> to vector<32x1xf32>
    %114 = vector.extract_strided_slice %112 {offsets = [0, 1], sizes = [32, 1], strides = [1, 1]} : vector<32x2xf32> to vector<32x1xf32>
    %115 = arith.addf %113, %114 : vector<32x1xf32>
    %116 = arith.negf %115 : vector<32x1xf32>
    %117 = math.exp %116 : vector<32x1xf32>
    %cst_46 = arith.constant 1.000000e+00 : f32
    %118 = vector.broadcast %cst_46 : f32 to vector<32x1xf32>
    %119 = arith.addf %118, %117 : vector<32x1xf32>
    %120 = arith.divf %118, %119 : vector<32x1xf32>
    %121 = vector.broadcast %120 : vector<32x1xf32> to vector<32x256xf32>
    %122 = arith.mulf %99, %121 : vector<32x256xf32>
    %c0_47 = arith.constant 0 : index
    %c0_48 = arith.constant 0 : index
    %123 = vector.load %arg7[%c0_47, %c0_48] : memref<98x1xf32, #tpu.memory_space<vmem>>, vector<98x1xf32>
    %cst_49 = arith.constant dense<0.000000e+00> : vector<256xf32>
    %124 = vector.multi_reduction <add>, %122, %cst_49 [0] : vector<32x256xf32> to vector<256xf32>
    %125 = vector.shape_cast %124 : vector<256xf32> to vector<1x256xf32>
    %cst_50 = arith.constant 3.200000e+01 : f32
    %126 = vector.broadcast %cst_50 : f32 to vector<1x256xf32>
    %127 = arith.divf %125, %126 : vector<1x256xf32>
    %cst_51 = arith.constant dense<0xFF800000> : vector<256xf32>
    %128 = vector.multi_reduction <maximumf>, %122, %cst_51 [0] : vector<32x256xf32> to vector<256xf32>
    %129 = vector.shape_cast %128 : vector<256xf32> to vector<1x256xf32>
    %130 = tpu.concatenate %127, %129 in 0 : vector<1x256xf32>, vector<1x256xf32> -> vector<2x256xf32>
    %cst_52 = arith.constant 0.000000e+00 : f32
    %131 = vector.broadcast %cst_52 : f32 to vector<2x51xf32>
    %132 = tpu.concatenate %131, %130, %131 in 1 : vector<2x51xf32>, vector<2x256xf32>, vector<2x51xf32> -> vector<2x358xf32>
    %133 = vector.extract_strided_slice %132 {offsets = [0, 0], sizes = [2, 256], strides = [1, 1]} : vector<2x358xf32> to vector<2x256xf32>
    %c-3_i32 = arith.constant -3 : i32
    %134 = vector.broadcast %c-3_i32 : i32 to vector<1x256xi32>
    %135 = arith.addi %0, %134 : vector<1x256xi32>
    %c0_i32_53 = arith.constant 0 : i32
    %136 = vector.broadcast %c0_i32_53 : i32 to vector<1x256xi32>
    %137 = arith.cmpi sge, %135, %136 : vector<1x256xi32>
    %c-3_i32_54 = arith.constant -3 : i32
    %138 = vector.broadcast %c-3_i32_54 : i32 to vector<1x256xi32>
    %139 = arith.addi %0, %138 : vector<1x256xi32>
    %c16_i32_55 = arith.constant 16 : i32
    %140 = vector.broadcast %c16_i32_55 : i32 to vector<1x256xi32>
    %141 = arith.cmpi slt, %139, %140 : vector<1x256xi32>
    %142 = arith.andi %137, %141 : vector<1x256xi1>
    %cst_56 = arith.constant 0.000000e+00 : f32
    %143 = vector.shape_cast %142 : vector<1x256xi1> to vector<1x256xi1>
    %144 = vector.broadcast %143 : vector<1x256xi1> to vector<2x256xi1>
    %145 = vector.broadcast %cst_56 : f32 to vector<2x256xf32>
    %146 = arith.select %144, %133, %145 : vector<2x256xi1>, vector<2x256xf32>
    %147 = vector.extract_strided_slice %132 {offsets = [0, 1], sizes = [2, 256], strides = [1, 1]} : vector<2x358xf32> to vector<2x256xf32>
    %c-2_i32 = arith.constant -2 : i32
    %148 = vector.broadcast %c-2_i32 : i32 to vector<1x256xi32>
    %149 = arith.addi %0, %148 : vector<1x256xi32>
    %c0_i32_57 = arith.constant 0 : i32
    %150 = vector.broadcast %c0_i32_57 : i32 to vector<1x256xi32>
    %151 = arith.cmpi sge, %149, %150 : vector<1x256xi32>
    %c-2_i32_58 = arith.constant -2 : i32
    %152 = vector.broadcast %c-2_i32_58 : i32 to vector<1x256xi32>
    %153 = arith.addi %0, %152 : vector<1x256xi32>
    %c16_i32_59 = arith.constant 16 : i32
    %154 = vector.broadcast %c16_i32_59 : i32 to vector<1x256xi32>
    %155 = arith.cmpi slt, %153, %154 : vector<1x256xi32>
    %156 = arith.andi %151, %155 : vector<1x256xi1>
    %cst_60 = arith.constant 0.000000e+00 : f32
    %157 = vector.shape_cast %156 : vector<1x256xi1> to vector<1x256xi1>
    %158 = vector.broadcast %157 : vector<1x256xi1> to vector<2x256xi1>
    %159 = vector.broadcast %cst_60 : f32 to vector<2x256xf32>
    %160 = arith.select %158, %147, %159 : vector<2x256xi1>, vector<2x256xf32>
    %161 = vector.extract_strided_slice %132 {offsets = [0, 2], sizes = [2, 256], strides = [1, 1]} : vector<2x358xf32> to vector<2x256xf32>
    %c-1_i32_61 = arith.constant -1 : i32
    %162 = vector.broadcast %c-1_i32_61 : i32 to vector<1x256xi32>
    %163 = arith.addi %0, %162 : vector<1x256xi32>
    %c0_i32_62 = arith.constant 0 : i32
    %164 = vector.broadcast %c0_i32_62 : i32 to vector<1x256xi32>
    %165 = arith.cmpi sge, %163, %164 : vector<1x256xi32>
    %c-1_i32_63 = arith.constant -1 : i32
    %166 = vector.broadcast %c-1_i32_63 : i32 to vector<1x256xi32>
    %167 = arith.addi %0, %166 : vector<1x256xi32>
    %c16_i32_64 = arith.constant 16 : i32
    %168 = vector.broadcast %c16_i32_64 : i32 to vector<1x256xi32>
    %169 = arith.cmpi slt, %167, %168 : vector<1x256xi32>
    %170 = arith.andi %165, %169 : vector<1x256xi1>
    %cst_65 = arith.constant 0.000000e+00 : f32
    %171 = vector.shape_cast %170 : vector<1x256xi1> to vector<1x256xi1>
    %172 = vector.broadcast %171 : vector<1x256xi1> to vector<2x256xi1>
    %173 = vector.broadcast %cst_65 : f32 to vector<2x256xf32>
    %174 = arith.select %172, %161, %173 : vector<2x256xi1>, vector<2x256xf32>
    %175 = vector.extract_strided_slice %132 {offsets = [0, 3], sizes = [2, 256], strides = [1, 1]} : vector<2x358xf32> to vector<2x256xf32>
    %176 = vector.extract_strided_slice %132 {offsets = [0, 4], sizes = [2, 256], strides = [1, 1]} : vector<2x358xf32> to vector<2x256xf32>
    %c1_i32_66 = arith.constant 1 : i32
    %177 = vector.broadcast %c1_i32_66 : i32 to vector<1x256xi32>
    %178 = arith.addi %0, %177 : vector<1x256xi32>
    %c0_i32_67 = arith.constant 0 : i32
    %179 = vector.broadcast %c0_i32_67 : i32 to vector<1x256xi32>
    %180 = arith.cmpi sge, %178, %179 : vector<1x256xi32>
    %c1_i32_68 = arith.constant 1 : i32
    %181 = vector.broadcast %c1_i32_68 : i32 to vector<1x256xi32>
    %182 = arith.addi %0, %181 : vector<1x256xi32>
    %c16_i32_69 = arith.constant 16 : i32
    %183 = vector.broadcast %c16_i32_69 : i32 to vector<1x256xi32>
    %184 = arith.cmpi slt, %182, %183 : vector<1x256xi32>
    %185 = arith.andi %180, %184 : vector<1x256xi1>
    %cst_70 = arith.constant 0.000000e+00 : f32
    %186 = vector.shape_cast %185 : vector<1x256xi1> to vector<1x256xi1>
    %187 = vector.broadcast %186 : vector<1x256xi1> to vector<2x256xi1>
    %188 = vector.broadcast %cst_70 : f32 to vector<2x256xf32>
    %189 = arith.select %187, %176, %188 : vector<2x256xi1>, vector<2x256xf32>
    %190 = vector.extract_strided_slice %132 {offsets = [0, 5], sizes = [2, 256], strides = [1, 1]} : vector<2x358xf32> to vector<2x256xf32>
    %c2_i32 = arith.constant 2 : i32
    %191 = vector.broadcast %c2_i32 : i32 to vector<1x256xi32>
    %192 = arith.addi %0, %191 : vector<1x256xi32>
    %c0_i32_71 = arith.constant 0 : i32
    %193 = vector.broadcast %c0_i32_71 : i32 to vector<1x256xi32>
    %194 = arith.cmpi sge, %192, %193 : vector<1x256xi32>
    %c2_i32_72 = arith.constant 2 : i32
    %195 = vector.broadcast %c2_i32_72 : i32 to vector<1x256xi32>
    %196 = arith.addi %0, %195 : vector<1x256xi32>
    %c16_i32_73 = arith.constant 16 : i32
    %197 = vector.broadcast %c16_i32_73 : i32 to vector<1x256xi32>
    %198 = arith.cmpi slt, %196, %197 : vector<1x256xi32>
    %199 = arith.andi %194, %198 : vector<1x256xi1>
    %cst_74 = arith.constant 0.000000e+00 : f32
    %200 = vector.shape_cast %199 : vector<1x256xi1> to vector<1x256xi1>
    %201 = vector.broadcast %200 : vector<1x256xi1> to vector<2x256xi1>
    %202 = vector.broadcast %cst_74 : f32 to vector<2x256xf32>
    %203 = arith.select %201, %190, %202 : vector<2x256xi1>, vector<2x256xf32>
    %204 = vector.extract_strided_slice %132 {offsets = [0, 6], sizes = [2, 256], strides = [1, 1]} : vector<2x358xf32> to vector<2x256xf32>
    %c3_i32 = arith.constant 3 : i32
    %205 = vector.broadcast %c3_i32 : i32 to vector<1x256xi32>
    %206 = arith.addi %0, %205 : vector<1x256xi32>
    %c0_i32_75 = arith.constant 0 : i32
    %207 = vector.broadcast %c0_i32_75 : i32 to vector<1x256xi32>
    %208 = arith.cmpi sge, %206, %207 : vector<1x256xi32>
    %c3_i32_76 = arith.constant 3 : i32
    %209 = vector.broadcast %c3_i32_76 : i32 to vector<1x256xi32>
    %210 = arith.addi %0, %209 : vector<1x256xi32>
    %c16_i32_77 = arith.constant 16 : i32
    %211 = vector.broadcast %c16_i32_77 : i32 to vector<1x256xi32>
    %212 = arith.cmpi slt, %210, %211 : vector<1x256xi32>
    %213 = arith.andi %208, %212 : vector<1x256xi1>
    %cst_78 = arith.constant 0.000000e+00 : f32
    %214 = vector.shape_cast %213 : vector<1x256xi1> to vector<1x256xi1>
    %215 = vector.broadcast %214 : vector<1x256xi1> to vector<2x256xi1>
    %216 = vector.broadcast %cst_78 : f32 to vector<2x256xf32>
    %217 = arith.select %215, %204, %216 : vector<2x256xi1>, vector<2x256xf32>
    %218 = vector.extract_strided_slice %132 {offsets = [0, 16], sizes = [2, 256], strides = [1, 1]} : vector<2x358xf32> to vector<2x256xf32>
    %c-3_i32_79 = arith.constant -3 : i32
    %219 = vector.broadcast %c-3_i32_79 : i32 to vector<1x256xi32>
    %220 = arith.addi %0, %219 : vector<1x256xi32>
    %c0_i32_80 = arith.constant 0 : i32
    %221 = vector.broadcast %c0_i32_80 : i32 to vector<1x256xi32>
    %222 = arith.cmpi sge, %220, %221 : vector<1x256xi32>
    %c-3_i32_81 = arith.constant -3 : i32
    %223 = vector.broadcast %c-3_i32_81 : i32 to vector<1x256xi32>
    %224 = arith.addi %0, %223 : vector<1x256xi32>
    %c16_i32_82 = arith.constant 16 : i32
    %225 = vector.broadcast %c16_i32_82 : i32 to vector<1x256xi32>
    %226 = arith.cmpi slt, %224, %225 : vector<1x256xi32>
    %227 = arith.andi %222, %226 : vector<1x256xi1>
    %cst_83 = arith.constant 0.000000e+00 : f32
    %228 = vector.shape_cast %227 : vector<1x256xi1> to vector<1x256xi1>
    %229 = vector.broadcast %228 : vector<1x256xi1> to vector<2x256xi1>
    %230 = vector.broadcast %cst_83 : f32 to vector<2x256xf32>
    %231 = arith.select %229, %218, %230 : vector<2x256xi1>, vector<2x256xf32>
    %232 = vector.extract_strided_slice %132 {offsets = [0, 17], sizes = [2, 256], strides = [1, 1]} : vector<2x358xf32> to vector<2x256xf32>
    %c-2_i32_84 = arith.constant -2 : i32
    %233 = vector.broadcast %c-2_i32_84 : i32 to vector<1x256xi32>
    %234 = arith.addi %0, %233 : vector<1x256xi32>
    %c0_i32_85 = arith.constant 0 : i32
    %235 = vector.broadcast %c0_i32_85 : i32 to vector<1x256xi32>
    %236 = arith.cmpi sge, %234, %235 : vector<1x256xi32>
    %c-2_i32_86 = arith.constant -2 : i32
    %237 = vector.broadcast %c-2_i32_86 : i32 to vector<1x256xi32>
    %238 = arith.addi %0, %237 : vector<1x256xi32>
    %c16_i32_87 = arith.constant 16 : i32
    %239 = vector.broadcast %c16_i32_87 : i32 to vector<1x256xi32>
    %240 = arith.cmpi slt, %238, %239 : vector<1x256xi32>
    %241 = arith.andi %236, %240 : vector<1x256xi1>
    %cst_88 = arith.constant 0.000000e+00 : f32
    %242 = vector.shape_cast %241 : vector<1x256xi1> to vector<1x256xi1>
    %243 = vector.broadcast %242 : vector<1x256xi1> to vector<2x256xi1>
    %244 = vector.broadcast %cst_88 : f32 to vector<2x256xf32>
    %245 = arith.select %243, %232, %244 : vector<2x256xi1>, vector<2x256xf32>
    %246 = vector.extract_strided_slice %132 {offsets = [0, 18], sizes = [2, 256], strides = [1, 1]} : vector<2x358xf32> to vector<2x256xf32>
    %c-1_i32_89 = arith.constant -1 : i32
    %247 = vector.broadcast %c-1_i32_89 : i32 to vector<1x256xi32>
    %248 = arith.addi %0, %247 : vector<1x256xi32>
    %c0_i32_90 = arith.constant 0 : i32
    %249 = vector.broadcast %c0_i32_90 : i32 to vector<1x256xi32>
    %250 = arith.cmpi sge, %248, %249 : vector<1x256xi32>
    %c-1_i32_91 = arith.constant -1 : i32
    %251 = vector.broadcast %c-1_i32_91 : i32 to vector<1x256xi32>
    %252 = arith.addi %0, %251 : vector<1x256xi32>
    %c16_i32_92 = arith.constant 16 : i32
    %253 = vector.broadcast %c16_i32_92 : i32 to vector<1x256xi32>
    %254 = arith.cmpi slt, %252, %253 : vector<1x256xi32>
    %255 = arith.andi %250, %254 : vector<1x256xi1>
    %cst_93 = arith.constant 0.000000e+00 : f32
    %256 = vector.shape_cast %255 : vector<1x256xi1> to vector<1x256xi1>
    %257 = vector.broadcast %256 : vector<1x256xi1> to vector<2x256xi1>
    %258 = vector.broadcast %cst_93 : f32 to vector<2x256xf32>
    %259 = arith.select %257, %246, %258 : vector<2x256xi1>, vector<2x256xf32>
    %260 = vector.extract_strided_slice %132 {offsets = [0, 19], sizes = [2, 256], strides = [1, 1]} : vector<2x358xf32> to vector<2x256xf32>
    %261 = vector.extract_strided_slice %132 {offsets = [0, 20], sizes = [2, 256], strides = [1, 1]} : vector<2x358xf32> to vector<2x256xf32>
    %c1_i32_94 = arith.constant 1 : i32
    %262 = vector.broadcast %c1_i32_94 : i32 to vector<1x256xi32>
    %263 = arith.addi %0, %262 : vector<1x256xi32>
    %c0_i32_95 = arith.constant 0 : i32
    %264 = vector.broadcast %c0_i32_95 : i32 to vector<1x256xi32>
    %265 = arith.cmpi sge, %263, %264 : vector<1x256xi32>
    %c1_i32_96 = arith.constant 1 : i32
    %266 = vector.broadcast %c1_i32_96 : i32 to vector<1x256xi32>
    %267 = arith.addi %0, %266 : vector<1x256xi32>
    %c16_i32_97 = arith.constant 16 : i32
    %268 = vector.broadcast %c16_i32_97 : i32 to vector<1x256xi32>
    %269 = arith.cmpi slt, %267, %268 : vector<1x256xi32>
    %270 = arith.andi %265, %269 : vector<1x256xi1>
    %cst_98 = arith.constant 0.000000e+00 : f32
    %271 = vector.shape_cast %270 : vector<1x256xi1> to vector<1x256xi1>
    %272 = vector.broadcast %271 : vector<1x256xi1> to vector<2x256xi1>
    %273 = vector.broadcast %cst_98 : f32 to vector<2x256xf32>
    %274 = arith.select %272, %261, %273 : vector<2x256xi1>, vector<2x256xf32>
    %275 = vector.extract_strided_slice %132 {offsets = [0, 21], sizes = [2, 256], strides = [1, 1]} : vector<2x358xf32> to vector<2x256xf32>
    %c2_i32_99 = arith.constant 2 : i32
    %276 = vector.broadcast %c2_i32_99 : i32 to vector<1x256xi32>
    %277 = arith.addi %0, %276 : vector<1x256xi32>
    %c0_i32_100 = arith.constant 0 : i32
    %278 = vector.broadcast %c0_i32_100 : i32 to vector<1x256xi32>
    %279 = arith.cmpi sge, %277, %278 : vector<1x256xi32>
    %c2_i32_101 = arith.constant 2 : i32
    %280 = vector.broadcast %c2_i32_101 : i32 to vector<1x256xi32>
    %281 = arith.addi %0, %280 : vector<1x256xi32>
    %c16_i32_102 = arith.constant 16 : i32
    %282 = vector.broadcast %c16_i32_102 : i32 to vector<1x256xi32>
    %283 = arith.cmpi slt, %281, %282 : vector<1x256xi32>
    %284 = arith.andi %279, %283 : vector<1x256xi1>
    %cst_103 = arith.constant 0.000000e+00 : f32
    %285 = vector.shape_cast %284 : vector<1x256xi1> to vector<1x256xi1>
    %286 = vector.broadcast %285 : vector<1x256xi1> to vector<2x256xi1>
    %287 = vector.broadcast %cst_103 : f32 to vector<2x256xf32>
    %288 = arith.select %286, %275, %287 : vector<2x256xi1>, vector<2x256xf32>
    %289 = vector.extract_strided_slice %132 {offsets = [0, 22], sizes = [2, 256], strides = [1, 1]} : vector<2x358xf32> to vector<2x256xf32>
    %c3_i32_104 = arith.constant 3 : i32
    %290 = vector.broadcast %c3_i32_104 : i32 to vector<1x256xi32>
    %291 = arith.addi %0, %290 : vector<1x256xi32>
    %c0_i32_105 = arith.constant 0 : i32
    %292 = vector.broadcast %c0_i32_105 : i32 to vector<1x256xi32>
    %293 = arith.cmpi sge, %291, %292 : vector<1x256xi32>
    %c3_i32_106 = arith.constant 3 : i32
    %294 = vector.broadcast %c3_i32_106 : i32 to vector<1x256xi32>
    %295 = arith.addi %0, %294 : vector<1x256xi32>
    %c16_i32_107 = arith.constant 16 : i32
    %296 = vector.broadcast %c16_i32_107 : i32 to vector<1x256xi32>
    %297 = arith.cmpi slt, %295, %296 : vector<1x256xi32>
    %298 = arith.andi %293, %297 : vector<1x256xi1>
    %cst_108 = arith.constant 0.000000e+00 : f32
    %299 = vector.shape_cast %298 : vector<1x256xi1> to vector<1x256xi1>
    %300 = vector.broadcast %299 : vector<1x256xi1> to vector<2x256xi1>
    %301 = vector.broadcast %cst_108 : f32 to vector<2x256xf32>
    %302 = arith.select %300, %289, %301 : vector<2x256xi1>, vector<2x256xf32>
    %303 = vector.extract_strided_slice %132 {offsets = [0, 32], sizes = [2, 256], strides = [1, 1]} : vector<2x358xf32> to vector<2x256xf32>
    %c-3_i32_109 = arith.constant -3 : i32
    %304 = vector.broadcast %c-3_i32_109 : i32 to vector<1x256xi32>
    %305 = arith.addi %0, %304 : vector<1x256xi32>
    %c0_i32_110 = arith.constant 0 : i32
    %306 = vector.broadcast %c0_i32_110 : i32 to vector<1x256xi32>
    %307 = arith.cmpi sge, %305, %306 : vector<1x256xi32>
    %c-3_i32_111 = arith.constant -3 : i32
    %308 = vector.broadcast %c-3_i32_111 : i32 to vector<1x256xi32>
    %309 = arith.addi %0, %308 : vector<1x256xi32>
    %c16_i32_112 = arith.constant 16 : i32
    %310 = vector.broadcast %c16_i32_112 : i32 to vector<1x256xi32>
    %311 = arith.cmpi slt, %309, %310 : vector<1x256xi32>
    %312 = arith.andi %307, %311 : vector<1x256xi1>
    %cst_113 = arith.constant 0.000000e+00 : f32
    %313 = vector.shape_cast %312 : vector<1x256xi1> to vector<1x256xi1>
    %314 = vector.broadcast %313 : vector<1x256xi1> to vector<2x256xi1>
    %315 = vector.broadcast %cst_113 : f32 to vector<2x256xf32>
    %316 = arith.select %314, %303, %315 : vector<2x256xi1>, vector<2x256xf32>
    %317 = vector.extract_strided_slice %132 {offsets = [0, 33], sizes = [2, 256], strides = [1, 1]} : vector<2x358xf32> to vector<2x256xf32>
    %c-2_i32_114 = arith.constant -2 : i32
    %318 = vector.broadcast %c-2_i32_114 : i32 to vector<1x256xi32>
    %319 = arith.addi %0, %318 : vector<1x256xi32>
    %c0_i32_115 = arith.constant 0 : i32
    %320 = vector.broadcast %c0_i32_115 : i32 to vector<1x256xi32>
    %321 = arith.cmpi sge, %319, %320 : vector<1x256xi32>
    %c-2_i32_116 = arith.constant -2 : i32
    %322 = vector.broadcast %c-2_i32_116 : i32 to vector<1x256xi32>
    %323 = arith.addi %0, %322 : vector<1x256xi32>
    %c16_i32_117 = arith.constant 16 : i32
    %324 = vector.broadcast %c16_i32_117 : i32 to vector<1x256xi32>
    %325 = arith.cmpi slt, %323, %324 : vector<1x256xi32>
    %326 = arith.andi %321, %325 : vector<1x256xi1>
    %cst_118 = arith.constant 0.000000e+00 : f32
    %327 = vector.shape_cast %326 : vector<1x256xi1> to vector<1x256xi1>
    %328 = vector.broadcast %327 : vector<1x256xi1> to vector<2x256xi1>
    %329 = vector.broadcast %cst_118 : f32 to vector<2x256xf32>
    %330 = arith.select %328, %317, %329 : vector<2x256xi1>, vector<2x256xf32>
    %331 = vector.extract_strided_slice %132 {offsets = [0, 34], sizes = [2, 256], strides = [1, 1]} : vector<2x358xf32> to vector<2x256xf32>
    %c-1_i32_119 = arith.constant -1 : i32
    %332 = vector.broadcast %c-1_i32_119 : i32 to vector<1x256xi32>
    %333 = arith.addi %0, %332 : vector<1x256xi32>
    %c0_i32_120 = arith.constant 0 : i32
    %334 = vector.broadcast %c0_i32_120 : i32 to vector<1x256xi32>
    %335 = arith.cmpi sge, %333, %334 : vector<1x256xi32>
    %c-1_i32_121 = arith.constant -1 : i32
    %336 = vector.broadcast %c-1_i32_121 : i32 to vector<1x256xi32>
    %337 = arith.addi %0, %336 : vector<1x256xi32>
    %c16_i32_122 = arith.constant 16 : i32
    %338 = vector.broadcast %c16_i32_122 : i32 to vector<1x256xi32>
    %339 = arith.cmpi slt, %337, %338 : vector<1x256xi32>
    %340 = arith.andi %335, %339 : vector<1x256xi1>
    %cst_123 = arith.constant 0.000000e+00 : f32
    %341 = vector.shape_cast %340 : vector<1x256xi1> to vector<1x256xi1>
    %342 = vector.broadcast %341 : vector<1x256xi1> to vector<2x256xi1>
    %343 = vector.broadcast %cst_123 : f32 to vector<2x256xf32>
    %344 = arith.select %342, %331, %343 : vector<2x256xi1>, vector<2x256xf32>
    %345 = vector.extract_strided_slice %132 {offsets = [0, 35], sizes = [2, 256], strides = [1, 1]} : vector<2x358xf32> to vector<2x256xf32>
    %346 = vector.extract_strided_slice %132 {offsets = [0, 36], sizes = [2, 256], strides = [1, 1]} : vector<2x358xf32> to vector<2x256xf32>
    %c1_i32_124 = arith.constant 1 : i32
    %347 = vector.broadcast %c1_i32_124 : i32 to vector<1x256xi32>
    %348 = arith.addi %0, %347 : vector<1x256xi32>
    %c0_i32_125 = arith.constant 0 : i32
    %349 = vector.broadcast %c0_i32_125 : i32 to vector<1x256xi32>
    %350 = arith.cmpi sge, %348, %349 : vector<1x256xi32>
    %c1_i32_126 = arith.constant 1 : i32
    %351 = vector.broadcast %c1_i32_126 : i32 to vector<1x256xi32>
    %352 = arith.addi %0, %351 : vector<1x256xi32>
    %c16_i32_127 = arith.constant 16 : i32
    %353 = vector.broadcast %c16_i32_127 : i32 to vector<1x256xi32>
    %354 = arith.cmpi slt, %352, %353 : vector<1x256xi32>
    %355 = arith.andi %350, %354 : vector<1x256xi1>
    %cst_128 = arith.constant 0.000000e+00 : f32
    %356 = vector.shape_cast %355 : vector<1x256xi1> to vector<1x256xi1>
    %357 = vector.broadcast %356 : vector<1x256xi1> to vector<2x256xi1>
    %358 = vector.broadcast %cst_128 : f32 to vector<2x256xf32>
    %359 = arith.select %357, %346, %358 : vector<2x256xi1>, vector<2x256xf32>
    %360 = vector.extract_strided_slice %132 {offsets = [0, 37], sizes = [2, 256], strides = [1, 1]} : vector<2x358xf32> to vector<2x256xf32>
    %c2_i32_129 = arith.constant 2 : i32
    %361 = vector.broadcast %c2_i32_129 : i32 to vector<1x256xi32>
    %362 = arith.addi %0, %361 : vector<1x256xi32>
    %c0_i32_130 = arith.constant 0 : i32
    %363 = vector.broadcast %c0_i32_130 : i32 to vector<1x256xi32>
    %364 = arith.cmpi sge, %362, %363 : vector<1x256xi32>
    %c2_i32_131 = arith.constant 2 : i32
    %365 = vector.broadcast %c2_i32_131 : i32 to vector<1x256xi32>
    %366 = arith.addi %0, %365 : vector<1x256xi32>
    %c16_i32_132 = arith.constant 16 : i32
    %367 = vector.broadcast %c16_i32_132 : i32 to vector<1x256xi32>
    %368 = arith.cmpi slt, %366, %367 : vector<1x256xi32>
    %369 = arith.andi %364, %368 : vector<1x256xi1>
    %cst_133 = arith.constant 0.000000e+00 : f32
    %370 = vector.shape_cast %369 : vector<1x256xi1> to vector<1x256xi1>
    %371 = vector.broadcast %370 : vector<1x256xi1> to vector<2x256xi1>
    %372 = vector.broadcast %cst_133 : f32 to vector<2x256xf32>
    %373 = arith.select %371, %360, %372 : vector<2x256xi1>, vector<2x256xf32>
    %374 = vector.extract_strided_slice %132 {offsets = [0, 38], sizes = [2, 256], strides = [1, 1]} : vector<2x358xf32> to vector<2x256xf32>
    %c3_i32_134 = arith.constant 3 : i32
    %375 = vector.broadcast %c3_i32_134 : i32 to vector<1x256xi32>
    %376 = arith.addi %0, %375 : vector<1x256xi32>
    %c0_i32_135 = arith.constant 0 : i32
    %377 = vector.broadcast %c0_i32_135 : i32 to vector<1x256xi32>
    %378 = arith.cmpi sge, %376, %377 : vector<1x256xi32>
    %c3_i32_136 = arith.constant 3 : i32
    %379 = vector.broadcast %c3_i32_136 : i32 to vector<1x256xi32>
    %380 = arith.addi %0, %379 : vector<1x256xi32>
    %c16_i32_137 = arith.constant 16 : i32
    %381 = vector.broadcast %c16_i32_137 : i32 to vector<1x256xi32>
    %382 = arith.cmpi slt, %380, %381 : vector<1x256xi32>
    %383 = arith.andi %378, %382 : vector<1x256xi1>
    %cst_138 = arith.constant 0.000000e+00 : f32
    %384 = vector.shape_cast %383 : vector<1x256xi1> to vector<1x256xi1>
    %385 = vector.broadcast %384 : vector<1x256xi1> to vector<2x256xi1>
    %386 = vector.broadcast %cst_138 : f32 to vector<2x256xf32>
    %387 = arith.select %385, %374, %386 : vector<2x256xi1>, vector<2x256xf32>
    %388 = vector.extract_strided_slice %132 {offsets = [0, 48], sizes = [2, 256], strides = [1, 1]} : vector<2x358xf32> to vector<2x256xf32>
    %c-3_i32_139 = arith.constant -3 : i32
    %389 = vector.broadcast %c-3_i32_139 : i32 to vector<1x256xi32>
    %390 = arith.addi %0, %389 : vector<1x256xi32>
    %c0_i32_140 = arith.constant 0 : i32
    %391 = vector.broadcast %c0_i32_140 : i32 to vector<1x256xi32>
    %392 = arith.cmpi sge, %390, %391 : vector<1x256xi32>
    %c-3_i32_141 = arith.constant -3 : i32
    %393 = vector.broadcast %c-3_i32_141 : i32 to vector<1x256xi32>
    %394 = arith.addi %0, %393 : vector<1x256xi32>
    %c16_i32_142 = arith.constant 16 : i32
    %395 = vector.broadcast %c16_i32_142 : i32 to vector<1x256xi32>
    %396 = arith.cmpi slt, %394, %395 : vector<1x256xi32>
    %397 = arith.andi %392, %396 : vector<1x256xi1>
    %cst_143 = arith.constant 0.000000e+00 : f32
    %398 = vector.shape_cast %397 : vector<1x256xi1> to vector<1x256xi1>
    %399 = vector.broadcast %398 : vector<1x256xi1> to vector<2x256xi1>
    %400 = vector.broadcast %cst_143 : f32 to vector<2x256xf32>
    %401 = arith.select %399, %388, %400 : vector<2x256xi1>, vector<2x256xf32>
    %402 = vector.extract_strided_slice %132 {offsets = [0, 49], sizes = [2, 256], strides = [1, 1]} : vector<2x358xf32> to vector<2x256xf32>
    %c-2_i32_144 = arith.constant -2 : i32
    %403 = vector.broadcast %c-2_i32_144 : i32 to vector<1x256xi32>
    %404 = arith.addi %0, %403 : vector<1x256xi32>
    %c0_i32_145 = arith.constant 0 : i32
    %405 = vector.broadcast %c0_i32_145 : i32 to vector<1x256xi32>
    %406 = arith.cmpi sge, %404, %405 : vector<1x256xi32>
    %c-2_i32_146 = arith.constant -2 : i32
    %407 = vector.broadcast %c-2_i32_146 : i32 to vector<1x256xi32>
    %408 = arith.addi %0, %407 : vector<1x256xi32>
    %c16_i32_147 = arith.constant 16 : i32
    %409 = vector.broadcast %c16_i32_147 : i32 to vector<1x256xi32>
    %410 = arith.cmpi slt, %408, %409 : vector<1x256xi32>
    %411 = arith.andi %406, %410 : vector<1x256xi1>
    %cst_148 = arith.constant 0.000000e+00 : f32
    %412 = vector.shape_cast %411 : vector<1x256xi1> to vector<1x256xi1>
    %413 = vector.broadcast %412 : vector<1x256xi1> to vector<2x256xi1>
    %414 = vector.broadcast %cst_148 : f32 to vector<2x256xf32>
    %415 = arith.select %413, %402, %414 : vector<2x256xi1>, vector<2x256xf32>
    %416 = vector.extract_strided_slice %132 {offsets = [0, 50], sizes = [2, 256], strides = [1, 1]} : vector<2x358xf32> to vector<2x256xf32>
    %c-1_i32_149 = arith.constant -1 : i32
    %417 = vector.broadcast %c-1_i32_149 : i32 to vector<1x256xi32>
    %418 = arith.addi %0, %417 : vector<1x256xi32>
    %c0_i32_150 = arith.constant 0 : i32
    %419 = vector.broadcast %c0_i32_150 : i32 to vector<1x256xi32>
    %420 = arith.cmpi sge, %418, %419 : vector<1x256xi32>
    %c-1_i32_151 = arith.constant -1 : i32
    %421 = vector.broadcast %c-1_i32_151 : i32 to vector<1x256xi32>
    %422 = arith.addi %0, %421 : vector<1x256xi32>
    %c16_i32_152 = arith.constant 16 : i32
    %423 = vector.broadcast %c16_i32_152 : i32 to vector<1x256xi32>
    %424 = arith.cmpi slt, %422, %423 : vector<1x256xi32>
    %425 = arith.andi %420, %424 : vector<1x256xi1>
    %cst_153 = arith.constant 0.000000e+00 : f32
    %426 = vector.shape_cast %425 : vector<1x256xi1> to vector<1x256xi1>
    %427 = vector.broadcast %426 : vector<1x256xi1> to vector<2x256xi1>
    %428 = vector.broadcast %cst_153 : f32 to vector<2x256xf32>
    %429 = arith.select %427, %416, %428 : vector<2x256xi1>, vector<2x256xf32>
    %430 = vector.extract_strided_slice %132 {offsets = [0, 51], sizes = [2, 256], strides = [1, 1]} : vector<2x358xf32> to vector<2x256xf32>
    %431 = vector.extract_strided_slice %132 {offsets = [0, 52], sizes = [2, 256], strides = [1, 1]} : vector<2x358xf32> to vector<2x256xf32>
    %c1_i32_154 = arith.constant 1 : i32
    %432 = vector.broadcast %c1_i32_154 : i32 to vector<1x256xi32>
    %433 = arith.addi %0, %432 : vector<1x256xi32>
    %c0_i32_155 = arith.constant 0 : i32
    %434 = vector.broadcast %c0_i32_155 : i32 to vector<1x256xi32>
    %435 = arith.cmpi sge, %433, %434 : vector<1x256xi32>
    %c1_i32_156 = arith.constant 1 : i32
    %436 = vector.broadcast %c1_i32_156 : i32 to vector<1x256xi32>
    %437 = arith.addi %0, %436 : vector<1x256xi32>
    %c16_i32_157 = arith.constant 16 : i32
    %438 = vector.broadcast %c16_i32_157 : i32 to vector<1x256xi32>
    %439 = arith.cmpi slt, %437, %438 : vector<1x256xi32>
    %440 = arith.andi %435, %439 : vector<1x256xi1>
    %cst_158 = arith.constant 0.000000e+00 : f32
    %441 = vector.shape_cast %440 : vector<1x256xi1> to vector<1x256xi1>
    %442 = vector.broadcast %441 : vector<1x256xi1> to vector<2x256xi1>
    %443 = vector.broadcast %cst_158 : f32 to vector<2x256xf32>
    %444 = arith.select %442, %431, %443 : vector<2x256xi1>, vector<2x256xf32>
    %445 = vector.extract_strided_slice %132 {offsets = [0, 53], sizes = [2, 256], strides = [1, 1]} : vector<2x358xf32> to vector<2x256xf32>
    %c2_i32_159 = arith.constant 2 : i32
    %446 = vector.broadcast %c2_i32_159 : i32 to vector<1x256xi32>
    %447 = arith.addi %0, %446 : vector<1x256xi32>
    %c0_i32_160 = arith.constant 0 : i32
    %448 = vector.broadcast %c0_i32_160 : i32 to vector<1x256xi32>
    %449 = arith.cmpi sge, %447, %448 : vector<1x256xi32>
    %c2_i32_161 = arith.constant 2 : i32
    %450 = vector.broadcast %c2_i32_161 : i32 to vector<1x256xi32>
    %451 = arith.addi %0, %450 : vector<1x256xi32>
    %c16_i32_162 = arith.constant 16 : i32
    %452 = vector.broadcast %c16_i32_162 : i32 to vector<1x256xi32>
    %453 = arith.cmpi slt, %451, %452 : vector<1x256xi32>
    %454 = arith.andi %449, %453 : vector<1x256xi1>
    %cst_163 = arith.constant 0.000000e+00 : f32
    %455 = vector.shape_cast %454 : vector<1x256xi1> to vector<1x256xi1>
    %456 = vector.broadcast %455 : vector<1x256xi1> to vector<2x256xi1>
    %457 = vector.broadcast %cst_163 : f32 to vector<2x256xf32>
    %458 = arith.select %456, %445, %457 : vector<2x256xi1>, vector<2x256xf32>
    %459 = vector.extract_strided_slice %132 {offsets = [0, 54], sizes = [2, 256], strides = [1, 1]} : vector<2x358xf32> to vector<2x256xf32>
    %c3_i32_164 = arith.constant 3 : i32
    %460 = vector.broadcast %c3_i32_164 : i32 to vector<1x256xi32>
    %461 = arith.addi %0, %460 : vector<1x256xi32>
    %c0_i32_165 = arith.constant 0 : i32
    %462 = vector.broadcast %c0_i32_165 : i32 to vector<1x256xi32>
    %463 = arith.cmpi sge, %461, %462 : vector<1x256xi32>
    %c3_i32_166 = arith.constant 3 : i32
    %464 = vector.broadcast %c3_i32_166 : i32 to vector<1x256xi32>
    %465 = arith.addi %0, %464 : vector<1x256xi32>
    %c16_i32_167 = arith.constant 16 : i32
    %466 = vector.broadcast %c16_i32_167 : i32 to vector<1x256xi32>
    %467 = arith.cmpi slt, %465, %466 : vector<1x256xi32>
    %468 = arith.andi %463, %467 : vector<1x256xi1>
    %cst_168 = arith.constant 0.000000e+00 : f32
    %469 = vector.shape_cast %468 : vector<1x256xi1> to vector<1x256xi1>
    %470 = vector.broadcast %469 : vector<1x256xi1> to vector<2x256xi1>
    %471 = vector.broadcast %cst_168 : f32 to vector<2x256xf32>
    %472 = arith.select %470, %459, %471 : vector<2x256xi1>, vector<2x256xf32>
    %473 = vector.extract_strided_slice %132 {offsets = [0, 64], sizes = [2, 256], strides = [1, 1]} : vector<2x358xf32> to vector<2x256xf32>
    %c-3_i32_169 = arith.constant -3 : i32
    %474 = vector.broadcast %c-3_i32_169 : i32 to vector<1x256xi32>
    %475 = arith.addi %0, %474 : vector<1x256xi32>
    %c0_i32_170 = arith.constant 0 : i32
    %476 = vector.broadcast %c0_i32_170 : i32 to vector<1x256xi32>
    %477 = arith.cmpi sge, %475, %476 : vector<1x256xi32>
    %c-3_i32_171 = arith.constant -3 : i32
    %478 = vector.broadcast %c-3_i32_171 : i32 to vector<1x256xi32>
    %479 = arith.addi %0, %478 : vector<1x256xi32>
    %c16_i32_172 = arith.constant 16 : i32
    %480 = vector.broadcast %c16_i32_172 : i32 to vector<1x256xi32>
    %481 = arith.cmpi slt, %479, %480 : vector<1x256xi32>
    %482 = arith.andi %477, %481 : vector<1x256xi1>
    %cst_173 = arith.constant 0.000000e+00 : f32
    %483 = vector.shape_cast %482 : vector<1x256xi1> to vector<1x256xi1>
    %484 = vector.broadcast %483 : vector<1x256xi1> to vector<2x256xi1>
    %485 = vector.broadcast %cst_173 : f32 to vector<2x256xf32>
    %486 = arith.select %484, %473, %485 : vector<2x256xi1>, vector<2x256xf32>
    %487 = vector.extract_strided_slice %132 {offsets = [0, 65], sizes = [2, 256], strides = [1, 1]} : vector<2x358xf32> to vector<2x256xf32>
    %c-2_i32_174 = arith.constant -2 : i32
    %488 = vector.broadcast %c-2_i32_174 : i32 to vector<1x256xi32>
    %489 = arith.addi %0, %488 : vector<1x256xi32>
    %c0_i32_175 = arith.constant 0 : i32
    %490 = vector.broadcast %c0_i32_175 : i32 to vector<1x256xi32>
    %491 = arith.cmpi sge, %489, %490 : vector<1x256xi32>
    %c-2_i32_176 = arith.constant -2 : i32
    %492 = vector.broadcast %c-2_i32_176 : i32 to vector<1x256xi32>
    %493 = arith.addi %0, %492 : vector<1x256xi32>
    %c16_i32_177 = arith.constant 16 : i32
    %494 = vector.broadcast %c16_i32_177 : i32 to vector<1x256xi32>
    %495 = arith.cmpi slt, %493, %494 : vector<1x256xi32>
    %496 = arith.andi %491, %495 : vector<1x256xi1>
    %cst_178 = arith.constant 0.000000e+00 : f32
    %497 = vector.shape_cast %496 : vector<1x256xi1> to vector<1x256xi1>
    %498 = vector.broadcast %497 : vector<1x256xi1> to vector<2x256xi1>
    %499 = vector.broadcast %cst_178 : f32 to vector<2x256xf32>
    %500 = arith.select %498, %487, %499 : vector<2x256xi1>, vector<2x256xf32>
    %501 = vector.extract_strided_slice %132 {offsets = [0, 66], sizes = [2, 256], strides = [1, 1]} : vector<2x358xf32> to vector<2x256xf32>
    %c-1_i32_179 = arith.constant -1 : i32
    %502 = vector.broadcast %c-1_i32_179 : i32 to vector<1x256xi32>
    %503 = arith.addi %0, %502 : vector<1x256xi32>
    %c0_i32_180 = arith.constant 0 : i32
    %504 = vector.broadcast %c0_i32_180 : i32 to vector<1x256xi32>
    %505 = arith.cmpi sge, %503, %504 : vector<1x256xi32>
    %c-1_i32_181 = arith.constant -1 : i32
    %506 = vector.broadcast %c-1_i32_181 : i32 to vector<1x256xi32>
    %507 = arith.addi %0, %506 : vector<1x256xi32>
    %c16_i32_182 = arith.constant 16 : i32
    %508 = vector.broadcast %c16_i32_182 : i32 to vector<1x256xi32>
    %509 = arith.cmpi slt, %507, %508 : vector<1x256xi32>
    %510 = arith.andi %505, %509 : vector<1x256xi1>
    %cst_183 = arith.constant 0.000000e+00 : f32
    %511 = vector.shape_cast %510 : vector<1x256xi1> to vector<1x256xi1>
    %512 = vector.broadcast %511 : vector<1x256xi1> to vector<2x256xi1>
    %513 = vector.broadcast %cst_183 : f32 to vector<2x256xf32>
    %514 = arith.select %512, %501, %513 : vector<2x256xi1>, vector<2x256xf32>
    %515 = vector.extract_strided_slice %132 {offsets = [0, 67], sizes = [2, 256], strides = [1, 1]} : vector<2x358xf32> to vector<2x256xf32>
    %516 = vector.extract_strided_slice %132 {offsets = [0, 68], sizes = [2, 256], strides = [1, 1]} : vector<2x358xf32> to vector<2x256xf32>
    %c1_i32_184 = arith.constant 1 : i32
    %517 = vector.broadcast %c1_i32_184 : i32 to vector<1x256xi32>
    %518 = arith.addi %0, %517 : vector<1x256xi32>
    %c0_i32_185 = arith.constant 0 : i32
    %519 = vector.broadcast %c0_i32_185 : i32 to vector<1x256xi32>
    %520 = arith.cmpi sge, %518, %519 : vector<1x256xi32>
    %c1_i32_186 = arith.constant 1 : i32
    %521 = vector.broadcast %c1_i32_186 : i32 to vector<1x256xi32>
    %522 = arith.addi %0, %521 : vector<1x256xi32>
    %c16_i32_187 = arith.constant 16 : i32
    %523 = vector.broadcast %c16_i32_187 : i32 to vector<1x256xi32>
    %524 = arith.cmpi slt, %522, %523 : vector<1x256xi32>
    %525 = arith.andi %520, %524 : vector<1x256xi1>
    %cst_188 = arith.constant 0.000000e+00 : f32
    %526 = vector.shape_cast %525 : vector<1x256xi1> to vector<1x256xi1>
    %527 = vector.broadcast %526 : vector<1x256xi1> to vector<2x256xi1>
    %528 = vector.broadcast %cst_188 : f32 to vector<2x256xf32>
    %529 = arith.select %527, %516, %528 : vector<2x256xi1>, vector<2x256xf32>
    %530 = vector.extract_strided_slice %132 {offsets = [0, 69], sizes = [2, 256], strides = [1, 1]} : vector<2x358xf32> to vector<2x256xf32>
    %c2_i32_189 = arith.constant 2 : i32
    %531 = vector.broadcast %c2_i32_189 : i32 to vector<1x256xi32>
    %532 = arith.addi %0, %531 : vector<1x256xi32>
    %c0_i32_190 = arith.constant 0 : i32
    %533 = vector.broadcast %c0_i32_190 : i32 to vector<1x256xi32>
    %534 = arith.cmpi sge, %532, %533 : vector<1x256xi32>
    %c2_i32_191 = arith.constant 2 : i32
    %535 = vector.broadcast %c2_i32_191 : i32 to vector<1x256xi32>
    %536 = arith.addi %0, %535 : vector<1x256xi32>
    %c16_i32_192 = arith.constant 16 : i32
    %537 = vector.broadcast %c16_i32_192 : i32 to vector<1x256xi32>
    %538 = arith.cmpi slt, %536, %537 : vector<1x256xi32>
    %539 = arith.andi %534, %538 : vector<1x256xi1>
    %cst_193 = arith.constant 0.000000e+00 : f32
    %540 = vector.shape_cast %539 : vector<1x256xi1> to vector<1x256xi1>
    %541 = vector.broadcast %540 : vector<1x256xi1> to vector<2x256xi1>
    %542 = vector.broadcast %cst_193 : f32 to vector<2x256xf32>
    %543 = arith.select %541, %530, %542 : vector<2x256xi1>, vector<2x256xf32>
    %544 = vector.extract_strided_slice %132 {offsets = [0, 70], sizes = [2, 256], strides = [1, 1]} : vector<2x358xf32> to vector<2x256xf32>
    %c3_i32_194 = arith.constant 3 : i32
    %545 = vector.broadcast %c3_i32_194 : i32 to vector<1x256xi32>
    %546 = arith.addi %0, %545 : vector<1x256xi32>
    %c0_i32_195 = arith.constant 0 : i32
    %547 = vector.broadcast %c0_i32_195 : i32 to vector<1x256xi32>
    %548 = arith.cmpi sge, %546, %547 : vector<1x256xi32>
    %c3_i32_196 = arith.constant 3 : i32
    %549 = vector.broadcast %c3_i32_196 : i32 to vector<1x256xi32>
    %550 = arith.addi %0, %549 : vector<1x256xi32>
    %c16_i32_197 = arith.constant 16 : i32
    %551 = vector.broadcast %c16_i32_197 : i32 to vector<1x256xi32>
    %552 = arith.cmpi slt, %550, %551 : vector<1x256xi32>
    %553 = arith.andi %548, %552 : vector<1x256xi1>
    %cst_198 = arith.constant 0.000000e+00 : f32
    %554 = vector.shape_cast %553 : vector<1x256xi1> to vector<1x256xi1>
    %555 = vector.broadcast %554 : vector<1x256xi1> to vector<2x256xi1>
    %556 = vector.broadcast %cst_198 : f32 to vector<2x256xf32>
    %557 = arith.select %555, %544, %556 : vector<2x256xi1>, vector<2x256xf32>
    %558 = vector.extract_strided_slice %132 {offsets = [0, 80], sizes = [2, 256], strides = [1, 1]} : vector<2x358xf32> to vector<2x256xf32>
    %c-3_i32_199 = arith.constant -3 : i32
    %559 = vector.broadcast %c-3_i32_199 : i32 to vector<1x256xi32>
    %560 = arith.addi %0, %559 : vector<1x256xi32>
    %c0_i32_200 = arith.constant 0 : i32
    %561 = vector.broadcast %c0_i32_200 : i32 to vector<1x256xi32>
    %562 = arith.cmpi sge, %560, %561 : vector<1x256xi32>
    %c-3_i32_201 = arith.constant -3 : i32
    %563 = vector.broadcast %c-3_i32_201 : i32 to vector<1x256xi32>
    %564 = arith.addi %0, %563 : vector<1x256xi32>
    %c16_i32_202 = arith.constant 16 : i32
    %565 = vector.broadcast %c16_i32_202 : i32 to vector<1x256xi32>
    %566 = arith.cmpi slt, %564, %565 : vector<1x256xi32>
    %567 = arith.andi %562, %566 : vector<1x256xi1>
    %cst_203 = arith.constant 0.000000e+00 : f32
    %568 = vector.shape_cast %567 : vector<1x256xi1> to vector<1x256xi1>
    %569 = vector.broadcast %568 : vector<1x256xi1> to vector<2x256xi1>
    %570 = vector.broadcast %cst_203 : f32 to vector<2x256xf32>
    %571 = arith.select %569, %558, %570 : vector<2x256xi1>, vector<2x256xf32>
    %572 = vector.extract_strided_slice %132 {offsets = [0, 81], sizes = [2, 256], strides = [1, 1]} : vector<2x358xf32> to vector<2x256xf32>
    %c-2_i32_204 = arith.constant -2 : i32
    %573 = vector.broadcast %c-2_i32_204 : i32 to vector<1x256xi32>
    %574 = arith.addi %0, %573 : vector<1x256xi32>
    %c0_i32_205 = arith.constant 0 : i32
    %575 = vector.broadcast %c0_i32_205 : i32 to vector<1x256xi32>
    %576 = arith.cmpi sge, %574, %575 : vector<1x256xi32>
    %c-2_i32_206 = arith.constant -2 : i32
    %577 = vector.broadcast %c-2_i32_206 : i32 to vector<1x256xi32>
    %578 = arith.addi %0, %577 : vector<1x256xi32>
    %c16_i32_207 = arith.constant 16 : i32
    %579 = vector.broadcast %c16_i32_207 : i32 to vector<1x256xi32>
    %580 = arith.cmpi slt, %578, %579 : vector<1x256xi32>
    %581 = arith.andi %576, %580 : vector<1x256xi1>
    %cst_208 = arith.constant 0.000000e+00 : f32
    %582 = vector.shape_cast %581 : vector<1x256xi1> to vector<1x256xi1>
    %583 = vector.broadcast %582 : vector<1x256xi1> to vector<2x256xi1>
    %584 = vector.broadcast %cst_208 : f32 to vector<2x256xf32>
    %585 = arith.select %583, %572, %584 : vector<2x256xi1>, vector<2x256xf32>
    %586 = vector.extract_strided_slice %132 {offsets = [0, 82], sizes = [2, 256], strides = [1, 1]} : vector<2x358xf32> to vector<2x256xf32>
    %c-1_i32_209 = arith.constant -1 : i32
    %587 = vector.broadcast %c-1_i32_209 : i32 to vector<1x256xi32>
    %588 = arith.addi %0, %587 : vector<1x256xi32>
    %c0_i32_210 = arith.constant 0 : i32
    %589 = vector.broadcast %c0_i32_210 : i32 to vector<1x256xi32>
    %590 = arith.cmpi sge, %588, %589 : vector<1x256xi32>
    %c-1_i32_211 = arith.constant -1 : i32
    %591 = vector.broadcast %c-1_i32_211 : i32 to vector<1x256xi32>
    %592 = arith.addi %0, %591 : vector<1x256xi32>
    %c16_i32_212 = arith.constant 16 : i32
    %593 = vector.broadcast %c16_i32_212 : i32 to vector<1x256xi32>
    %594 = arith.cmpi slt, %592, %593 : vector<1x256xi32>
    %595 = arith.andi %590, %594 : vector<1x256xi1>
    %cst_213 = arith.constant 0.000000e+00 : f32
    %596 = vector.shape_cast %595 : vector<1x256xi1> to vector<1x256xi1>
    %597 = vector.broadcast %596 : vector<1x256xi1> to vector<2x256xi1>
    %598 = vector.broadcast %cst_213 : f32 to vector<2x256xf32>
    %599 = arith.select %597, %586, %598 : vector<2x256xi1>, vector<2x256xf32>
    %600 = vector.extract_strided_slice %132 {offsets = [0, 83], sizes = [2, 256], strides = [1, 1]} : vector<2x358xf32> to vector<2x256xf32>
    %601 = vector.extract_strided_slice %132 {offsets = [0, 84], sizes = [2, 256], strides = [1, 1]} : vector<2x358xf32> to vector<2x256xf32>
    %c1_i32_214 = arith.constant 1 : i32
    %602 = vector.broadcast %c1_i32_214 : i32 to vector<1x256xi32>
    %603 = arith.addi %0, %602 : vector<1x256xi32>
    %c0_i32_215 = arith.constant 0 : i32
    %604 = vector.broadcast %c0_i32_215 : i32 to vector<1x256xi32>
    %605 = arith.cmpi sge, %603, %604 : vector<1x256xi32>
    %c1_i32_216 = arith.constant 1 : i32
    %606 = vector.broadcast %c1_i32_216 : i32 to vector<1x256xi32>
    %607 = arith.addi %0, %606 : vector<1x256xi32>
    %c16_i32_217 = arith.constant 16 : i32
    %608 = vector.broadcast %c16_i32_217 : i32 to vector<1x256xi32>
    %609 = arith.cmpi slt, %607, %608 : vector<1x256xi32>
    %610 = arith.andi %605, %609 : vector<1x256xi1>
    %cst_218 = arith.constant 0.000000e+00 : f32
    %611 = vector.shape_cast %610 : vector<1x256xi1> to vector<1x256xi1>
    %612 = vector.broadcast %611 : vector<1x256xi1> to vector<2x256xi1>
    %613 = vector.broadcast %cst_218 : f32 to vector<2x256xf32>
    %614 = arith.select %612, %601, %613 : vector<2x256xi1>, vector<2x256xf32>
    %615 = vector.extract_strided_slice %132 {offsets = [0, 85], sizes = [2, 256], strides = [1, 1]} : vector<2x358xf32> to vector<2x256xf32>
    %c2_i32_219 = arith.constant 2 : i32
    %616 = vector.broadcast %c2_i32_219 : i32 to vector<1x256xi32>
    %617 = arith.addi %0, %616 : vector<1x256xi32>
    %c0_i32_220 = arith.constant 0 : i32
    %618 = vector.broadcast %c0_i32_220 : i32 to vector<1x256xi32>
    %619 = arith.cmpi sge, %617, %618 : vector<1x256xi32>
    %c2_i32_221 = arith.constant 2 : i32
    %620 = vector.broadcast %c2_i32_221 : i32 to vector<1x256xi32>
    %621 = arith.addi %0, %620 : vector<1x256xi32>
    %c16_i32_222 = arith.constant 16 : i32
    %622 = vector.broadcast %c16_i32_222 : i32 to vector<1x256xi32>
    %623 = arith.cmpi slt, %621, %622 : vector<1x256xi32>
    %624 = arith.andi %619, %623 : vector<1x256xi1>
    %cst_223 = arith.constant 0.000000e+00 : f32
    %625 = vector.shape_cast %624 : vector<1x256xi1> to vector<1x256xi1>
    %626 = vector.broadcast %625 : vector<1x256xi1> to vector<2x256xi1>
    %627 = vector.broadcast %cst_223 : f32 to vector<2x256xf32>
    %628 = arith.select %626, %615, %627 : vector<2x256xi1>, vector<2x256xf32>
    %629 = vector.extract_strided_slice %132 {offsets = [0, 86], sizes = [2, 256], strides = [1, 1]} : vector<2x358xf32> to vector<2x256xf32>
    %c3_i32_224 = arith.constant 3 : i32
    %630 = vector.broadcast %c3_i32_224 : i32 to vector<1x256xi32>
    %631 = arith.addi %0, %630 : vector<1x256xi32>
    %c0_i32_225 = arith.constant 0 : i32
    %632 = vector.broadcast %c0_i32_225 : i32 to vector<1x256xi32>
    %633 = arith.cmpi sge, %631, %632 : vector<1x256xi32>
    %c3_i32_226 = arith.constant 3 : i32
    %634 = vector.broadcast %c3_i32_226 : i32 to vector<1x256xi32>
    %635 = arith.addi %0, %634 : vector<1x256xi32>
    %c16_i32_227 = arith.constant 16 : i32
    %636 = vector.broadcast %c16_i32_227 : i32 to vector<1x256xi32>
    %637 = arith.cmpi slt, %635, %636 : vector<1x256xi32>
    %638 = arith.andi %633, %637 : vector<1x256xi1>
    %cst_228 = arith.constant 0.000000e+00 : f32
    %639 = vector.shape_cast %638 : vector<1x256xi1> to vector<1x256xi1>
    %640 = vector.broadcast %639 : vector<1x256xi1> to vector<2x256xi1>
    %641 = vector.broadcast %cst_228 : f32 to vector<2x256xf32>
    %642 = arith.select %640, %629, %641 : vector<2x256xi1>, vector<2x256xf32>
    %643 = vector.extract_strided_slice %132 {offsets = [0, 96], sizes = [2, 256], strides = [1, 1]} : vector<2x358xf32> to vector<2x256xf32>
    %c-3_i32_229 = arith.constant -3 : i32
    %644 = vector.broadcast %c-3_i32_229 : i32 to vector<1x256xi32>
    %645 = arith.addi %0, %644 : vector<1x256xi32>
    %c0_i32_230 = arith.constant 0 : i32
    %646 = vector.broadcast %c0_i32_230 : i32 to vector<1x256xi32>
    %647 = arith.cmpi sge, %645, %646 : vector<1x256xi32>
    %c-3_i32_231 = arith.constant -3 : i32
    %648 = vector.broadcast %c-3_i32_231 : i32 to vector<1x256xi32>
    %649 = arith.addi %0, %648 : vector<1x256xi32>
    %c16_i32_232 = arith.constant 16 : i32
    %650 = vector.broadcast %c16_i32_232 : i32 to vector<1x256xi32>
    %651 = arith.cmpi slt, %649, %650 : vector<1x256xi32>
    %652 = arith.andi %647, %651 : vector<1x256xi1>
    %cst_233 = arith.constant 0.000000e+00 : f32
    %653 = vector.shape_cast %652 : vector<1x256xi1> to vector<1x256xi1>
    %654 = vector.broadcast %653 : vector<1x256xi1> to vector<2x256xi1>
    %655 = vector.broadcast %cst_233 : f32 to vector<2x256xf32>
    %656 = arith.select %654, %643, %655 : vector<2x256xi1>, vector<2x256xf32>
    %657 = vector.extract_strided_slice %132 {offsets = [0, 97], sizes = [2, 256], strides = [1, 1]} : vector<2x358xf32> to vector<2x256xf32>
    %c-2_i32_234 = arith.constant -2 : i32
    %658 = vector.broadcast %c-2_i32_234 : i32 to vector<1x256xi32>
    %659 = arith.addi %0, %658 : vector<1x256xi32>
    %c0_i32_235 = arith.constant 0 : i32
    %660 = vector.broadcast %c0_i32_235 : i32 to vector<1x256xi32>
    %661 = arith.cmpi sge, %659, %660 : vector<1x256xi32>
    %c-2_i32_236 = arith.constant -2 : i32
    %662 = vector.broadcast %c-2_i32_236 : i32 to vector<1x256xi32>
    %663 = arith.addi %0, %662 : vector<1x256xi32>
    %c16_i32_237 = arith.constant 16 : i32
    %664 = vector.broadcast %c16_i32_237 : i32 to vector<1x256xi32>
    %665 = arith.cmpi slt, %663, %664 : vector<1x256xi32>
    %666 = arith.andi %661, %665 : vector<1x256xi1>
    %cst_238 = arith.constant 0.000000e+00 : f32
    %667 = vector.shape_cast %666 : vector<1x256xi1> to vector<1x256xi1>
    %668 = vector.broadcast %667 : vector<1x256xi1> to vector<2x256xi1>
    %669 = vector.broadcast %cst_238 : f32 to vector<2x256xf32>
    %670 = arith.select %668, %657, %669 : vector<2x256xi1>, vector<2x256xf32>
    %671 = vector.extract_strided_slice %132 {offsets = [0, 98], sizes = [2, 256], strides = [1, 1]} : vector<2x358xf32> to vector<2x256xf32>
    %c-1_i32_239 = arith.constant -1 : i32
    %672 = vector.broadcast %c-1_i32_239 : i32 to vector<1x256xi32>
    %673 = arith.addi %0, %672 : vector<1x256xi32>
    %c0_i32_240 = arith.constant 0 : i32
    %674 = vector.broadcast %c0_i32_240 : i32 to vector<1x256xi32>
    %675 = arith.cmpi sge, %673, %674 : vector<1x256xi32>
    %c-1_i32_241 = arith.constant -1 : i32
    %676 = vector.broadcast %c-1_i32_241 : i32 to vector<1x256xi32>
    %677 = arith.addi %0, %676 : vector<1x256xi32>
    %c16_i32_242 = arith.constant 16 : i32
    %678 = vector.broadcast %c16_i32_242 : i32 to vector<1x256xi32>
    %679 = arith.cmpi slt, %677, %678 : vector<1x256xi32>
    %680 = arith.andi %675, %679 : vector<1x256xi1>
    %cst_243 = arith.constant 0.000000e+00 : f32
    %681 = vector.shape_cast %680 : vector<1x256xi1> to vector<1x256xi1>
    %682 = vector.broadcast %681 : vector<1x256xi1> to vector<2x256xi1>
    %683 = vector.broadcast %cst_243 : f32 to vector<2x256xf32>
    %684 = arith.select %682, %671, %683 : vector<2x256xi1>, vector<2x256xf32>
    %685 = vector.extract_strided_slice %132 {offsets = [0, 99], sizes = [2, 256], strides = [1, 1]} : vector<2x358xf32> to vector<2x256xf32>
    %686 = vector.extract_strided_slice %132 {offsets = [0, 100], sizes = [2, 256], strides = [1, 1]} : vector<2x358xf32> to vector<2x256xf32>
    %c1_i32_244 = arith.constant 1 : i32
    %687 = vector.broadcast %c1_i32_244 : i32 to vector<1x256xi32>
    %688 = arith.addi %0, %687 : vector<1x256xi32>
    %c0_i32_245 = arith.constant 0 : i32
    %689 = vector.broadcast %c0_i32_245 : i32 to vector<1x256xi32>
    %690 = arith.cmpi sge, %688, %689 : vector<1x256xi32>
    %c1_i32_246 = arith.constant 1 : i32
    %691 = vector.broadcast %c1_i32_246 : i32 to vector<1x256xi32>
    %692 = arith.addi %0, %691 : vector<1x256xi32>
    %c16_i32_247 = arith.constant 16 : i32
    %693 = vector.broadcast %c16_i32_247 : i32 to vector<1x256xi32>
    %694 = arith.cmpi slt, %692, %693 : vector<1x256xi32>
    %695 = arith.andi %690, %694 : vector<1x256xi1>
    %cst_248 = arith.constant 0.000000e+00 : f32
    %696 = vector.shape_cast %695 : vector<1x256xi1> to vector<1x256xi1>
    %697 = vector.broadcast %696 : vector<1x256xi1> to vector<2x256xi1>
    %698 = vector.broadcast %cst_248 : f32 to vector<2x256xf32>
    %699 = arith.select %697, %686, %698 : vector<2x256xi1>, vector<2x256xf32>
    %700 = vector.extract_strided_slice %132 {offsets = [0, 101], sizes = [2, 256], strides = [1, 1]} : vector<2x358xf32> to vector<2x256xf32>
    %c2_i32_249 = arith.constant 2 : i32
    %701 = vector.broadcast %c2_i32_249 : i32 to vector<1x256xi32>
    %702 = arith.addi %0, %701 : vector<1x256xi32>
    %c0_i32_250 = arith.constant 0 : i32
    %703 = vector.broadcast %c0_i32_250 : i32 to vector<1x256xi32>
    %704 = arith.cmpi sge, %702, %703 : vector<1x256xi32>
    %c2_i32_251 = arith.constant 2 : i32
    %705 = vector.broadcast %c2_i32_251 : i32 to vector<1x256xi32>
    %706 = arith.addi %0, %705 : vector<1x256xi32>
    %c16_i32_252 = arith.constant 16 : i32
    %707 = vector.broadcast %c16_i32_252 : i32 to vector<1x256xi32>
    %708 = arith.cmpi slt, %706, %707 : vector<1x256xi32>
    %709 = arith.andi %704, %708 : vector<1x256xi1>
    %cst_253 = arith.constant 0.000000e+00 : f32
    %710 = vector.shape_cast %709 : vector<1x256xi1> to vector<1x256xi1>
    %711 = vector.broadcast %710 : vector<1x256xi1> to vector<2x256xi1>
    %712 = vector.broadcast %cst_253 : f32 to vector<2x256xf32>
    %713 = arith.select %711, %700, %712 : vector<2x256xi1>, vector<2x256xf32>
    %714 = vector.extract_strided_slice %132 {offsets = [0, 102], sizes = [2, 256], strides = [1, 1]} : vector<2x358xf32> to vector<2x256xf32>
    %c3_i32_254 = arith.constant 3 : i32
    %715 = vector.broadcast %c3_i32_254 : i32 to vector<1x256xi32>
    %716 = arith.addi %0, %715 : vector<1x256xi32>
    %c0_i32_255 = arith.constant 0 : i32
    %717 = vector.broadcast %c0_i32_255 : i32 to vector<1x256xi32>
    %718 = arith.cmpi sge, %716, %717 : vector<1x256xi32>
    %c3_i32_256 = arith.constant 3 : i32
    %719 = vector.broadcast %c3_i32_256 : i32 to vector<1x256xi32>
    %720 = arith.addi %0, %719 : vector<1x256xi32>
    %c16_i32_257 = arith.constant 16 : i32
    %721 = vector.broadcast %c16_i32_257 : i32 to vector<1x256xi32>
    %722 = arith.cmpi slt, %720, %721 : vector<1x256xi32>
    %723 = arith.andi %718, %722 : vector<1x256xi1>
    %cst_258 = arith.constant 0.000000e+00 : f32
    %724 = vector.shape_cast %723 : vector<1x256xi1> to vector<1x256xi1>
    %725 = vector.broadcast %724 : vector<1x256xi1> to vector<2x256xi1>
    %726 = vector.broadcast %cst_258 : f32 to vector<2x256xf32>
    %727 = arith.select %725, %714, %726 : vector<2x256xi1>, vector<2x256xf32>
    %728 = tpu.concatenate %146, %160, %174, %175, %189, %203, %217, %231, %245, %259, %260, %274, %288, %302, %316, %330 in 0 : vector<2x256xf32>, vector<2x256xf32>, vector<2x256xf32>, vector<2x256xf32>, vector<2x256xf32>, vector<2x256xf32>, vector<2x256xf32>, vector<2x256xf32>, vector<2x256xf32>, vector<2x256xf32>, vector<2x256xf32>, vector<2x256xf32>, vector<2x256xf32>, vector<2x256xf32>, vector<2x256xf32>, vector<2x256xf32> -> vector<32x256xf32>
    %729 = tpu.concatenate %344, %345, %359, %373, %387, %401, %415, %429, %430, %444, %458, %472, %486, %500, %514, %515 in 0 : vector<2x256xf32>, vector<2x256xf32>, vector<2x256xf32>, vector<2x256xf32>, vector<2x256xf32>, vector<2x256xf32>, vector<2x256xf32>, vector<2x256xf32>, vector<2x256xf32>, vector<2x256xf32>, vector<2x256xf32>, vector<2x256xf32>, vector<2x256xf32>, vector<2x256xf32>, vector<2x256xf32>, vector<2x256xf32> -> vector<32x256xf32>
    %730 = tpu.concatenate %529, %543, %557, %571, %585, %599, %600, %614, %628, %642, %656, %670, %684, %685, %699, %713 in 0 : vector<2x256xf32>, vector<2x256xf32>, vector<2x256xf32>, vector<2x256xf32>, vector<2x256xf32>, vector<2x256xf32>, vector<2x256xf32>, vector<2x256xf32>, vector<2x256xf32>, vector<2x256xf32>, vector<2x256xf32>, vector<2x256xf32>, vector<2x256xf32>, vector<2x256xf32>, vector<2x256xf32>, vector<2x256xf32> -> vector<32x256xf32>
    %731 = tpu.concatenate %728, %729, %730, %727 in 0 : vector<32x256xf32>, vector<32x256xf32>, vector<32x256xf32>, vector<2x256xf32> -> vector<98x256xf32>
    %732 = vector.broadcast %123 : vector<98x1xf32> to vector<98x256xf32>
    %733 = arith.mulf %731, %732 : vector<98x256xf32>
    %cst_259 = arith.constant dense<0.000000e+00> : vector<256xf32>
    %734 = vector.multi_reduction <add>, %733, %cst_259 [0] : vector<98x256xf32> to vector<256xf32>
    %735 = vector.shape_cast %734 : vector<256xf32> to vector<1x256xf32>
    %736 = arith.negf %735 : vector<1x256xf32>
    %737 = math.exp %736 : vector<1x256xf32>
    %cst_260 = arith.constant 1.000000e+00 : f32
    %738 = vector.broadcast %cst_260 : f32 to vector<1x256xf32>
    %739 = arith.addf %738, %737 : vector<1x256xf32>
    %740 = arith.divf %738, %739 : vector<1x256xf32>
    %741 = vector.broadcast %740 : vector<1x256xf32> to vector<32x256xf32>
    %742 = arith.mulf %122, %741 : vector<32x256xf32>
    %c0_261 = arith.constant 0 : index
    %c0_262 = arith.constant 0 : index
    %743 = vector.load %arg8[%c0_261, %c0_262] : memref<32x288xf32, #tpu.memory_space<vmem>>, vector<32x288xf32>
    %c0_263 = arith.constant 0 : index
    %c0_264 = arith.constant 0 : index
    %744 = vector.load %arg9[%c0_263, %c0_264] : memref<32x1xf32, #tpu.memory_space<vmem>>, vector<32x1xf32>
    %cst_265 = arith.constant 0.000000e+00 : f32
    %745 = vector.broadcast %cst_265 : f32 to vector<32x17xf32>
    %746 = tpu.concatenate %745, %742, %745 in 1 : vector<32x17xf32>, vector<32x256xf32>, vector<32x17xf32> -> vector<32x290xf32>
    %747 = vector.extract_strided_slice %746 {offsets = [0, 0], sizes = [32, 256], strides = [1, 1]} : vector<32x290xf32> to vector<32x256xf32>
    %c-1_i32_266 = arith.constant -1 : i32
    %748 = vector.broadcast %c-1_i32_266 : i32 to vector<1x256xi32>
    %749 = arith.addi %0, %748 : vector<1x256xi32>
    %c0_i32_267 = arith.constant 0 : i32
    %750 = vector.broadcast %c0_i32_267 : i32 to vector<1x256xi32>
    %751 = arith.cmpi sge, %749, %750 : vector<1x256xi32>
    %c-1_i32_268 = arith.constant -1 : i32
    %752 = vector.broadcast %c-1_i32_268 : i32 to vector<1x256xi32>
    %753 = arith.addi %0, %752 : vector<1x256xi32>
    %c16_i32_269 = arith.constant 16 : i32
    %754 = vector.broadcast %c16_i32_269 : i32 to vector<1x256xi32>
    %755 = arith.cmpi slt, %753, %754 : vector<1x256xi32>
    %756 = arith.andi %751, %755 : vector<1x256xi1>
    %cst_270 = arith.constant 0.000000e+00 : f32
    %757 = vector.shape_cast %756 : vector<1x256xi1> to vector<1x256xi1>
    %758 = vector.broadcast %757 : vector<1x256xi1> to vector<32x256xi1>
    %759 = vector.broadcast %cst_270 : f32 to vector<32x256xf32>
    %760 = arith.select %758, %747, %759 : vector<32x256xi1>, vector<32x256xf32>
    %761 = vector.extract_strided_slice %746 {offsets = [0, 1], sizes = [32, 256], strides = [1, 1]} : vector<32x290xf32> to vector<32x256xf32>
    %762 = vector.extract_strided_slice %746 {offsets = [0, 2], sizes = [32, 256], strides = [1, 1]} : vector<32x290xf32> to vector<32x256xf32>
    %c1_i32_271 = arith.constant 1 : i32
    %763 = vector.broadcast %c1_i32_271 : i32 to vector<1x256xi32>
    %764 = arith.addi %0, %763 : vector<1x256xi32>
    %c0_i32_272 = arith.constant 0 : i32
    %765 = vector.broadcast %c0_i32_272 : i32 to vector<1x256xi32>
    %766 = arith.cmpi sge, %764, %765 : vector<1x256xi32>
    %c1_i32_273 = arith.constant 1 : i32
    %767 = vector.broadcast %c1_i32_273 : i32 to vector<1x256xi32>
    %768 = arith.addi %0, %767 : vector<1x256xi32>
    %c16_i32_274 = arith.constant 16 : i32
    %769 = vector.broadcast %c16_i32_274 : i32 to vector<1x256xi32>
    %770 = arith.cmpi slt, %768, %769 : vector<1x256xi32>
    %771 = arith.andi %766, %770 : vector<1x256xi1>
    %cst_275 = arith.constant 0.000000e+00 : f32
    %772 = vector.shape_cast %771 : vector<1x256xi1> to vector<1x256xi1>
    %773 = vector.broadcast %772 : vector<1x256xi1> to vector<32x256xi1>
    %774 = vector.broadcast %cst_275 : f32 to vector<32x256xf32>
    %775 = arith.select %773, %762, %774 : vector<32x256xi1>, vector<32x256xf32>
    %776 = vector.extract_strided_slice %746 {offsets = [0, 16], sizes = [32, 256], strides = [1, 1]} : vector<32x290xf32> to vector<32x256xf32>
    %c-1_i32_276 = arith.constant -1 : i32
    %777 = vector.broadcast %c-1_i32_276 : i32 to vector<1x256xi32>
    %778 = arith.addi %0, %777 : vector<1x256xi32>
    %c0_i32_277 = arith.constant 0 : i32
    %779 = vector.broadcast %c0_i32_277 : i32 to vector<1x256xi32>
    %780 = arith.cmpi sge, %778, %779 : vector<1x256xi32>
    %c-1_i32_278 = arith.constant -1 : i32
    %781 = vector.broadcast %c-1_i32_278 : i32 to vector<1x256xi32>
    %782 = arith.addi %0, %781 : vector<1x256xi32>
    %c16_i32_279 = arith.constant 16 : i32
    %783 = vector.broadcast %c16_i32_279 : i32 to vector<1x256xi32>
    %784 = arith.cmpi slt, %782, %783 : vector<1x256xi32>
    %785 = arith.andi %780, %784 : vector<1x256xi1>
    %cst_280 = arith.constant 0.000000e+00 : f32
    %786 = vector.shape_cast %785 : vector<1x256xi1> to vector<1x256xi1>
    %787 = vector.broadcast %786 : vector<1x256xi1> to vector<32x256xi1>
    %788 = vector.broadcast %cst_280 : f32 to vector<32x256xf32>
    %789 = arith.select %787, %776, %788 : vector<32x256xi1>, vector<32x256xf32>
    %790 = vector.extract_strided_slice %746 {offsets = [0, 17], sizes = [32, 256], strides = [1, 1]} : vector<32x290xf32> to vector<32x256xf32>
    %791 = vector.extract_strided_slice %746 {offsets = [0, 18], sizes = [32, 256], strides = [1, 1]} : vector<32x290xf32> to vector<32x256xf32>
    %c1_i32_281 = arith.constant 1 : i32
    %792 = vector.broadcast %c1_i32_281 : i32 to vector<1x256xi32>
    %793 = arith.addi %0, %792 : vector<1x256xi32>
    %c0_i32_282 = arith.constant 0 : i32
    %794 = vector.broadcast %c0_i32_282 : i32 to vector<1x256xi32>
    %795 = arith.cmpi sge, %793, %794 : vector<1x256xi32>
    %c1_i32_283 = arith.constant 1 : i32
    %796 = vector.broadcast %c1_i32_283 : i32 to vector<1x256xi32>
    %797 = arith.addi %0, %796 : vector<1x256xi32>
    %c16_i32_284 = arith.constant 16 : i32
    %798 = vector.broadcast %c16_i32_284 : i32 to vector<1x256xi32>
    %799 = arith.cmpi slt, %797, %798 : vector<1x256xi32>
    %800 = arith.andi %795, %799 : vector<1x256xi1>
    %cst_285 = arith.constant 0.000000e+00 : f32
    %801 = vector.shape_cast %800 : vector<1x256xi1> to vector<1x256xi1>
    %802 = vector.broadcast %801 : vector<1x256xi1> to vector<32x256xi1>
    %803 = vector.broadcast %cst_285 : f32 to vector<32x256xf32>
    %804 = arith.select %802, %791, %803 : vector<32x256xi1>, vector<32x256xf32>
    %805 = vector.extract_strided_slice %746 {offsets = [0, 32], sizes = [32, 256], strides = [1, 1]} : vector<32x290xf32> to vector<32x256xf32>
    %c-1_i32_286 = arith.constant -1 : i32
    %806 = vector.broadcast %c-1_i32_286 : i32 to vector<1x256xi32>
    %807 = arith.addi %0, %806 : vector<1x256xi32>
    %c0_i32_287 = arith.constant 0 : i32
    %808 = vector.broadcast %c0_i32_287 : i32 to vector<1x256xi32>
    %809 = arith.cmpi sge, %807, %808 : vector<1x256xi32>
    %c-1_i32_288 = arith.constant -1 : i32
    %810 = vector.broadcast %c-1_i32_288 : i32 to vector<1x256xi32>
    %811 = arith.addi %0, %810 : vector<1x256xi32>
    %c16_i32_289 = arith.constant 16 : i32
    %812 = vector.broadcast %c16_i32_289 : i32 to vector<1x256xi32>
    %813 = arith.cmpi slt, %811, %812 : vector<1x256xi32>
    %814 = arith.andi %809, %813 : vector<1x256xi1>
    %cst_290 = arith.constant 0.000000e+00 : f32
    %815 = vector.shape_cast %814 : vector<1x256xi1> to vector<1x256xi1>
    %816 = vector.broadcast %815 : vector<1x256xi1> to vector<32x256xi1>
    %817 = vector.broadcast %cst_290 : f32 to vector<32x256xf32>
    %818 = arith.select %816, %805, %817 : vector<32x256xi1>, vector<32x256xf32>
    %819 = vector.extract_strided_slice %746 {offsets = [0, 33], sizes = [32, 256], strides = [1, 1]} : vector<32x290xf32> to vector<32x256xf32>
    %820 = vector.extract_strided_slice %746 {offsets = [0, 34], sizes = [32, 256], strides = [1, 1]} : vector<32x290xf32> to vector<32x256xf32>
    %c1_i32_291 = arith.constant 1 : i32
    %821 = vector.broadcast %c1_i32_291 : i32 to vector<1x256xi32>
    %822 = arith.addi %0, %821 : vector<1x256xi32>
    %c0_i32_292 = arith.constant 0 : i32
    %823 = vector.broadcast %c0_i32_292 : i32 to vector<1x256xi32>
    %824 = arith.cmpi sge, %822, %823 : vector<1x256xi32>
    %c1_i32_293 = arith.constant 1 : i32
    %825 = vector.broadcast %c1_i32_293 : i32 to vector<1x256xi32>
    %826 = arith.addi %0, %825 : vector<1x256xi32>
    %c16_i32_294 = arith.constant 16 : i32
    %827 = vector.broadcast %c16_i32_294 : i32 to vector<1x256xi32>
    %828 = arith.cmpi slt, %826, %827 : vector<1x256xi32>
    %829 = arith.andi %824, %828 : vector<1x256xi1>
    %cst_295 = arith.constant 0.000000e+00 : f32
    %830 = vector.shape_cast %829 : vector<1x256xi1> to vector<1x256xi1>
    %831 = vector.broadcast %830 : vector<1x256xi1> to vector<32x256xi1>
    %832 = vector.broadcast %cst_295 : f32 to vector<32x256xf32>
    %833 = arith.select %831, %820, %832 : vector<32x256xi1>, vector<32x256xf32>
    %834 = tpu.concatenate %760, %761, %775, %789, %790, %804, %818, %819, %833 in 0 : vector<32x256xf32>, vector<32x256xf32>, vector<32x256xf32>, vector<32x256xf32>, vector<32x256xf32>, vector<32x256xf32>, vector<32x256xf32>, vector<32x256xf32>, vector<32x256xf32> -> vector<288x256xf32>
    %cst_296 = arith.constant dense<0.000000e+00> : vector<32x256xf32>
    %835 = tpu.matmul %743, %834, %cst_296 {dimension_numbers = #tpu.dot_dimension_numbers<[1], [0], [0], [1], [0, 0, 1, 1], [], []>} : vector<32x288xf32>, vector<288x256xf32>, vector<32x256xf32> -> vector<32x256xf32>
    %836 = vector.broadcast %744 : vector<32x1xf32> to vector<32x256xf32>
    %837 = arith.addf %835, %836 : vector<32x256xf32>
    %cst_297 = arith.constant 0.000000e+00 : f32
    %838 = vector.broadcast %cst_297 : f32 to vector<32x256xf32>
    %839 = arith.maximumf %837, %838 : vector<32x256xf32>
    %c0_298 = arith.constant 0 : index
    %c0_299 = arith.constant 0 : index
    %840 = vector.load %arg10[%c0_298, %c0_299] : memref<2x32xf32, #tpu.memory_space<vmem>>, vector<2x32xf32>
    %c0_300 = arith.constant 0 : index
    %c0_301 = arith.constant 0 : index
    %841 = vector.load %arg11[%c0_300, %c0_301] : memref<32x2xf32, #tpu.memory_space<vmem>>, vector<32x2xf32>
    %cst_302 = arith.constant dense<0.000000e+00> : vector<32xf32>
    %842 = vector.multi_reduction <add>, %839, %cst_302 [1] : vector<32x256xf32> to vector<32xf32>
    %843 = vector.shape_cast %842 : vector<32xf32> to vector<32x1xf32>
    %cst_303 = arith.constant 2.560000e+02 : f32
    %844 = vector.broadcast %cst_303 : f32 to vector<32x1xf32>
    %845 = arith.divf %843, %844 : vector<32x1xf32>
    %cst_304 = arith.constant dense<0xFF800000> : vector<32xf32>
    %846 = vector.multi_reduction <maximumf>, %839, %cst_304 [1] : vector<32x256xf32> to vector<32xf32>
    %847 = vector.shape_cast %846 : vector<32xf32> to vector<32x1xf32>
    %848 = tpu.concatenate %845, %847 in 1 : vector<32x1xf32>, vector<32x1xf32> -> vector<32x2xf32>
    %cst_305 = arith.constant dense<0.000000e+00> : vector<2x2xf32>
    %849 = tpu.matmul %840, %848, %cst_305 {dimension_numbers = #tpu.dot_dimension_numbers<[1], [0], [0], [1], [0, 0, 1, 1], [], []>} : vector<2x32xf32>, vector<32x2xf32>, vector<2x2xf32> -> vector<2x2xf32>
    %cst_306 = arith.constant 0.000000e+00 : f32
    %850 = vector.broadcast %cst_306 : f32 to vector<2x2xf32>
    %851 = arith.maximumf %849, %850 : vector<2x2xf32>
    %cst_307 = arith.constant dense<0.000000e+00> : vector<32x2xf32>
    %852 = tpu.matmul %841, %851, %cst_307 {dimension_numbers = #tpu.dot_dimension_numbers<[1], [0], [0], [1], [0, 0, 1, 1], [], []>} : vector<32x2xf32>, vector<2x2xf32>, vector<32x2xf32> -> vector<32x2xf32>
    %853 = vector.extract_strided_slice %852 {offsets = [0, 0], sizes = [32, 1], strides = [1, 1]} : vector<32x2xf32> to vector<32x1xf32>
    %854 = vector.extract_strided_slice %852 {offsets = [0, 1], sizes = [32, 1], strides = [1, 1]} : vector<32x2xf32> to vector<32x1xf32>
    %855 = arith.addf %853, %854 : vector<32x1xf32>
    %856 = arith.negf %855 : vector<32x1xf32>
    %857 = math.exp %856 : vector<32x1xf32>
    %cst_308 = arith.constant 1.000000e+00 : f32
    %858 = vector.broadcast %cst_308 : f32 to vector<32x1xf32>
    %859 = arith.addf %858, %857 : vector<32x1xf32>
    %860 = arith.divf %858, %859 : vector<32x1xf32>
    %861 = vector.broadcast %860 : vector<32x1xf32> to vector<32x256xf32>
    %862 = arith.mulf %839, %861 : vector<32x256xf32>
    %c0_309 = arith.constant 0 : index
    %c0_310 = arith.constant 0 : index
    %863 = vector.load %arg12[%c0_309, %c0_310] : memref<98x1xf32, #tpu.memory_space<vmem>>, vector<98x1xf32>
    %cst_311 = arith.constant dense<0.000000e+00> : vector<256xf32>
    %864 = vector.multi_reduction <add>, %862, %cst_311 [0] : vector<32x256xf32> to vector<256xf32>
    %865 = vector.shape_cast %864 : vector<256xf32> to vector<1x256xf32>
    %cst_312 = arith.constant 3.200000e+01 : f32
    %866 = vector.broadcast %cst_312 : f32 to vector<1x256xf32>
    %867 = arith.divf %865, %866 : vector<1x256xf32>
    %cst_313 = arith.constant dense<0xFF800000> : vector<256xf32>
    %868 = vector.multi_reduction <maximumf>, %862, %cst_313 [0] : vector<32x256xf32> to vector<256xf32>
    %869 = vector.shape_cast %868 : vector<256xf32> to vector<1x256xf32>
    %870 = tpu.concatenate %867, %869 in 0 : vector<1x256xf32>, vector<1x256xf32> -> vector<2x256xf32>
    %cst_314 = arith.constant 0.000000e+00 : f32
    %871 = vector.broadcast %cst_314 : f32 to vector<2x51xf32>
    %872 = tpu.concatenate %871, %870, %871 in 1 : vector<2x51xf32>, vector<2x256xf32>, vector<2x51xf32> -> vector<2x358xf32>
    %873 = vector.extract_strided_slice %872 {offsets = [0, 0], sizes = [2, 256], strides = [1, 1]} : vector<2x358xf32> to vector<2x256xf32>
    %c-3_i32_315 = arith.constant -3 : i32
    %874 = vector.broadcast %c-3_i32_315 : i32 to vector<1x256xi32>
    %875 = arith.addi %0, %874 : vector<1x256xi32>
    %c0_i32_316 = arith.constant 0 : i32
    %876 = vector.broadcast %c0_i32_316 : i32 to vector<1x256xi32>
    %877 = arith.cmpi sge, %875, %876 : vector<1x256xi32>
    %c-3_i32_317 = arith.constant -3 : i32
    %878 = vector.broadcast %c-3_i32_317 : i32 to vector<1x256xi32>
    %879 = arith.addi %0, %878 : vector<1x256xi32>
    %c16_i32_318 = arith.constant 16 : i32
    %880 = vector.broadcast %c16_i32_318 : i32 to vector<1x256xi32>
    %881 = arith.cmpi slt, %879, %880 : vector<1x256xi32>
    %882 = arith.andi %877, %881 : vector<1x256xi1>
    %cst_319 = arith.constant 0.000000e+00 : f32
    %883 = vector.shape_cast %882 : vector<1x256xi1> to vector<1x256xi1>
    %884 = vector.broadcast %883 : vector<1x256xi1> to vector<2x256xi1>
    %885 = vector.broadcast %cst_319 : f32 to vector<2x256xf32>
    %886 = arith.select %884, %873, %885 : vector<2x256xi1>, vector<2x256xf32>
    %887 = vector.extract_strided_slice %872 {offsets = [0, 1], sizes = [2, 256], strides = [1, 1]} : vector<2x358xf32> to vector<2x256xf32>
    %c-2_i32_320 = arith.constant -2 : i32
    %888 = vector.broadcast %c-2_i32_320 : i32 to vector<1x256xi32>
    %889 = arith.addi %0, %888 : vector<1x256xi32>
    %c0_i32_321 = arith.constant 0 : i32
    %890 = vector.broadcast %c0_i32_321 : i32 to vector<1x256xi32>
    %891 = arith.cmpi sge, %889, %890 : vector<1x256xi32>
    %c-2_i32_322 = arith.constant -2 : i32
    %892 = vector.broadcast %c-2_i32_322 : i32 to vector<1x256xi32>
    %893 = arith.addi %0, %892 : vector<1x256xi32>
    %c16_i32_323 = arith.constant 16 : i32
    %894 = vector.broadcast %c16_i32_323 : i32 to vector<1x256xi32>
    %895 = arith.cmpi slt, %893, %894 : vector<1x256xi32>
    %896 = arith.andi %891, %895 : vector<1x256xi1>
    %cst_324 = arith.constant 0.000000e+00 : f32
    %897 = vector.shape_cast %896 : vector<1x256xi1> to vector<1x256xi1>
    %898 = vector.broadcast %897 : vector<1x256xi1> to vector<2x256xi1>
    %899 = vector.broadcast %cst_324 : f32 to vector<2x256xf32>
    %900 = arith.select %898, %887, %899 : vector<2x256xi1>, vector<2x256xf32>
    %901 = vector.extract_strided_slice %872 {offsets = [0, 2], sizes = [2, 256], strides = [1, 1]} : vector<2x358xf32> to vector<2x256xf32>
    %c-1_i32_325 = arith.constant -1 : i32
    %902 = vector.broadcast %c-1_i32_325 : i32 to vector<1x256xi32>
    %903 = arith.addi %0, %902 : vector<1x256xi32>
    %c0_i32_326 = arith.constant 0 : i32
    %904 = vector.broadcast %c0_i32_326 : i32 to vector<1x256xi32>
    %905 = arith.cmpi sge, %903, %904 : vector<1x256xi32>
    %c-1_i32_327 = arith.constant -1 : i32
    %906 = vector.broadcast %c-1_i32_327 : i32 to vector<1x256xi32>
    %907 = arith.addi %0, %906 : vector<1x256xi32>
    %c16_i32_328 = arith.constant 16 : i32
    %908 = vector.broadcast %c16_i32_328 : i32 to vector<1x256xi32>
    %909 = arith.cmpi slt, %907, %908 : vector<1x256xi32>
    %910 = arith.andi %905, %909 : vector<1x256xi1>
    %cst_329 = arith.constant 0.000000e+00 : f32
    %911 = vector.shape_cast %910 : vector<1x256xi1> to vector<1x256xi1>
    %912 = vector.broadcast %911 : vector<1x256xi1> to vector<2x256xi1>
    %913 = vector.broadcast %cst_329 : f32 to vector<2x256xf32>
    %914 = arith.select %912, %901, %913 : vector<2x256xi1>, vector<2x256xf32>
    %915 = vector.extract_strided_slice %872 {offsets = [0, 3], sizes = [2, 256], strides = [1, 1]} : vector<2x358xf32> to vector<2x256xf32>
    %916 = vector.extract_strided_slice %872 {offsets = [0, 4], sizes = [2, 256], strides = [1, 1]} : vector<2x358xf32> to vector<2x256xf32>
    %c1_i32_330 = arith.constant 1 : i32
    %917 = vector.broadcast %c1_i32_330 : i32 to vector<1x256xi32>
    %918 = arith.addi %0, %917 : vector<1x256xi32>
    %c0_i32_331 = arith.constant 0 : i32
    %919 = vector.broadcast %c0_i32_331 : i32 to vector<1x256xi32>
    %920 = arith.cmpi sge, %918, %919 : vector<1x256xi32>
    %c1_i32_332 = arith.constant 1 : i32
    %921 = vector.broadcast %c1_i32_332 : i32 to vector<1x256xi32>
    %922 = arith.addi %0, %921 : vector<1x256xi32>
    %c16_i32_333 = arith.constant 16 : i32
    %923 = vector.broadcast %c16_i32_333 : i32 to vector<1x256xi32>
    %924 = arith.cmpi slt, %922, %923 : vector<1x256xi32>
    %925 = arith.andi %920, %924 : vector<1x256xi1>
    %cst_334 = arith.constant 0.000000e+00 : f32
    %926 = vector.shape_cast %925 : vector<1x256xi1> to vector<1x256xi1>
    %927 = vector.broadcast %926 : vector<1x256xi1> to vector<2x256xi1>
    %928 = vector.broadcast %cst_334 : f32 to vector<2x256xf32>
    %929 = arith.select %927, %916, %928 : vector<2x256xi1>, vector<2x256xf32>
    %930 = vector.extract_strided_slice %872 {offsets = [0, 5], sizes = [2, 256], strides = [1, 1]} : vector<2x358xf32> to vector<2x256xf32>
    %c2_i32_335 = arith.constant 2 : i32
    %931 = vector.broadcast %c2_i32_335 : i32 to vector<1x256xi32>
    %932 = arith.addi %0, %931 : vector<1x256xi32>
    %c0_i32_336 = arith.constant 0 : i32
    %933 = vector.broadcast %c0_i32_336 : i32 to vector<1x256xi32>
    %934 = arith.cmpi sge, %932, %933 : vector<1x256xi32>
    %c2_i32_337 = arith.constant 2 : i32
    %935 = vector.broadcast %c2_i32_337 : i32 to vector<1x256xi32>
    %936 = arith.addi %0, %935 : vector<1x256xi32>
    %c16_i32_338 = arith.constant 16 : i32
    %937 = vector.broadcast %c16_i32_338 : i32 to vector<1x256xi32>
    %938 = arith.cmpi slt, %936, %937 : vector<1x256xi32>
    %939 = arith.andi %934, %938 : vector<1x256xi1>
    %cst_339 = arith.constant 0.000000e+00 : f32
    %940 = vector.shape_cast %939 : vector<1x256xi1> to vector<1x256xi1>
    %941 = vector.broadcast %940 : vector<1x256xi1> to vector<2x256xi1>
    %942 = vector.broadcast %cst_339 : f32 to vector<2x256xf32>
    %943 = arith.select %941, %930, %942 : vector<2x256xi1>, vector<2x256xf32>
    %944 = vector.extract_strided_slice %872 {offsets = [0, 6], sizes = [2, 256], strides = [1, 1]} : vector<2x358xf32> to vector<2x256xf32>
    %c3_i32_340 = arith.constant 3 : i32
    %945 = vector.broadcast %c3_i32_340 : i32 to vector<1x256xi32>
    %946 = arith.addi %0, %945 : vector<1x256xi32>
    %c0_i32_341 = arith.constant 0 : i32
    %947 = vector.broadcast %c0_i32_341 : i32 to vector<1x256xi32>
    %948 = arith.cmpi sge, %946, %947 : vector<1x256xi32>
    %c3_i32_342 = arith.constant 3 : i32
    %949 = vector.broadcast %c3_i32_342 : i32 to vector<1x256xi32>
    %950 = arith.addi %0, %949 : vector<1x256xi32>
    %c16_i32_343 = arith.constant 16 : i32
    %951 = vector.broadcast %c16_i32_343 : i32 to vector<1x256xi32>
    %952 = arith.cmpi slt, %950, %951 : vector<1x256xi32>
    %953 = arith.andi %948, %952 : vector<1x256xi1>
    %cst_344 = arith.constant 0.000000e+00 : f32
    %954 = vector.shape_cast %953 : vector<1x256xi1> to vector<1x256xi1>
    %955 = vector.broadcast %954 : vector<1x256xi1> to vector<2x256xi1>
    %956 = vector.broadcast %cst_344 : f32 to vector<2x256xf32>
    %957 = arith.select %955, %944, %956 : vector<2x256xi1>, vector<2x256xf32>
    %958 = vector.extract_strided_slice %872 {offsets = [0, 16], sizes = [2, 256], strides = [1, 1]} : vector<2x358xf32> to vector<2x256xf32>
    %c-3_i32_345 = arith.constant -3 : i32
    %959 = vector.broadcast %c-3_i32_345 : i32 to vector<1x256xi32>
    %960 = arith.addi %0, %959 : vector<1x256xi32>
    %c0_i32_346 = arith.constant 0 : i32
    %961 = vector.broadcast %c0_i32_346 : i32 to vector<1x256xi32>
    %962 = arith.cmpi sge, %960, %961 : vector<1x256xi32>
    %c-3_i32_347 = arith.constant -3 : i32
    %963 = vector.broadcast %c-3_i32_347 : i32 to vector<1x256xi32>
    %964 = arith.addi %0, %963 : vector<1x256xi32>
    %c16_i32_348 = arith.constant 16 : i32
    %965 = vector.broadcast %c16_i32_348 : i32 to vector<1x256xi32>
    %966 = arith.cmpi slt, %964, %965 : vector<1x256xi32>
    %967 = arith.andi %962, %966 : vector<1x256xi1>
    %cst_349 = arith.constant 0.000000e+00 : f32
    %968 = vector.shape_cast %967 : vector<1x256xi1> to vector<1x256xi1>
    %969 = vector.broadcast %968 : vector<1x256xi1> to vector<2x256xi1>
    %970 = vector.broadcast %cst_349 : f32 to vector<2x256xf32>
    %971 = arith.select %969, %958, %970 : vector<2x256xi1>, vector<2x256xf32>
    %972 = vector.extract_strided_slice %872 {offsets = [0, 17], sizes = [2, 256], strides = [1, 1]} : vector<2x358xf32> to vector<2x256xf32>
    %c-2_i32_350 = arith.constant -2 : i32
    %973 = vector.broadcast %c-2_i32_350 : i32 to vector<1x256xi32>
    %974 = arith.addi %0, %973 : vector<1x256xi32>
    %c0_i32_351 = arith.constant 0 : i32
    %975 = vector.broadcast %c0_i32_351 : i32 to vector<1x256xi32>
    %976 = arith.cmpi sge, %974, %975 : vector<1x256xi32>
    %c-2_i32_352 = arith.constant -2 : i32
    %977 = vector.broadcast %c-2_i32_352 : i32 to vector<1x256xi32>
    %978 = arith.addi %0, %977 : vector<1x256xi32>
    %c16_i32_353 = arith.constant 16 : i32
    %979 = vector.broadcast %c16_i32_353 : i32 to vector<1x256xi32>
    %980 = arith.cmpi slt, %978, %979 : vector<1x256xi32>
    %981 = arith.andi %976, %980 : vector<1x256xi1>
    %cst_354 = arith.constant 0.000000e+00 : f32
    %982 = vector.shape_cast %981 : vector<1x256xi1> to vector<1x256xi1>
    %983 = vector.broadcast %982 : vector<1x256xi1> to vector<2x256xi1>
    %984 = vector.broadcast %cst_354 : f32 to vector<2x256xf32>
    %985 = arith.select %983, %972, %984 : vector<2x256xi1>, vector<2x256xf32>
    %986 = vector.extract_strided_slice %872 {offsets = [0, 18], sizes = [2, 256], strides = [1, 1]} : vector<2x358xf32> to vector<2x256xf32>
    %c-1_i32_355 = arith.constant -1 : i32
    %987 = vector.broadcast %c-1_i32_355 : i32 to vector<1x256xi32>
    %988 = arith.addi %0, %987 : vector<1x256xi32>
    %c0_i32_356 = arith.constant 0 : i32
    %989 = vector.broadcast %c0_i32_356 : i32 to vector<1x256xi32>
    %990 = arith.cmpi sge, %988, %989 : vector<1x256xi32>
    %c-1_i32_357 = arith.constant -1 : i32
    %991 = vector.broadcast %c-1_i32_357 : i32 to vector<1x256xi32>
    %992 = arith.addi %0, %991 : vector<1x256xi32>
    %c16_i32_358 = arith.constant 16 : i32
    %993 = vector.broadcast %c16_i32_358 : i32 to vector<1x256xi32>
    %994 = arith.cmpi slt, %992, %993 : vector<1x256xi32>
    %995 = arith.andi %990, %994 : vector<1x256xi1>
    %cst_359 = arith.constant 0.000000e+00 : f32
    %996 = vector.shape_cast %995 : vector<1x256xi1> to vector<1x256xi1>
    %997 = vector.broadcast %996 : vector<1x256xi1> to vector<2x256xi1>
    %998 = vector.broadcast %cst_359 : f32 to vector<2x256xf32>
    %999 = arith.select %997, %986, %998 : vector<2x256xi1>, vector<2x256xf32>
    %1000 = vector.extract_strided_slice %872 {offsets = [0, 19], sizes = [2, 256], strides = [1, 1]} : vector<2x358xf32> to vector<2x256xf32>
    %1001 = vector.extract_strided_slice %872 {offsets = [0, 20], sizes = [2, 256], strides = [1, 1]} : vector<2x358xf32> to vector<2x256xf32>
    %c1_i32_360 = arith.constant 1 : i32
    %1002 = vector.broadcast %c1_i32_360 : i32 to vector<1x256xi32>
    %1003 = arith.addi %0, %1002 : vector<1x256xi32>
    %c0_i32_361 = arith.constant 0 : i32
    %1004 = vector.broadcast %c0_i32_361 : i32 to vector<1x256xi32>
    %1005 = arith.cmpi sge, %1003, %1004 : vector<1x256xi32>
    %c1_i32_362 = arith.constant 1 : i32
    %1006 = vector.broadcast %c1_i32_362 : i32 to vector<1x256xi32>
    %1007 = arith.addi %0, %1006 : vector<1x256xi32>
    %c16_i32_363 = arith.constant 16 : i32
    %1008 = vector.broadcast %c16_i32_363 : i32 to vector<1x256xi32>
    %1009 = arith.cmpi slt, %1007, %1008 : vector<1x256xi32>
    %1010 = arith.andi %1005, %1009 : vector<1x256xi1>
    %cst_364 = arith.constant 0.000000e+00 : f32
    %1011 = vector.shape_cast %1010 : vector<1x256xi1> to vector<1x256xi1>
    %1012 = vector.broadcast %1011 : vector<1x256xi1> to vector<2x256xi1>
    %1013 = vector.broadcast %cst_364 : f32 to vector<2x256xf32>
    %1014 = arith.select %1012, %1001, %1013 : vector<2x256xi1>, vector<2x256xf32>
    %1015 = vector.extract_strided_slice %872 {offsets = [0, 21], sizes = [2, 256], strides = [1, 1]} : vector<2x358xf32> to vector<2x256xf32>
    %c2_i32_365 = arith.constant 2 : i32
    %1016 = vector.broadcast %c2_i32_365 : i32 to vector<1x256xi32>
    %1017 = arith.addi %0, %1016 : vector<1x256xi32>
    %c0_i32_366 = arith.constant 0 : i32
    %1018 = vector.broadcast %c0_i32_366 : i32 to vector<1x256xi32>
    %1019 = arith.cmpi sge, %1017, %1018 : vector<1x256xi32>
    %c2_i32_367 = arith.constant 2 : i32
    %1020 = vector.broadcast %c2_i32_367 : i32 to vector<1x256xi32>
    %1021 = arith.addi %0, %1020 : vector<1x256xi32>
    %c16_i32_368 = arith.constant 16 : i32
    %1022 = vector.broadcast %c16_i32_368 : i32 to vector<1x256xi32>
    %1023 = arith.cmpi slt, %1021, %1022 : vector<1x256xi32>
    %1024 = arith.andi %1019, %1023 : vector<1x256xi1>
    %cst_369 = arith.constant 0.000000e+00 : f32
    %1025 = vector.shape_cast %1024 : vector<1x256xi1> to vector<1x256xi1>
    %1026 = vector.broadcast %1025 : vector<1x256xi1> to vector<2x256xi1>
    %1027 = vector.broadcast %cst_369 : f32 to vector<2x256xf32>
    %1028 = arith.select %1026, %1015, %1027 : vector<2x256xi1>, vector<2x256xf32>
    %1029 = vector.extract_strided_slice %872 {offsets = [0, 22], sizes = [2, 256], strides = [1, 1]} : vector<2x358xf32> to vector<2x256xf32>
    %c3_i32_370 = arith.constant 3 : i32
    %1030 = vector.broadcast %c3_i32_370 : i32 to vector<1x256xi32>
    %1031 = arith.addi %0, %1030 : vector<1x256xi32>
    %c0_i32_371 = arith.constant 0 : i32
    %1032 = vector.broadcast %c0_i32_371 : i32 to vector<1x256xi32>
    %1033 = arith.cmpi sge, %1031, %1032 : vector<1x256xi32>
    %c3_i32_372 = arith.constant 3 : i32
    %1034 = vector.broadcast %c3_i32_372 : i32 to vector<1x256xi32>
    %1035 = arith.addi %0, %1034 : vector<1x256xi32>
    %c16_i32_373 = arith.constant 16 : i32
    %1036 = vector.broadcast %c16_i32_373 : i32 to vector<1x256xi32>
    %1037 = arith.cmpi slt, %1035, %1036 : vector<1x256xi32>
    %1038 = arith.andi %1033, %1037 : vector<1x256xi1>
    %cst_374 = arith.constant 0.000000e+00 : f32
    %1039 = vector.shape_cast %1038 : vector<1x256xi1> to vector<1x256xi1>
    %1040 = vector.broadcast %1039 : vector<1x256xi1> to vector<2x256xi1>
    %1041 = vector.broadcast %cst_374 : f32 to vector<2x256xf32>
    %1042 = arith.select %1040, %1029, %1041 : vector<2x256xi1>, vector<2x256xf32>
    %1043 = vector.extract_strided_slice %872 {offsets = [0, 32], sizes = [2, 256], strides = [1, 1]} : vector<2x358xf32> to vector<2x256xf32>
    %c-3_i32_375 = arith.constant -3 : i32
    %1044 = vector.broadcast %c-3_i32_375 : i32 to vector<1x256xi32>
    %1045 = arith.addi %0, %1044 : vector<1x256xi32>
    %c0_i32_376 = arith.constant 0 : i32
    %1046 = vector.broadcast %c0_i32_376 : i32 to vector<1x256xi32>
    %1047 = arith.cmpi sge, %1045, %1046 : vector<1x256xi32>
    %c-3_i32_377 = arith.constant -3 : i32
    %1048 = vector.broadcast %c-3_i32_377 : i32 to vector<1x256xi32>
    %1049 = arith.addi %0, %1048 : vector<1x256xi32>
    %c16_i32_378 = arith.constant 16 : i32
    %1050 = vector.broadcast %c16_i32_378 : i32 to vector<1x256xi32>
    %1051 = arith.cmpi slt, %1049, %1050 : vector<1x256xi32>
    %1052 = arith.andi %1047, %1051 : vector<1x256xi1>
    %cst_379 = arith.constant 0.000000e+00 : f32
    %1053 = vector.shape_cast %1052 : vector<1x256xi1> to vector<1x256xi1>
    %1054 = vector.broadcast %1053 : vector<1x256xi1> to vector<2x256xi1>
    %1055 = vector.broadcast %cst_379 : f32 to vector<2x256xf32>
    %1056 = arith.select %1054, %1043, %1055 : vector<2x256xi1>, vector<2x256xf32>
    %1057 = vector.extract_strided_slice %872 {offsets = [0, 33], sizes = [2, 256], strides = [1, 1]} : vector<2x358xf32> to vector<2x256xf32>
    %c-2_i32_380 = arith.constant -2 : i32
    %1058 = vector.broadcast %c-2_i32_380 : i32 to vector<1x256xi32>
    %1059 = arith.addi %0, %1058 : vector<1x256xi32>
    %c0_i32_381 = arith.constant 0 : i32
    %1060 = vector.broadcast %c0_i32_381 : i32 to vector<1x256xi32>
    %1061 = arith.cmpi sge, %1059, %1060 : vector<1x256xi32>
    %c-2_i32_382 = arith.constant -2 : i32
    %1062 = vector.broadcast %c-2_i32_382 : i32 to vector<1x256xi32>
    %1063 = arith.addi %0, %1062 : vector<1x256xi32>
    %c16_i32_383 = arith.constant 16 : i32
    %1064 = vector.broadcast %c16_i32_383 : i32 to vector<1x256xi32>
    %1065 = arith.cmpi slt, %1063, %1064 : vector<1x256xi32>
    %1066 = arith.andi %1061, %1065 : vector<1x256xi1>
    %cst_384 = arith.constant 0.000000e+00 : f32
    %1067 = vector.shape_cast %1066 : vector<1x256xi1> to vector<1x256xi1>
    %1068 = vector.broadcast %1067 : vector<1x256xi1> to vector<2x256xi1>
    %1069 = vector.broadcast %cst_384 : f32 to vector<2x256xf32>
    %1070 = arith.select %1068, %1057, %1069 : vector<2x256xi1>, vector<2x256xf32>
    %1071 = vector.extract_strided_slice %872 {offsets = [0, 34], sizes = [2, 256], strides = [1, 1]} : vector<2x358xf32> to vector<2x256xf32>
    %c-1_i32_385 = arith.constant -1 : i32
    %1072 = vector.broadcast %c-1_i32_385 : i32 to vector<1x256xi32>
    %1073 = arith.addi %0, %1072 : vector<1x256xi32>
    %c0_i32_386 = arith.constant 0 : i32
    %1074 = vector.broadcast %c0_i32_386 : i32 to vector<1x256xi32>
    %1075 = arith.cmpi sge, %1073, %1074 : vector<1x256xi32>
    %c-1_i32_387 = arith.constant -1 : i32
    %1076 = vector.broadcast %c-1_i32_387 : i32 to vector<1x256xi32>
    %1077 = arith.addi %0, %1076 : vector<1x256xi32>
    %c16_i32_388 = arith.constant 16 : i32
    %1078 = vector.broadcast %c16_i32_388 : i32 to vector<1x256xi32>
    %1079 = arith.cmpi slt, %1077, %1078 : vector<1x256xi32>
    %1080 = arith.andi %1075, %1079 : vector<1x256xi1>
    %cst_389 = arith.constant 0.000000e+00 : f32
    %1081 = vector.shape_cast %1080 : vector<1x256xi1> to vector<1x256xi1>
    %1082 = vector.broadcast %1081 : vector<1x256xi1> to vector<2x256xi1>
    %1083 = vector.broadcast %cst_389 : f32 to vector<2x256xf32>
    %1084 = arith.select %1082, %1071, %1083 : vector<2x256xi1>, vector<2x256xf32>
    %1085 = vector.extract_strided_slice %872 {offsets = [0, 35], sizes = [2, 256], strides = [1, 1]} : vector<2x358xf32> to vector<2x256xf32>
    %1086 = vector.extract_strided_slice %872 {offsets = [0, 36], sizes = [2, 256], strides = [1, 1]} : vector<2x358xf32> to vector<2x256xf32>
    %c1_i32_390 = arith.constant 1 : i32
    %1087 = vector.broadcast %c1_i32_390 : i32 to vector<1x256xi32>
    %1088 = arith.addi %0, %1087 : vector<1x256xi32>
    %c0_i32_391 = arith.constant 0 : i32
    %1089 = vector.broadcast %c0_i32_391 : i32 to vector<1x256xi32>
    %1090 = arith.cmpi sge, %1088, %1089 : vector<1x256xi32>
    %c1_i32_392 = arith.constant 1 : i32
    %1091 = vector.broadcast %c1_i32_392 : i32 to vector<1x256xi32>
    %1092 = arith.addi %0, %1091 : vector<1x256xi32>
    %c16_i32_393 = arith.constant 16 : i32
    %1093 = vector.broadcast %c16_i32_393 : i32 to vector<1x256xi32>
    %1094 = arith.cmpi slt, %1092, %1093 : vector<1x256xi32>
    %1095 = arith.andi %1090, %1094 : vector<1x256xi1>
    %cst_394 = arith.constant 0.000000e+00 : f32
    %1096 = vector.shape_cast %1095 : vector<1x256xi1> to vector<1x256xi1>
    %1097 = vector.broadcast %1096 : vector<1x256xi1> to vector<2x256xi1>
    %1098 = vector.broadcast %cst_394 : f32 to vector<2x256xf32>
    %1099 = arith.select %1097, %1086, %1098 : vector<2x256xi1>, vector<2x256xf32>
    %1100 = vector.extract_strided_slice %872 {offsets = [0, 37], sizes = [2, 256], strides = [1, 1]} : vector<2x358xf32> to vector<2x256xf32>
    %c2_i32_395 = arith.constant 2 : i32
    %1101 = vector.broadcast %c2_i32_395 : i32 to vector<1x256xi32>
    %1102 = arith.addi %0, %1101 : vector<1x256xi32>
    %c0_i32_396 = arith.constant 0 : i32
    %1103 = vector.broadcast %c0_i32_396 : i32 to vector<1x256xi32>
    %1104 = arith.cmpi sge, %1102, %1103 : vector<1x256xi32>
    %c2_i32_397 = arith.constant 2 : i32
    %1105 = vector.broadcast %c2_i32_397 : i32 to vector<1x256xi32>
    %1106 = arith.addi %0, %1105 : vector<1x256xi32>
    %c16_i32_398 = arith.constant 16 : i32
    %1107 = vector.broadcast %c16_i32_398 : i32 to vector<1x256xi32>
    %1108 = arith.cmpi slt, %1106, %1107 : vector<1x256xi32>
    %1109 = arith.andi %1104, %1108 : vector<1x256xi1>
    %cst_399 = arith.constant 0.000000e+00 : f32
    %1110 = vector.shape_cast %1109 : vector<1x256xi1> to vector<1x256xi1>
    %1111 = vector.broadcast %1110 : vector<1x256xi1> to vector<2x256xi1>
    %1112 = vector.broadcast %cst_399 : f32 to vector<2x256xf32>
    %1113 = arith.select %1111, %1100, %1112 : vector<2x256xi1>, vector<2x256xf32>
    %1114 = vector.extract_strided_slice %872 {offsets = [0, 38], sizes = [2, 256], strides = [1, 1]} : vector<2x358xf32> to vector<2x256xf32>
    %c3_i32_400 = arith.constant 3 : i32
    %1115 = vector.broadcast %c3_i32_400 : i32 to vector<1x256xi32>
    %1116 = arith.addi %0, %1115 : vector<1x256xi32>
    %c0_i32_401 = arith.constant 0 : i32
    %1117 = vector.broadcast %c0_i32_401 : i32 to vector<1x256xi32>
    %1118 = arith.cmpi sge, %1116, %1117 : vector<1x256xi32>
    %c3_i32_402 = arith.constant 3 : i32
    %1119 = vector.broadcast %c3_i32_402 : i32 to vector<1x256xi32>
    %1120 = arith.addi %0, %1119 : vector<1x256xi32>
    %c16_i32_403 = arith.constant 16 : i32
    %1121 = vector.broadcast %c16_i32_403 : i32 to vector<1x256xi32>
    %1122 = arith.cmpi slt, %1120, %1121 : vector<1x256xi32>
    %1123 = arith.andi %1118, %1122 : vector<1x256xi1>
    %cst_404 = arith.constant 0.000000e+00 : f32
    %1124 = vector.shape_cast %1123 : vector<1x256xi1> to vector<1x256xi1>
    %1125 = vector.broadcast %1124 : vector<1x256xi1> to vector<2x256xi1>
    %1126 = vector.broadcast %cst_404 : f32 to vector<2x256xf32>
    %1127 = arith.select %1125, %1114, %1126 : vector<2x256xi1>, vector<2x256xf32>
    %1128 = vector.extract_strided_slice %872 {offsets = [0, 48], sizes = [2, 256], strides = [1, 1]} : vector<2x358xf32> to vector<2x256xf32>
    %c-3_i32_405 = arith.constant -3 : i32
    %1129 = vector.broadcast %c-3_i32_405 : i32 to vector<1x256xi32>
    %1130 = arith.addi %0, %1129 : vector<1x256xi32>
    %c0_i32_406 = arith.constant 0 : i32
    %1131 = vector.broadcast %c0_i32_406 : i32 to vector<1x256xi32>
    %1132 = arith.cmpi sge, %1130, %1131 : vector<1x256xi32>
    %c-3_i32_407 = arith.constant -3 : i32
    %1133 = vector.broadcast %c-3_i32_407 : i32 to vector<1x256xi32>
    %1134 = arith.addi %0, %1133 : vector<1x256xi32>
    %c16_i32_408 = arith.constant 16 : i32
    %1135 = vector.broadcast %c16_i32_408 : i32 to vector<1x256xi32>
    %1136 = arith.cmpi slt, %1134, %1135 : vector<1x256xi32>
    %1137 = arith.andi %1132, %1136 : vector<1x256xi1>
    %cst_409 = arith.constant 0.000000e+00 : f32
    %1138 = vector.shape_cast %1137 : vector<1x256xi1> to vector<1x256xi1>
    %1139 = vector.broadcast %1138 : vector<1x256xi1> to vector<2x256xi1>
    %1140 = vector.broadcast %cst_409 : f32 to vector<2x256xf32>
    %1141 = arith.select %1139, %1128, %1140 : vector<2x256xi1>, vector<2x256xf32>
    %1142 = vector.extract_strided_slice %872 {offsets = [0, 49], sizes = [2, 256], strides = [1, 1]} : vector<2x358xf32> to vector<2x256xf32>
    %c-2_i32_410 = arith.constant -2 : i32
    %1143 = vector.broadcast %c-2_i32_410 : i32 to vector<1x256xi32>
    %1144 = arith.addi %0, %1143 : vector<1x256xi32>
    %c0_i32_411 = arith.constant 0 : i32
    %1145 = vector.broadcast %c0_i32_411 : i32 to vector<1x256xi32>
    %1146 = arith.cmpi sge, %1144, %1145 : vector<1x256xi32>
    %c-2_i32_412 = arith.constant -2 : i32
    %1147 = vector.broadcast %c-2_i32_412 : i32 to vector<1x256xi32>
    %1148 = arith.addi %0, %1147 : vector<1x256xi32>
    %c16_i32_413 = arith.constant 16 : i32
    %1149 = vector.broadcast %c16_i32_413 : i32 to vector<1x256xi32>
    %1150 = arith.cmpi slt, %1148, %1149 : vector<1x256xi32>
    %1151 = arith.andi %1146, %1150 : vector<1x256xi1>
    %cst_414 = arith.constant 0.000000e+00 : f32
    %1152 = vector.shape_cast %1151 : vector<1x256xi1> to vector<1x256xi1>
    %1153 = vector.broadcast %1152 : vector<1x256xi1> to vector<2x256xi1>
    %1154 = vector.broadcast %cst_414 : f32 to vector<2x256xf32>
    %1155 = arith.select %1153, %1142, %1154 : vector<2x256xi1>, vector<2x256xf32>
    %1156 = vector.extract_strided_slice %872 {offsets = [0, 50], sizes = [2, 256], strides = [1, 1]} : vector<2x358xf32> to vector<2x256xf32>
    %c-1_i32_415 = arith.constant -1 : i32
    %1157 = vector.broadcast %c-1_i32_415 : i32 to vector<1x256xi32>
    %1158 = arith.addi %0, %1157 : vector<1x256xi32>
    %c0_i32_416 = arith.constant 0 : i32
    %1159 = vector.broadcast %c0_i32_416 : i32 to vector<1x256xi32>
    %1160 = arith.cmpi sge, %1158, %1159 : vector<1x256xi32>
    %c-1_i32_417 = arith.constant -1 : i32
    %1161 = vector.broadcast %c-1_i32_417 : i32 to vector<1x256xi32>
    %1162 = arith.addi %0, %1161 : vector<1x256xi32>
    %c16_i32_418 = arith.constant 16 : i32
    %1163 = vector.broadcast %c16_i32_418 : i32 to vector<1x256xi32>
    %1164 = arith.cmpi slt, %1162, %1163 : vector<1x256xi32>
    %1165 = arith.andi %1160, %1164 : vector<1x256xi1>
    %cst_419 = arith.constant 0.000000e+00 : f32
    %1166 = vector.shape_cast %1165 : vector<1x256xi1> to vector<1x256xi1>
    %1167 = vector.broadcast %1166 : vector<1x256xi1> to vector<2x256xi1>
    %1168 = vector.broadcast %cst_419 : f32 to vector<2x256xf32>
    %1169 = arith.select %1167, %1156, %1168 : vector<2x256xi1>, vector<2x256xf32>
    %1170 = vector.extract_strided_slice %872 {offsets = [0, 51], sizes = [2, 256], strides = [1, 1]} : vector<2x358xf32> to vector<2x256xf32>
    %1171 = vector.extract_strided_slice %872 {offsets = [0, 52], sizes = [2, 256], strides = [1, 1]} : vector<2x358xf32> to vector<2x256xf32>
    %c1_i32_420 = arith.constant 1 : i32
    %1172 = vector.broadcast %c1_i32_420 : i32 to vector<1x256xi32>
    %1173 = arith.addi %0, %1172 : vector<1x256xi32>
    %c0_i32_421 = arith.constant 0 : i32
    %1174 = vector.broadcast %c0_i32_421 : i32 to vector<1x256xi32>
    %1175 = arith.cmpi sge, %1173, %1174 : vector<1x256xi32>
    %c1_i32_422 = arith.constant 1 : i32
    %1176 = vector.broadcast %c1_i32_422 : i32 to vector<1x256xi32>
    %1177 = arith.addi %0, %1176 : vector<1x256xi32>
    %c16_i32_423 = arith.constant 16 : i32
    %1178 = vector.broadcast %c16_i32_423 : i32 to vector<1x256xi32>
    %1179 = arith.cmpi slt, %1177, %1178 : vector<1x256xi32>
    %1180 = arith.andi %1175, %1179 : vector<1x256xi1>
    %cst_424 = arith.constant 0.000000e+00 : f32
    %1181 = vector.shape_cast %1180 : vector<1x256xi1> to vector<1x256xi1>
    %1182 = vector.broadcast %1181 : vector<1x256xi1> to vector<2x256xi1>
    %1183 = vector.broadcast %cst_424 : f32 to vector<2x256xf32>
    %1184 = arith.select %1182, %1171, %1183 : vector<2x256xi1>, vector<2x256xf32>
    %1185 = vector.extract_strided_slice %872 {offsets = [0, 53], sizes = [2, 256], strides = [1, 1]} : vector<2x358xf32> to vector<2x256xf32>
    %c2_i32_425 = arith.constant 2 : i32
    %1186 = vector.broadcast %c2_i32_425 : i32 to vector<1x256xi32>
    %1187 = arith.addi %0, %1186 : vector<1x256xi32>
    %c0_i32_426 = arith.constant 0 : i32
    %1188 = vector.broadcast %c0_i32_426 : i32 to vector<1x256xi32>
    %1189 = arith.cmpi sge, %1187, %1188 : vector<1x256xi32>
    %c2_i32_427 = arith.constant 2 : i32
    %1190 = vector.broadcast %c2_i32_427 : i32 to vector<1x256xi32>
    %1191 = arith.addi %0, %1190 : vector<1x256xi32>
    %c16_i32_428 = arith.constant 16 : i32
    %1192 = vector.broadcast %c16_i32_428 : i32 to vector<1x256xi32>
    %1193 = arith.cmpi slt, %1191, %1192 : vector<1x256xi32>
    %1194 = arith.andi %1189, %1193 : vector<1x256xi1>
    %cst_429 = arith.constant 0.000000e+00 : f32
    %1195 = vector.shape_cast %1194 : vector<1x256xi1> to vector<1x256xi1>
    %1196 = vector.broadcast %1195 : vector<1x256xi1> to vector<2x256xi1>
    %1197 = vector.broadcast %cst_429 : f32 to vector<2x256xf32>
    %1198 = arith.select %1196, %1185, %1197 : vector<2x256xi1>, vector<2x256xf32>
    %1199 = vector.extract_strided_slice %872 {offsets = [0, 54], sizes = [2, 256], strides = [1, 1]} : vector<2x358xf32> to vector<2x256xf32>
    %c3_i32_430 = arith.constant 3 : i32
    %1200 = vector.broadcast %c3_i32_430 : i32 to vector<1x256xi32>
    %1201 = arith.addi %0, %1200 : vector<1x256xi32>
    %c0_i32_431 = arith.constant 0 : i32
    %1202 = vector.broadcast %c0_i32_431 : i32 to vector<1x256xi32>
    %1203 = arith.cmpi sge, %1201, %1202 : vector<1x256xi32>
    %c3_i32_432 = arith.constant 3 : i32
    %1204 = vector.broadcast %c3_i32_432 : i32 to vector<1x256xi32>
    %1205 = arith.addi %0, %1204 : vector<1x256xi32>
    %c16_i32_433 = arith.constant 16 : i32
    %1206 = vector.broadcast %c16_i32_433 : i32 to vector<1x256xi32>
    %1207 = arith.cmpi slt, %1205, %1206 : vector<1x256xi32>
    %1208 = arith.andi %1203, %1207 : vector<1x256xi1>
    %cst_434 = arith.constant 0.000000e+00 : f32
    %1209 = vector.shape_cast %1208 : vector<1x256xi1> to vector<1x256xi1>
    %1210 = vector.broadcast %1209 : vector<1x256xi1> to vector<2x256xi1>
    %1211 = vector.broadcast %cst_434 : f32 to vector<2x256xf32>
    %1212 = arith.select %1210, %1199, %1211 : vector<2x256xi1>, vector<2x256xf32>
    %1213 = vector.extract_strided_slice %872 {offsets = [0, 64], sizes = [2, 256], strides = [1, 1]} : vector<2x358xf32> to vector<2x256xf32>
    %c-3_i32_435 = arith.constant -3 : i32
    %1214 = vector.broadcast %c-3_i32_435 : i32 to vector<1x256xi32>
    %1215 = arith.addi %0, %1214 : vector<1x256xi32>
    %c0_i32_436 = arith.constant 0 : i32
    %1216 = vector.broadcast %c0_i32_436 : i32 to vector<1x256xi32>
    %1217 = arith.cmpi sge, %1215, %1216 : vector<1x256xi32>
    %c-3_i32_437 = arith.constant -3 : i32
    %1218 = vector.broadcast %c-3_i32_437 : i32 to vector<1x256xi32>
    %1219 = arith.addi %0, %1218 : vector<1x256xi32>
    %c16_i32_438 = arith.constant 16 : i32
    %1220 = vector.broadcast %c16_i32_438 : i32 to vector<1x256xi32>
    %1221 = arith.cmpi slt, %1219, %1220 : vector<1x256xi32>
    %1222 = arith.andi %1217, %1221 : vector<1x256xi1>
    %cst_439 = arith.constant 0.000000e+00 : f32
    %1223 = vector.shape_cast %1222 : vector<1x256xi1> to vector<1x256xi1>
    %1224 = vector.broadcast %1223 : vector<1x256xi1> to vector<2x256xi1>
    %1225 = vector.broadcast %cst_439 : f32 to vector<2x256xf32>
    %1226 = arith.select %1224, %1213, %1225 : vector<2x256xi1>, vector<2x256xf32>
    %1227 = vector.extract_strided_slice %872 {offsets = [0, 65], sizes = [2, 256], strides = [1, 1]} : vector<2x358xf32> to vector<2x256xf32>
    %c-2_i32_440 = arith.constant -2 : i32
    %1228 = vector.broadcast %c-2_i32_440 : i32 to vector<1x256xi32>
    %1229 = arith.addi %0, %1228 : vector<1x256xi32>
    %c0_i32_441 = arith.constant 0 : i32
    %1230 = vector.broadcast %c0_i32_441 : i32 to vector<1x256xi32>
    %1231 = arith.cmpi sge, %1229, %1230 : vector<1x256xi32>
    %c-2_i32_442 = arith.constant -2 : i32
    %1232 = vector.broadcast %c-2_i32_442 : i32 to vector<1x256xi32>
    %1233 = arith.addi %0, %1232 : vector<1x256xi32>
    %c16_i32_443 = arith.constant 16 : i32
    %1234 = vector.broadcast %c16_i32_443 : i32 to vector<1x256xi32>
    %1235 = arith.cmpi slt, %1233, %1234 : vector<1x256xi32>
    %1236 = arith.andi %1231, %1235 : vector<1x256xi1>
    %cst_444 = arith.constant 0.000000e+00 : f32
    %1237 = vector.shape_cast %1236 : vector<1x256xi1> to vector<1x256xi1>
    %1238 = vector.broadcast %1237 : vector<1x256xi1> to vector<2x256xi1>
    %1239 = vector.broadcast %cst_444 : f32 to vector<2x256xf32>
    %1240 = arith.select %1238, %1227, %1239 : vector<2x256xi1>, vector<2x256xf32>
    %1241 = vector.extract_strided_slice %872 {offsets = [0, 66], sizes = [2, 256], strides = [1, 1]} : vector<2x358xf32> to vector<2x256xf32>
    %c-1_i32_445 = arith.constant -1 : i32
    %1242 = vector.broadcast %c-1_i32_445 : i32 to vector<1x256xi32>
    %1243 = arith.addi %0, %1242 : vector<1x256xi32>
    %c0_i32_446 = arith.constant 0 : i32
    %1244 = vector.broadcast %c0_i32_446 : i32 to vector<1x256xi32>
    %1245 = arith.cmpi sge, %1243, %1244 : vector<1x256xi32>
    %c-1_i32_447 = arith.constant -1 : i32
    %1246 = vector.broadcast %c-1_i32_447 : i32 to vector<1x256xi32>
    %1247 = arith.addi %0, %1246 : vector<1x256xi32>
    %c16_i32_448 = arith.constant 16 : i32
    %1248 = vector.broadcast %c16_i32_448 : i32 to vector<1x256xi32>
    %1249 = arith.cmpi slt, %1247, %1248 : vector<1x256xi32>
    %1250 = arith.andi %1245, %1249 : vector<1x256xi1>
    %cst_449 = arith.constant 0.000000e+00 : f32
    %1251 = vector.shape_cast %1250 : vector<1x256xi1> to vector<1x256xi1>
    %1252 = vector.broadcast %1251 : vector<1x256xi1> to vector<2x256xi1>
    %1253 = vector.broadcast %cst_449 : f32 to vector<2x256xf32>
    %1254 = arith.select %1252, %1241, %1253 : vector<2x256xi1>, vector<2x256xf32>
    %1255 = vector.extract_strided_slice %872 {offsets = [0, 67], sizes = [2, 256], strides = [1, 1]} : vector<2x358xf32> to vector<2x256xf32>
    %1256 = vector.extract_strided_slice %872 {offsets = [0, 68], sizes = [2, 256], strides = [1, 1]} : vector<2x358xf32> to vector<2x256xf32>
    %c1_i32_450 = arith.constant 1 : i32
    %1257 = vector.broadcast %c1_i32_450 : i32 to vector<1x256xi32>
    %1258 = arith.addi %0, %1257 : vector<1x256xi32>
    %c0_i32_451 = arith.constant 0 : i32
    %1259 = vector.broadcast %c0_i32_451 : i32 to vector<1x256xi32>
    %1260 = arith.cmpi sge, %1258, %1259 : vector<1x256xi32>
    %c1_i32_452 = arith.constant 1 : i32
    %1261 = vector.broadcast %c1_i32_452 : i32 to vector<1x256xi32>
    %1262 = arith.addi %0, %1261 : vector<1x256xi32>
    %c16_i32_453 = arith.constant 16 : i32
    %1263 = vector.broadcast %c16_i32_453 : i32 to vector<1x256xi32>
    %1264 = arith.cmpi slt, %1262, %1263 : vector<1x256xi32>
    %1265 = arith.andi %1260, %1264 : vector<1x256xi1>
    %cst_454 = arith.constant 0.000000e+00 : f32
    %1266 = vector.shape_cast %1265 : vector<1x256xi1> to vector<1x256xi1>
    %1267 = vector.broadcast %1266 : vector<1x256xi1> to vector<2x256xi1>
    %1268 = vector.broadcast %cst_454 : f32 to vector<2x256xf32>
    %1269 = arith.select %1267, %1256, %1268 : vector<2x256xi1>, vector<2x256xf32>
    %1270 = vector.extract_strided_slice %872 {offsets = [0, 69], sizes = [2, 256], strides = [1, 1]} : vector<2x358xf32> to vector<2x256xf32>
    %c2_i32_455 = arith.constant 2 : i32
    %1271 = vector.broadcast %c2_i32_455 : i32 to vector<1x256xi32>
    %1272 = arith.addi %0, %1271 : vector<1x256xi32>
    %c0_i32_456 = arith.constant 0 : i32
    %1273 = vector.broadcast %c0_i32_456 : i32 to vector<1x256xi32>
    %1274 = arith.cmpi sge, %1272, %1273 : vector<1x256xi32>
    %c2_i32_457 = arith.constant 2 : i32
    %1275 = vector.broadcast %c2_i32_457 : i32 to vector<1x256xi32>
    %1276 = arith.addi %0, %1275 : vector<1x256xi32>
    %c16_i32_458 = arith.constant 16 : i32
    %1277 = vector.broadcast %c16_i32_458 : i32 to vector<1x256xi32>
    %1278 = arith.cmpi slt, %1276, %1277 : vector<1x256xi32>
    %1279 = arith.andi %1274, %1278 : vector<1x256xi1>
    %cst_459 = arith.constant 0.000000e+00 : f32
    %1280 = vector.shape_cast %1279 : vector<1x256xi1> to vector<1x256xi1>
    %1281 = vector.broadcast %1280 : vector<1x256xi1> to vector<2x256xi1>
    %1282 = vector.broadcast %cst_459 : f32 to vector<2x256xf32>
    %1283 = arith.select %1281, %1270, %1282 : vector<2x256xi1>, vector<2x256xf32>
    %1284 = vector.extract_strided_slice %872 {offsets = [0, 70], sizes = [2, 256], strides = [1, 1]} : vector<2x358xf32> to vector<2x256xf32>
    %c3_i32_460 = arith.constant 3 : i32
    %1285 = vector.broadcast %c3_i32_460 : i32 to vector<1x256xi32>
    %1286 = arith.addi %0, %1285 : vector<1x256xi32>
    %c0_i32_461 = arith.constant 0 : i32
    %1287 = vector.broadcast %c0_i32_461 : i32 to vector<1x256xi32>
    %1288 = arith.cmpi sge, %1286, %1287 : vector<1x256xi32>
    %c3_i32_462 = arith.constant 3 : i32
    %1289 = vector.broadcast %c3_i32_462 : i32 to vector<1x256xi32>
    %1290 = arith.addi %0, %1289 : vector<1x256xi32>
    %c16_i32_463 = arith.constant 16 : i32
    %1291 = vector.broadcast %c16_i32_463 : i32 to vector<1x256xi32>
    %1292 = arith.cmpi slt, %1290, %1291 : vector<1x256xi32>
    %1293 = arith.andi %1288, %1292 : vector<1x256xi1>
    %cst_464 = arith.constant 0.000000e+00 : f32
    %1294 = vector.shape_cast %1293 : vector<1x256xi1> to vector<1x256xi1>
    %1295 = vector.broadcast %1294 : vector<1x256xi1> to vector<2x256xi1>
    %1296 = vector.broadcast %cst_464 : f32 to vector<2x256xf32>
    %1297 = arith.select %1295, %1284, %1296 : vector<2x256xi1>, vector<2x256xf32>
    %1298 = vector.extract_strided_slice %872 {offsets = [0, 80], sizes = [2, 256], strides = [1, 1]} : vector<2x358xf32> to vector<2x256xf32>
    %c-3_i32_465 = arith.constant -3 : i32
    %1299 = vector.broadcast %c-3_i32_465 : i32 to vector<1x256xi32>
    %1300 = arith.addi %0, %1299 : vector<1x256xi32>
    %c0_i32_466 = arith.constant 0 : i32
    %1301 = vector.broadcast %c0_i32_466 : i32 to vector<1x256xi32>
    %1302 = arith.cmpi sge, %1300, %1301 : vector<1x256xi32>
    %c-3_i32_467 = arith.constant -3 : i32
    %1303 = vector.broadcast %c-3_i32_467 : i32 to vector<1x256xi32>
    %1304 = arith.addi %0, %1303 : vector<1x256xi32>
    %c16_i32_468 = arith.constant 16 : i32
    %1305 = vector.broadcast %c16_i32_468 : i32 to vector<1x256xi32>
    %1306 = arith.cmpi slt, %1304, %1305 : vector<1x256xi32>
    %1307 = arith.andi %1302, %1306 : vector<1x256xi1>
    %cst_469 = arith.constant 0.000000e+00 : f32
    %1308 = vector.shape_cast %1307 : vector<1x256xi1> to vector<1x256xi1>
    %1309 = vector.broadcast %1308 : vector<1x256xi1> to vector<2x256xi1>
    %1310 = vector.broadcast %cst_469 : f32 to vector<2x256xf32>
    %1311 = arith.select %1309, %1298, %1310 : vector<2x256xi1>, vector<2x256xf32>
    %1312 = vector.extract_strided_slice %872 {offsets = [0, 81], sizes = [2, 256], strides = [1, 1]} : vector<2x358xf32> to vector<2x256xf32>
    %c-2_i32_470 = arith.constant -2 : i32
    %1313 = vector.broadcast %c-2_i32_470 : i32 to vector<1x256xi32>
    %1314 = arith.addi %0, %1313 : vector<1x256xi32>
    %c0_i32_471 = arith.constant 0 : i32
    %1315 = vector.broadcast %c0_i32_471 : i32 to vector<1x256xi32>
    %1316 = arith.cmpi sge, %1314, %1315 : vector<1x256xi32>
    %c-2_i32_472 = arith.constant -2 : i32
    %1317 = vector.broadcast %c-2_i32_472 : i32 to vector<1x256xi32>
    %1318 = arith.addi %0, %1317 : vector<1x256xi32>
    %c16_i32_473 = arith.constant 16 : i32
    %1319 = vector.broadcast %c16_i32_473 : i32 to vector<1x256xi32>
    %1320 = arith.cmpi slt, %1318, %1319 : vector<1x256xi32>
    %1321 = arith.andi %1316, %1320 : vector<1x256xi1>
    %cst_474 = arith.constant 0.000000e+00 : f32
    %1322 = vector.shape_cast %1321 : vector<1x256xi1> to vector<1x256xi1>
    %1323 = vector.broadcast %1322 : vector<1x256xi1> to vector<2x256xi1>
    %1324 = vector.broadcast %cst_474 : f32 to vector<2x256xf32>
    %1325 = arith.select %1323, %1312, %1324 : vector<2x256xi1>, vector<2x256xf32>
    %1326 = vector.extract_strided_slice %872 {offsets = [0, 82], sizes = [2, 256], strides = [1, 1]} : vector<2x358xf32> to vector<2x256xf32>
    %c-1_i32_475 = arith.constant -1 : i32
    %1327 = vector.broadcast %c-1_i32_475 : i32 to vector<1x256xi32>
    %1328 = arith.addi %0, %1327 : vector<1x256xi32>
    %c0_i32_476 = arith.constant 0 : i32
    %1329 = vector.broadcast %c0_i32_476 : i32 to vector<1x256xi32>
    %1330 = arith.cmpi sge, %1328, %1329 : vector<1x256xi32>
    %c-1_i32_477 = arith.constant -1 : i32
    %1331 = vector.broadcast %c-1_i32_477 : i32 to vector<1x256xi32>
    %1332 = arith.addi %0, %1331 : vector<1x256xi32>
    %c16_i32_478 = arith.constant 16 : i32
    %1333 = vector.broadcast %c16_i32_478 : i32 to vector<1x256xi32>
    %1334 = arith.cmpi slt, %1332, %1333 : vector<1x256xi32>
    %1335 = arith.andi %1330, %1334 : vector<1x256xi1>
    %cst_479 = arith.constant 0.000000e+00 : f32
    %1336 = vector.shape_cast %1335 : vector<1x256xi1> to vector<1x256xi1>
    %1337 = vector.broadcast %1336 : vector<1x256xi1> to vector<2x256xi1>
    %1338 = vector.broadcast %cst_479 : f32 to vector<2x256xf32>
    %1339 = arith.select %1337, %1326, %1338 : vector<2x256xi1>, vector<2x256xf32>
    %1340 = vector.extract_strided_slice %872 {offsets = [0, 83], sizes = [2, 256], strides = [1, 1]} : vector<2x358xf32> to vector<2x256xf32>
    %1341 = vector.extract_strided_slice %872 {offsets = [0, 84], sizes = [2, 256], strides = [1, 1]} : vector<2x358xf32> to vector<2x256xf32>
    %c1_i32_480 = arith.constant 1 : i32
    %1342 = vector.broadcast %c1_i32_480 : i32 to vector<1x256xi32>
    %1343 = arith.addi %0, %1342 : vector<1x256xi32>
    %c0_i32_481 = arith.constant 0 : i32
    %1344 = vector.broadcast %c0_i32_481 : i32 to vector<1x256xi32>
    %1345 = arith.cmpi sge, %1343, %1344 : vector<1x256xi32>
    %c1_i32_482 = arith.constant 1 : i32
    %1346 = vector.broadcast %c1_i32_482 : i32 to vector<1x256xi32>
    %1347 = arith.addi %0, %1346 : vector<1x256xi32>
    %c16_i32_483 = arith.constant 16 : i32
    %1348 = vector.broadcast %c16_i32_483 : i32 to vector<1x256xi32>
    %1349 = arith.cmpi slt, %1347, %1348 : vector<1x256xi32>
    %1350 = arith.andi %1345, %1349 : vector<1x256xi1>
    %cst_484 = arith.constant 0.000000e+00 : f32
    %1351 = vector.shape_cast %1350 : vector<1x256xi1> to vector<1x256xi1>
    %1352 = vector.broadcast %1351 : vector<1x256xi1> to vector<2x256xi1>
    %1353 = vector.broadcast %cst_484 : f32 to vector<2x256xf32>
    %1354 = arith.select %1352, %1341, %1353 : vector<2x256xi1>, vector<2x256xf32>
    %1355 = vector.extract_strided_slice %872 {offsets = [0, 85], sizes = [2, 256], strides = [1, 1]} : vector<2x358xf32> to vector<2x256xf32>
    %c2_i32_485 = arith.constant 2 : i32
    %1356 = vector.broadcast %c2_i32_485 : i32 to vector<1x256xi32>
    %1357 = arith.addi %0, %1356 : vector<1x256xi32>
    %c0_i32_486 = arith.constant 0 : i32
    %1358 = vector.broadcast %c0_i32_486 : i32 to vector<1x256xi32>
    %1359 = arith.cmpi sge, %1357, %1358 : vector<1x256xi32>
    %c2_i32_487 = arith.constant 2 : i32
    %1360 = vector.broadcast %c2_i32_487 : i32 to vector<1x256xi32>
    %1361 = arith.addi %0, %1360 : vector<1x256xi32>
    %c16_i32_488 = arith.constant 16 : i32
    %1362 = vector.broadcast %c16_i32_488 : i32 to vector<1x256xi32>
    %1363 = arith.cmpi slt, %1361, %1362 : vector<1x256xi32>
    %1364 = arith.andi %1359, %1363 : vector<1x256xi1>
    %cst_489 = arith.constant 0.000000e+00 : f32
    %1365 = vector.shape_cast %1364 : vector<1x256xi1> to vector<1x256xi1>
    %1366 = vector.broadcast %1365 : vector<1x256xi1> to vector<2x256xi1>
    %1367 = vector.broadcast %cst_489 : f32 to vector<2x256xf32>
    %1368 = arith.select %1366, %1355, %1367 : vector<2x256xi1>, vector<2x256xf32>
    %1369 = vector.extract_strided_slice %872 {offsets = [0, 86], sizes = [2, 256], strides = [1, 1]} : vector<2x358xf32> to vector<2x256xf32>
    %c3_i32_490 = arith.constant 3 : i32
    %1370 = vector.broadcast %c3_i32_490 : i32 to vector<1x256xi32>
    %1371 = arith.addi %0, %1370 : vector<1x256xi32>
    %c0_i32_491 = arith.constant 0 : i32
    %1372 = vector.broadcast %c0_i32_491 : i32 to vector<1x256xi32>
    %1373 = arith.cmpi sge, %1371, %1372 : vector<1x256xi32>
    %c3_i32_492 = arith.constant 3 : i32
    %1374 = vector.broadcast %c3_i32_492 : i32 to vector<1x256xi32>
    %1375 = arith.addi %0, %1374 : vector<1x256xi32>
    %c16_i32_493 = arith.constant 16 : i32
    %1376 = vector.broadcast %c16_i32_493 : i32 to vector<1x256xi32>
    %1377 = arith.cmpi slt, %1375, %1376 : vector<1x256xi32>
    %1378 = arith.andi %1373, %1377 : vector<1x256xi1>
    %cst_494 = arith.constant 0.000000e+00 : f32
    %1379 = vector.shape_cast %1378 : vector<1x256xi1> to vector<1x256xi1>
    %1380 = vector.broadcast %1379 : vector<1x256xi1> to vector<2x256xi1>
    %1381 = vector.broadcast %cst_494 : f32 to vector<2x256xf32>
    %1382 = arith.select %1380, %1369, %1381 : vector<2x256xi1>, vector<2x256xf32>
    %1383 = vector.extract_strided_slice %872 {offsets = [0, 96], sizes = [2, 256], strides = [1, 1]} : vector<2x358xf32> to vector<2x256xf32>
    %c-3_i32_495 = arith.constant -3 : i32
    %1384 = vector.broadcast %c-3_i32_495 : i32 to vector<1x256xi32>
    %1385 = arith.addi %0, %1384 : vector<1x256xi32>
    %c0_i32_496 = arith.constant 0 : i32
    %1386 = vector.broadcast %c0_i32_496 : i32 to vector<1x256xi32>
    %1387 = arith.cmpi sge, %1385, %1386 : vector<1x256xi32>
    %c-3_i32_497 = arith.constant -3 : i32
    %1388 = vector.broadcast %c-3_i32_497 : i32 to vector<1x256xi32>
    %1389 = arith.addi %0, %1388 : vector<1x256xi32>
    %c16_i32_498 = arith.constant 16 : i32
    %1390 = vector.broadcast %c16_i32_498 : i32 to vector<1x256xi32>
    %1391 = arith.cmpi slt, %1389, %1390 : vector<1x256xi32>
    %1392 = arith.andi %1387, %1391 : vector<1x256xi1>
    %cst_499 = arith.constant 0.000000e+00 : f32
    %1393 = vector.shape_cast %1392 : vector<1x256xi1> to vector<1x256xi1>
    %1394 = vector.broadcast %1393 : vector<1x256xi1> to vector<2x256xi1>
    %1395 = vector.broadcast %cst_499 : f32 to vector<2x256xf32>
    %1396 = arith.select %1394, %1383, %1395 : vector<2x256xi1>, vector<2x256xf32>
    %1397 = vector.extract_strided_slice %872 {offsets = [0, 97], sizes = [2, 256], strides = [1, 1]} : vector<2x358xf32> to vector<2x256xf32>
    %c-2_i32_500 = arith.constant -2 : i32
    %1398 = vector.broadcast %c-2_i32_500 : i32 to vector<1x256xi32>
    %1399 = arith.addi %0, %1398 : vector<1x256xi32>
    %c0_i32_501 = arith.constant 0 : i32
    %1400 = vector.broadcast %c0_i32_501 : i32 to vector<1x256xi32>
    %1401 = arith.cmpi sge, %1399, %1400 : vector<1x256xi32>
    %c-2_i32_502 = arith.constant -2 : i32
    %1402 = vector.broadcast %c-2_i32_502 : i32 to vector<1x256xi32>
    %1403 = arith.addi %0, %1402 : vector<1x256xi32>
    %c16_i32_503 = arith.constant 16 : i32
    %1404 = vector.broadcast %c16_i32_503 : i32 to vector<1x256xi32>
    %1405 = arith.cmpi slt, %1403, %1404 : vector<1x256xi32>
    %1406 = arith.andi %1401, %1405 : vector<1x256xi1>
    %cst_504 = arith.constant 0.000000e+00 : f32
    %1407 = vector.shape_cast %1406 : vector<1x256xi1> to vector<1x256xi1>
    %1408 = vector.broadcast %1407 : vector<1x256xi1> to vector<2x256xi1>
    %1409 = vector.broadcast %cst_504 : f32 to vector<2x256xf32>
    %1410 = arith.select %1408, %1397, %1409 : vector<2x256xi1>, vector<2x256xf32>
    %1411 = vector.extract_strided_slice %872 {offsets = [0, 98], sizes = [2, 256], strides = [1, 1]} : vector<2x358xf32> to vector<2x256xf32>
    %c-1_i32_505 = arith.constant -1 : i32
    %1412 = vector.broadcast %c-1_i32_505 : i32 to vector<1x256xi32>
    %1413 = arith.addi %0, %1412 : vector<1x256xi32>
    %c0_i32_506 = arith.constant 0 : i32
    %1414 = vector.broadcast %c0_i32_506 : i32 to vector<1x256xi32>
    %1415 = arith.cmpi sge, %1413, %1414 : vector<1x256xi32>
    %c-1_i32_507 = arith.constant -1 : i32
    %1416 = vector.broadcast %c-1_i32_507 : i32 to vector<1x256xi32>
    %1417 = arith.addi %0, %1416 : vector<1x256xi32>
    %c16_i32_508 = arith.constant 16 : i32
    %1418 = vector.broadcast %c16_i32_508 : i32 to vector<1x256xi32>
    %1419 = arith.cmpi slt, %1417, %1418 : vector<1x256xi32>
    %1420 = arith.andi %1415, %1419 : vector<1x256xi1>
    %cst_509 = arith.constant 0.000000e+00 : f32
    %1421 = vector.shape_cast %1420 : vector<1x256xi1> to vector<1x256xi1>
    %1422 = vector.broadcast %1421 : vector<1x256xi1> to vector<2x256xi1>
    %1423 = vector.broadcast %cst_509 : f32 to vector<2x256xf32>
    %1424 = arith.select %1422, %1411, %1423 : vector<2x256xi1>, vector<2x256xf32>
    %1425 = vector.extract_strided_slice %872 {offsets = [0, 99], sizes = [2, 256], strides = [1, 1]} : vector<2x358xf32> to vector<2x256xf32>
    %1426 = vector.extract_strided_slice %872 {offsets = [0, 100], sizes = [2, 256], strides = [1, 1]} : vector<2x358xf32> to vector<2x256xf32>
    %c1_i32_510 = arith.constant 1 : i32
    %1427 = vector.broadcast %c1_i32_510 : i32 to vector<1x256xi32>
    %1428 = arith.addi %0, %1427 : vector<1x256xi32>
    %c0_i32_511 = arith.constant 0 : i32
    %1429 = vector.broadcast %c0_i32_511 : i32 to vector<1x256xi32>
    %1430 = arith.cmpi sge, %1428, %1429 : vector<1x256xi32>
    %c1_i32_512 = arith.constant 1 : i32
    %1431 = vector.broadcast %c1_i32_512 : i32 to vector<1x256xi32>
    %1432 = arith.addi %0, %1431 : vector<1x256xi32>
    %c16_i32_513 = arith.constant 16 : i32
    %1433 = vector.broadcast %c16_i32_513 : i32 to vector<1x256xi32>
    %1434 = arith.cmpi slt, %1432, %1433 : vector<1x256xi32>
    %1435 = arith.andi %1430, %1434 : vector<1x256xi1>
    %cst_514 = arith.constant 0.000000e+00 : f32
    %1436 = vector.shape_cast %1435 : vector<1x256xi1> to vector<1x256xi1>
    %1437 = vector.broadcast %1436 : vector<1x256xi1> to vector<2x256xi1>
    %1438 = vector.broadcast %cst_514 : f32 to vector<2x256xf32>
    %1439 = arith.select %1437, %1426, %1438 : vector<2x256xi1>, vector<2x256xf32>
    %1440 = vector.extract_strided_slice %872 {offsets = [0, 101], sizes = [2, 256], strides = [1, 1]} : vector<2x358xf32> to vector<2x256xf32>
    %c2_i32_515 = arith.constant 2 : i32
    %1441 = vector.broadcast %c2_i32_515 : i32 to vector<1x256xi32>
    %1442 = arith.addi %0, %1441 : vector<1x256xi32>
    %c0_i32_516 = arith.constant 0 : i32
    %1443 = vector.broadcast %c0_i32_516 : i32 to vector<1x256xi32>
    %1444 = arith.cmpi sge, %1442, %1443 : vector<1x256xi32>
    %c2_i32_517 = arith.constant 2 : i32
    %1445 = vector.broadcast %c2_i32_517 : i32 to vector<1x256xi32>
    %1446 = arith.addi %0, %1445 : vector<1x256xi32>
    %c16_i32_518 = arith.constant 16 : i32
    %1447 = vector.broadcast %c16_i32_518 : i32 to vector<1x256xi32>
    %1448 = arith.cmpi slt, %1446, %1447 : vector<1x256xi32>
    %1449 = arith.andi %1444, %1448 : vector<1x256xi1>
    %cst_519 = arith.constant 0.000000e+00 : f32
    %1450 = vector.shape_cast %1449 : vector<1x256xi1> to vector<1x256xi1>
    %1451 = vector.broadcast %1450 : vector<1x256xi1> to vector<2x256xi1>
    %1452 = vector.broadcast %cst_519 : f32 to vector<2x256xf32>
    %1453 = arith.select %1451, %1440, %1452 : vector<2x256xi1>, vector<2x256xf32>
    %1454 = vector.extract_strided_slice %872 {offsets = [0, 102], sizes = [2, 256], strides = [1, 1]} : vector<2x358xf32> to vector<2x256xf32>
    %c3_i32_520 = arith.constant 3 : i32
    %1455 = vector.broadcast %c3_i32_520 : i32 to vector<1x256xi32>
    %1456 = arith.addi %0, %1455 : vector<1x256xi32>
    %c0_i32_521 = arith.constant 0 : i32
    %1457 = vector.broadcast %c0_i32_521 : i32 to vector<1x256xi32>
    %1458 = arith.cmpi sge, %1456, %1457 : vector<1x256xi32>
    %c3_i32_522 = arith.constant 3 : i32
    %1459 = vector.broadcast %c3_i32_522 : i32 to vector<1x256xi32>
    %1460 = arith.addi %0, %1459 : vector<1x256xi32>
    %c16_i32_523 = arith.constant 16 : i32
    %1461 = vector.broadcast %c16_i32_523 : i32 to vector<1x256xi32>
    %1462 = arith.cmpi slt, %1460, %1461 : vector<1x256xi32>
    %1463 = arith.andi %1458, %1462 : vector<1x256xi1>
    %cst_524 = arith.constant 0.000000e+00 : f32
    %1464 = vector.shape_cast %1463 : vector<1x256xi1> to vector<1x256xi1>
    %1465 = vector.broadcast %1464 : vector<1x256xi1> to vector<2x256xi1>
    %1466 = vector.broadcast %cst_524 : f32 to vector<2x256xf32>
    %1467 = arith.select %1465, %1454, %1466 : vector<2x256xi1>, vector<2x256xf32>
    %1468 = tpu.concatenate %886, %900, %914, %915, %929, %943, %957, %971, %985, %999, %1000, %1014, %1028, %1042, %1056, %1070 in 0 : vector<2x256xf32>, vector<2x256xf32>, vector<2x256xf32>, vector<2x256xf32>, vector<2x256xf32>, vector<2x256xf32>, vector<2x256xf32>, vector<2x256xf32>, vector<2x256xf32>, vector<2x256xf32>, vector<2x256xf32>, vector<2x256xf32>, vector<2x256xf32>, vector<2x256xf32>, vector<2x256xf32>, vector<2x256xf32> -> vector<32x256xf32>
    %1469 = tpu.concatenate %1084, %1085, %1099, %1113, %1127, %1141, %1155, %1169, %1170, %1184, %1198, %1212, %1226, %1240, %1254, %1255 in 0 : vector<2x256xf32>, vector<2x256xf32>, vector<2x256xf32>, vector<2x256xf32>, vector<2x256xf32>, vector<2x256xf32>, vector<2x256xf32>, vector<2x256xf32>, vector<2x256xf32>, vector<2x256xf32>, vector<2x256xf32>, vector<2x256xf32>, vector<2x256xf32>, vector<2x256xf32>, vector<2x256xf32>, vector<2x256xf32> -> vector<32x256xf32>
    %1470 = tpu.concatenate %1269, %1283, %1297, %1311, %1325, %1339, %1340, %1354, %1368, %1382, %1396, %1410, %1424, %1425, %1439, %1453 in 0 : vector<2x256xf32>, vector<2x256xf32>, vector<2x256xf32>, vector<2x256xf32>, vector<2x256xf32>, vector<2x256xf32>, vector<2x256xf32>, vector<2x256xf32>, vector<2x256xf32>, vector<2x256xf32>, vector<2x256xf32>, vector<2x256xf32>, vector<2x256xf32>, vector<2x256xf32>, vector<2x256xf32>, vector<2x256xf32> -> vector<32x256xf32>
    %1471 = tpu.concatenate %1468, %1469, %1470, %1467 in 0 : vector<32x256xf32>, vector<32x256xf32>, vector<32x256xf32>, vector<2x256xf32> -> vector<98x256xf32>
    %1472 = vector.broadcast %863 : vector<98x1xf32> to vector<98x256xf32>
    %1473 = arith.mulf %1471, %1472 : vector<98x256xf32>
    %cst_525 = arith.constant dense<0.000000e+00> : vector<256xf32>
    %1474 = vector.multi_reduction <add>, %1473, %cst_525 [0] : vector<98x256xf32> to vector<256xf32>
    %1475 = vector.shape_cast %1474 : vector<256xf32> to vector<1x256xf32>
    %1476 = arith.negf %1475 : vector<1x256xf32>
    %1477 = math.exp %1476 : vector<1x256xf32>
    %cst_526 = arith.constant 1.000000e+00 : f32
    %1478 = vector.broadcast %cst_526 : f32 to vector<1x256xf32>
    %1479 = arith.addf %1478, %1477 : vector<1x256xf32>
    %1480 = arith.divf %1478, %1479 : vector<1x256xf32>
    %1481 = vector.broadcast %1480 : vector<1x256xf32> to vector<32x256xf32>
    %1482 = arith.mulf %862, %1481 : vector<32x256xf32>
    %c0_527 = arith.constant 0 : index
    %c0_528 = arith.constant 0 : index
    %c0_529 = arith.constant 0 : index
    %1483 = vector.load %arg13[%c0_527, %c0_528, %c0_529] : memref<1x32x256xf32, #tpu.memory_space<vmem>>, vector<1x32x256xf32>
    %1484 = vector.shape_cast %1483 : vector<1x32x256xf32> to vector<32x256xf32>
    %1485 = vector.shape_cast %1482 : vector<32x256xf32> to vector<1x32x256xf32>
    tpu.vector_store %arg13[%c0_527, %c0_528, %c0_529], %1485 {strides = array<i32>} : memref<1x32x256xf32, #tpu.memory_space<vmem>>, vector<1x32x256xf32>,
    return
  }
  func.func @transform_0(%arg0: i32) -> (i32, i32, i32) {
    %c0_i32 = arith.constant 0 : i32
    %c0_i32_0 = arith.constant 0 : i32
    %c0_i32_1 = arith.constant 0 : i32
    return %arg0, %c0_i32, %c0_i32_0 : i32, i32, i32
  }
  func.func @transform_1(%arg0: i32) -> (i32, i32) {
    %c0_i32 = arith.constant 0 : i32
    %c0_i32_0 = arith.constant 0 : i32
    %c0_i32_1 = arith.constant 0 : i32
    return %c0_i32, %c0_i32_0 : i32, i32
  }
  func.func @transform_2(%arg0: i32) -> (i32, i32) {
    %c0_i32 = arith.constant 0 : i32
    %c0_i32_0 = arith.constant 0 : i32
    %c0_i32_1 = arith.constant 0 : i32
    return %c0_i32, %c0_i32_0 : i32, i32
  }
  func.func @transform_3(%arg0: i32) -> (i32, i32) {
    %c0_i32 = arith.constant 0 : i32
    %c0_i32_0 = arith.constant 0 : i32
    %c0_i32_1 = arith.constant 0 : i32
    return %c0_i32, %c0_i32_0 : i32, i32
  }
  func.func @transform_4(%arg0: i32) -> (i32, i32) {
    %c0_i32 = arith.constant 0 : i32
    %c0_i32_0 = arith.constant 0 : i32
    %c0_i32_1 = arith.constant 0 : i32
    return %c0_i32, %c0_i32_0 : i32, i32
  }
  func.func @transform_5(%arg0: i32) -> (i32, i32) {
    %c0_i32 = arith.constant 0 : i32
    %c0_i32_0 = arith.constant 0 : i32
    %c0_i32_1 = arith.constant 0 : i32
    return %c0_i32, %c0_i32_0 : i32, i32
  }
  func.func @transform_6(%arg0: i32) -> (i32, i32) {
    %c0_i32 = arith.constant 0 : i32
    %c0_i32_0 = arith.constant 0 : i32
    %c0_i32_1 = arith.constant 0 : i32
    return %c0_i32, %c0_i32_0 : i32, i32
  }
  func.func @transform_7(%arg0: i32) -> (i32, i32) {
    %c0_i32 = arith.constant 0 : i32
    %c0_i32_0 = arith.constant 0 : i32
    %c0_i32_1 = arith.constant 0 : i32
    return %c0_i32, %c0_i32_0 : i32, i32
  }
  func.func @transform_8(%arg0: i32) -> (i32, i32) {
    %c0_i32 = arith.constant 0 : i32
    %c0_i32_0 = arith.constant 0 : i32
    %c0_i32_1 = arith.constant 0 : i32
    return %c0_i32, %c0_i32_0 : i32, i32
  }
  func.func @transform_9(%arg0: i32) -> (i32, i32) {
    %c0_i32 = arith.constant 0 : i32
    %c0_i32_0 = arith.constant 0 : i32
    %c0_i32_1 = arith.constant 0 : i32
    return %c0_i32, %c0_i32_0 : i32, i32
  }
  func.func @transform_10(%arg0: i32) -> (i32, i32) {
    %c0_i32 = arith.constant 0 : i32
    %c0_i32_0 = arith.constant 0 : i32
    %c0_i32_1 = arith.constant 0 : i32
    return %c0_i32, %c0_i32_0 : i32, i32
  }
  func.func @transform_11(%arg0: i32) -> (i32, i32) {
    %c0_i32 = arith.constant 0 : i32
    %c0_i32_0 = arith.constant 0 : i32
    %c0_i32_1 = arith.constant 0 : i32
    return %c0_i32, %c0_i32_0 : i32, i32
  }
  func.func @transform_12(%arg0: i32) -> (i32, i32, i32) {
    %c0_i32 = arith.constant 0 : i32
    %c0_i32_0 = arith.constant 0 : i32
    %c0_i32_1 = arith.constant 0 : i32
    return %arg0, %c0_i32, %c0_i32_0 : i32, i32, i32
  }
}

</mosaic_0001>

<llo_original>
// kernel: double_conv_cbam_forward.1
$region0: #{double_conv_cbam_forward.1}
  #allocation0 [shape = 'u32[]', space=smem, size = 0x4, offset = 0x4, fixed_abs, tag = 'smem constant byte address 0x4 - core index']
  #allocation1 [shape = 'u32[144,128]{1,0:T(1,128)}', space=vmem, size = 0x12000, scoped, tag = 'internal scratch']
  %s0 = inlined_call_operand.vmem [shape: f32[2,4,256], index: 0, kind: input, shape index: {}]
  %s1 = inlined_call_operand.vmem [shape: s32[1,256], index: 1, kind: input, shape index: {}]
  %s2 = inlined_call_operand.vmem [shape: f32[32,36], index: 2, kind: input, shape index: {}]
  %s3 = inlined_call_operand.vmem [shape: f32[32,1], index: 3, kind: input, shape index: {}]
  %s4 = inlined_call_operand.vmem [shape: f32[2,32], index: 4, kind: input, shape index: {}]
  %s5 = inlined_call_operand.vmem [shape: f32[32,2], index: 5, kind: input, shape index: {}]
  %s6 = inlined_call_operand.vmem [shape: f32[98,1], index: 6, kind: input, shape index: {}]
  %s7 = inlined_call_operand.vmem [shape: f32[32,288], index: 7, kind: input, shape index: {}]
  %s8 = inlined_call_operand.vmem [shape: f32[32,1], index: 8, kind: input, shape index: {}]
  %s9 = inlined_call_operand.vmem [shape: f32[2,32], index: 9, kind: input, shape index: {}]
  %s10 = inlined_call_operand.vmem [shape: f32[32,2], index: 10, kind: input, shape index: {}]
  %s11 = inlined_call_operand.vmem [shape: f32[98,1], index: 11, kind: input, shape index: {}]
  %s12 = inlined_call_operand.vmem [shape: f32[2,32,256], index: 12, kind: output, shape index: {}]
  %s13 = sld [smem:[#allocation0]]
  $region81: #{double_conv_cbam_forward.1} parent=0
    _
  %s15 = ssub.s32 1, %s13
  %s16 = scalar_select 0, %s15, %s13
  loop: start=0, step=1, limit=4
  $region2: #{double_conv_cbam_forward.1} parent=0 // loop_pre_header
    _
  $region3: #{double_conv_cbam_forward.1} parent=0 // loop_header
    %s18 = sphi 0, %s22
    %p19 = scmp.ge.s32.totalorder %s18, 4
    %s28 = sphi 0, %s30
    %s31 = sphi 0, %s28
    %s32 = sphi 0, %s31
    %s48 = sphi 0, %s32
    %s52 = sphi 0, %s52
    %s54 = sphi 0, %s52
    %s55 = sphi 0, %s54
    %s69 = sphi 0, %s55
    %s73 = sphi 0, %s73
    %s75 = sphi 0, %s73
    %s76 = sphi 0, %s75
    %s90 = sphi 0, %s76
    %s94 = sphi 0, %s94
    %s96 = sphi 0, %s94
    %s97 = sphi 0, %s96
    %s111 = sphi 0, %s97
    %s115 = sphi 0, %s115
    %s117 = sphi 0, %s115
    %s118 = sphi 0, %s117
    %s132 = sphi 0, %s118
    %s136 = sphi 0, %s136
    %s138 = sphi 0, %s136
    %s139 = sphi 0, %s138
    %s153 = sphi 0, %s139
    %s157 = sphi 0, %s157
    %s159 = sphi 0, %s157
    %s160 = sphi 0, %s159
    %s174 = sphi 0, %s160
    %s178 = sphi 0, %s178
    %s180 = sphi 0, %s178
    %s181 = sphi 0, %s180
    %s195 = sphi 0, %s181
    %s199 = sphi 0, %s199
    %s201 = sphi 0, %s199
    %s202 = sphi 0, %s201
    %s216 = sphi 0, %s202
    %s220 = sphi 0, %s220
    %s222 = sphi 0, %s220
    %s223 = sphi 0, %s222
    %s237 = sphi 0, %s223
    %s241 = sphi 0, %s241
    %s243 = sphi 0, %s241
    %s244 = sphi 0, %s243
    %s258 = sphi 0, %s244
    %s262 = sphi 0, %s262
    %s264 = sphi 0, %s262
    %s265 = sphi 0, %s264
    %s279 = sphi 0, %s265
    %s285 = sphi 0, %s287
    %s288 = sphi 0, %s285
    %s289 = sphi 0, %s288
    %s305 = sphi 0, %s289
  $region4: #{double_conv_cbam_forward.1} parent=0 // loop_header_branch
    %21 = sbr.rel (%p19) target = $region8
  $region5: #{double_conv_cbam_forward.1} parent=0 // loop_body
    %s23 = ssub.s32 %s18, 1
    %s24 = ssub.s32 %s18, 2
    %s25 = sadd.s32 %s18, 1
    %s26 = ssub.s32 %s18, %s25
    %p27 = scmp.eq.s32.totalorder %s26, 0
    %s29 = sadd.s32 %s28, 1
    %s30 = scalar_select %p27, %s28, %s29
    %p33 = pneg %p27
    %p34 = scmp.eq.s32.totalorder %s18, 1
    %p35 = por %p33, %p34
    %p36 = scmp.ne.s32.totalorder %s28, %s31
    %p37 = scmp.eq.s32.totalorder %s18, 0
    %p38 = por %p36, %p37
    %p39 = scmp.ne.s32.totalorder %s28, %s31
    %p40 = scmp.eq.s32.totalorder %s23, 1
    %p41 = por %p39, %p40
    %p42 = scmp.ne.s32.totalorder %s31, %s32
    %p43 = scmp.eq.s32.totalorder %s23, 0
    %p44 = por %p42, %p43
    %p45 = scmp.ne.s32.totalorder %s31, %s32
    %p46 = scmp.eq.s32.totalorder %s24, 1
    %p47 = por %p45, %p46
    %p49 = scmp.ne.s32.totalorder %s32, %s48
    %p50 = scmp.eq.s32.totalorder %s24, 0
    %p51 = por %p49, %p50
    %s53 = sadd.s32 %s52, 1
    %p56 = scmp.eq.s32.totalorder %s18, 1
    %p57 = scmp.ne.s32.totalorder %s52, %s54
    %p58 = scmp.eq.s32.totalorder %s18, 0
    %p59 = por %p57, %p58
    %p60 = scmp.ne.s32.totalorder %s52, %s54
    %p61 = scmp.eq.s32.totalorder %s23, 1
    %p62 = por %p60, %p61
    %p63 = scmp.ne.s32.totalorder %s54, %s55
    %p64 = scmp.eq.s32.totalorder %s23, 0
    %p65 = por %p63, %p64
    %p66 = scmp.ne.s32.totalorder %s54, %s55
    %p67 = scmp.eq.s32.totalorder %s24, 1
    %p68 = por %p66, %p67
    %p70 = scmp.ne.s32.totalorder %s55, %s69
    %p71 = scmp.eq.s32.totalorder %s24, 0
    %p72 = por %p70, %p71
    %s74 = sadd.s32 %s73, 1
    %p77 = scmp.eq.s32.totalorder %s18, 1
    %p78 = scmp.ne.s32.totalorder %s73, %s75
    %p79 = scmp.eq.s32.totalorder %s18, 0
    %p80 = por %p78, %p79
    %p81 = scmp.ne.s32.totalorder %s73, %s75
    %p82 = scmp.eq.s32.totalorder %s23, 1
    %p83 = por %p81, %p82
    %p84 = scmp.ne.s32.totalorder %s75, %s76
    %p85 = scmp.eq.s32.totalorder %s23, 0
    %p86 = por %p84, %p85
    %p87 = scmp.ne.s32.totalorder %s75, %s76
    %p88 = scmp.eq.s32.totalorder %s24, 1
    %p89 = por %p87, %p88
    %p91 = scmp.ne.s32.totalorder %s76, %s90
    %p92 = scmp.eq.s32.totalorder %s24, 0
    %p93 = por %p91, %p92
    %s95 = sadd.s32 %s94, 1
    %p98 = scmp.eq.s32.totalorder %s18, 1
    %p99 = scmp.ne.s32.totalorder %s94, %s96
    %p100 = scmp.eq.s32.totalorder %s18, 0
    %p101 = por %p99, %p100
    %p102 = scmp.ne.s32.totalorder %s94, %s96
    %p103 = scmp.eq.s32.totalorder %s23, 1
    %p104 = por %p102, %p103
    %p105 = scmp.ne.s32.totalorder %s96, %s97
    %p106 = scmp.eq.s32.totalorder %s23, 0
    %p107 = por %p105, %p106
    %p108 = scmp.ne.s32.totalorder %s96, %s97
    %p109 = scmp.eq.s32.totalorder %s24, 1
    %p110 = por %p108, %p109
    %p112 = scmp.ne.s32.totalorder %s97, %s111
    %p113 = scmp.eq.s32.totalorder %s24, 0
    %p114 = por %p112, %p113
    %s116 = sadd.s32 %s115, 1
    %p119 = scmp.eq.s32.totalorder %s18, 1
    %p120 = scmp.ne.s32.totalorder %s115, %s117
    %p121 = scmp.eq.s32.totalorder %s18, 0
    %p122 = por %p120, %p121
    %p123 = scmp.ne.s32.totalorder %s115, %s117
    %p124 = scmp.eq.s32.totalorder %s23, 1
    %p125 = por %p123, %p124
    %p126 = scmp.ne.s32.totalorder %s117, %s118
    %p127 = scmp.eq.s32.totalorder %s23, 0
    %p128 = por %p126, %p127
    %p129 = scmp.ne.s32.totalorder %s117, %s118
    %p130 = scmp.eq.s32.totalorder %s24, 1
    %p131 = por %p129, %p130
    %p133 = scmp.ne.s32.totalorder %s118, %s132
    %p134 = scmp.eq.s32.totalorder %s24, 0
    %p135 = por %p133, %p134
    %s137 = sadd.s32 %s136, 1
    %p140 = scmp.eq.s32.totalorder %s18, 1
    %p141 = scmp.ne.s32.totalorder %s136, %s138
    %p142 = scmp.eq.s32.totalorder %s18, 0
    %p143 = por %p141, %p142
    %p144 = scmp.ne.s32.totalorder %s136, %s138
    %p145 = scmp.eq.s32.totalorder %s23, 1
    %p146 = por %p144, %p145
    %p147 = scmp.ne.s32.totalorder %s138, %s139
    %p148 = scmp.eq.s32.totalorder %s23, 0
    %p149 = por %p147, %p148
    %p150 = scmp.ne.s32.totalorder %s138, %s139
    %p151 = scmp.eq.s32.totalorder %s24, 1
    %p152 = por %p150, %p151
    %p154 = scmp.ne.s32.totalorder %s139, %s153
    %p155 = scmp.eq.s32.totalorder %s24, 0
    %p156 = por %p154, %p155
    %s158 = sadd.s32 %s157, 1
    %p161 = scmp.eq.s32.totalorder %s18, 1
    %p162 = scmp.ne.s32.totalorder %s157, %s159
    %p163 = scmp.eq.s32.totalorder %s18, 0
    %p164 = por %p162, %p163
    %p165 = scmp.ne.s32.totalorder %s157, %s159
    %p166 = scmp.eq.s32.totalorder %s23, 1
    %p167 = por %p165, %p166
    %p168 = scmp.ne.s32.totalorder %s159, %s160
    %p169 = scmp.eq.s32.totalorder %s23, 0
    %p170 = por %p168, %p169
    %p171 = scmp.ne.s32.totalorder %s159, %s160
    %p172 = scmp.eq.s32.totalorder %s24, 1
    %p173 = por %p171, %p172
    %p175 = scmp.ne.s32.totalorder %s160, %s174
    %p176 = scmp.eq.s32.totalorder %s24, 0
    %p177 = por %p175, %p176
    %s179 = sadd.s32 %s178, 1
    %p182 = scmp.eq.s32.totalorder %s18, 1
    %p183 = scmp.ne.s32.totalorder %s178, %s180
    %p184 = scmp.eq.s32.totalorder %s18, 0
    %p185 = por %p183, %p184
    %p186 = scmp.ne.s32.totalorder %s178, %s180
    %p187 = scmp.eq.s32.totalorder %s23, 1
    %p188 = por %p186, %p187
    %p189 = scmp.ne.s32.totalorder %s180, %s181
    %p190 = scmp.eq.s32.totalorder %s23, 0
    %p191 = por %p189, %p190
    %p192 = scmp.ne.s32.totalorder %s180, %s181
    %p193 = scmp.eq.s32.totalorder %s24, 1
    %p194 = por %p192, %p193
    %p196 = scmp.ne.s32.totalorder %s181, %s195
    %p197 = scmp.eq.s32.totalorder %s24, 0
    %p198 = por %p196, %p197
    %s200 = sadd.s32 %s199, 1
    %p203 = scmp.eq.s32.totalorder %s18, 1
    %p204 = scmp.ne.s32.totalorder %s199, %s201
    %p205 = scmp.eq.s32.totalorder %s18, 0
    %p206 = por %p204, %p205
    %p207 = scmp.ne.s32.totalorder %s199, %s201
    %p208 = scmp.eq.s32.totalorder %s23, 1
    %p209 = por %p207, %p208
    %p210 = scmp.ne.s32.totalorder %s201, %s202
    %p211 = scmp.eq.s32.totalorder %s23, 0
    %p212 = por %p210, %p211
    %p213 = scmp.ne.s32.totalorder %s201, %s202
    %p214 = scmp.eq.s32.totalorder %s24, 1
    %p215 = por %p213, %p214
    %p217 = scmp.ne.s32.totalorder %s202, %s216
    %p218 = scmp.eq.s32.totalorder %s24, 0
    %p219 = por %p217, %p218
    %s221 = sadd.s32 %s220, 1
    %p224 = scmp.eq.s32.totalorder %s18, 1
    %p225 = scmp.ne.s32.totalorder %s220, %s222
    %p226 = scmp.eq.s32.totalorder %s18, 0
    %p227 = por %p225, %p226
    %p228 = scmp.ne.s32.totalorder %s220, %s222
    %p229 = scmp.eq.s32.totalorder %s23, 1
    %p230 = por %p228, %p229
    %p231 = scmp.ne.s32.totalorder %s222, %s223
    %p232 = scmp.eq.s32.totalorder %s23, 0
    %p233 = por %p231, %p232
    %p234 = scmp.ne.s32.totalorder %s222, %s223
    %p235 = scmp.eq.s32.totalorder %s24, 1
    %p236 = por %p234, %p235
    %p238 = scmp.ne.s32.totalorder %s223, %s237
    %p239 = scmp.eq.s32.totalorder %s24, 0
    %p240 = por %p238, %p239
    %s242 = sadd.s32 %s241, 1
    %p245 = scmp.eq.s32.totalorder %s18, 1
    %p246 = scmp.ne.s32.totalorder %s241, %s243
    %p247 = scmp.eq.s32.totalorder %s18, 0
    %p248 = por %p246, %p247
    %p249 = scmp.ne.s32.totalorder %s241, %s243
    %p250 = scmp.eq.s32.totalorder %s23, 1
    %p251 = por %p249, %p250
    %p252 = scmp.ne.s32.totalorder %s243, %s244
    %p253 = scmp.eq.s32.totalorder %s23, 0
    %p254 = por %p252, %p253
    %p255 = scmp.ne.s32.totalorder %s243, %s244
    %p256 = scmp.eq.s32.totalorder %s24, 1
    %p257 = por %p255, %p256
    %p259 = scmp.ne.s32.totalorder %s244, %s258
    %p260 = scmp.eq.s32.totalorder %s24, 0
    %p261 = por %p259, %p260
    %s263 = sadd.s32 %s262, 1
    %p266 = scmp.eq.s32.totalorder %s18, 1
    %p267 = scmp.ne.s32.totalorder %s262, %s264
    %p268 = scmp.eq.s32.totalorder %s18, 0
    %p269 = por %p267, %p268
    %p270 = scmp.ne.s32.totalorder %s262, %s264
    %p271 = scmp.eq.s32.totalorder %s23, 1
    %p272 = por %p270, %p271
    %p273 = scmp.ne.s32.totalorder %s264, %s265
    %p274 = scmp.eq.s32.totalorder %s23, 0
    %p275 = por %p273, %p274
    %p276 = scmp.ne.s32.totalorder %s264, %s265
    %p277 = scmp.eq.s32.totalorder %s24, 1
    %p278 = por %p276, %p277
    %p280 = scmp.ne.s32.totalorder %s265, %s279
    %p281 = scmp.eq.s32.totalorder %s24, 0
    %p282 = por %p280, %p281
    %s283 = ssub.s32 %s18, %s25
    %p284 = scmp.eq.s32.totalorder %s283, 0
    %s286 = sadd.s32 %s285, 1
    %s287 = scalar_select %p284, %s285, %s286
    %p290 = pneg %p284
    %p291 = scmp.eq.s32.totalorder %s18, 1
    %p292 = por %p290, %p291
    %p293 = scmp.ne.s32.totalorder %s285, %s288
    %p294 = scmp.eq.s32.totalorder %s18, 0
    %p295 = por %p293, %p294
    %p296 = scmp.ne.s32.totalorder %s285, %s288
    %p297 = scmp.eq.s32.totalorder %s23, 1
    %p298 = por %p296, %p297
    %p299 = scmp.ne.s32.totalorder %s288, %s289
    %p300 = scmp.eq.s32.totalorder %s23, 0
    %p301 = por %p299, %p300
    %p302 = scmp.ne.s32.totalorder %s288, %s289
    %p303 = scmp.eq.s32.totalorder %s24, 1
    %p304 = por %p302, %p303
    %p306 = scmp.ne.s32.totalorder %s289, %s305
    %p307 = scmp.eq.s32.totalorder %s24, 0
    %p308 = por %p306, %p307
    %p309 = scmp.le.s32.totalorder 1, %s18
    %p310 = scmp.lt.s32.totalorder %s18, 3
    %p311 = pnand %p309, %p310
    %p312 = pneg %p311
    // Predicated region
    $region9: #{double_conv_cbam_forward.1} parent=5 // pred_check
      _
    $region10: #{double_conv_cbam_forward.1} parent=5 // pred_check_branch
      %314 = sbr.rel (%p311) target = $region12
    $region11: #{double_conv_cbam_forward.1} parent=5 // pred_region
      %s315 = ssub.s32 %s18, 1
      // Predicated region
      $region13: #{double_conv_cbam_forward.1} parent=11 // pred_check
        %p316 = pneg %p65
      $region14: #{double_conv_cbam_forward.1} parent=11 // pred_check_branch
        %318 = sbr.rel (%p316) target = $region16
      $region15: #{double_conv_cbam_forward.1} parent=11 // pred_region
        _
      $region16: #{double_conv_cbam_forward.1} parent=11 // pred_fallthru
        _
      // Predicated region
      $region17: #{double_conv_cbam_forward.1} parent=11 // pred_check
        %p319 = pneg %p86
      $region18: #{double_conv_cbam_forward.1} parent=11 // pred_check_branch
        %321 = sbr.rel (%p319) target = $region20
      $region19: #{double_conv_cbam_forward.1} parent=11 // pred_region
        _
      $region20: #{double_conv_cbam_forward.1} parent=11 // pred_fallthru
        _
      // Predicated region
      $region21: #{double_conv_cbam_forward.1} parent=11 // pred_check
        %p322 = pneg %p107
      $region22: #{double_conv_cbam_forward.1} parent=11 // pred_check_branch
        %324 = sbr.rel (%p322) target = $region24
      $region23: #{double_conv_cbam_forward.1} parent=11 // pred_region
        _
      $region24: #{double_conv_cbam_forward.1} parent=11 // pred_fallthru
        _
      // Predicated region
      $region25: #{double_conv_cbam_forward.1} parent=11 // pred_check
        %p325 = pneg %p128
      $region26: #{double_conv_cbam_forward.1} parent=11 // pred_check_branch
        %327 = sbr.rel (%p325) target = $region28
      $region27: #{double_conv_cbam_forward.1} parent=11 // pred_region
        _
      $region28: #{double_conv_cbam_forward.1} parent=11 // pred_fallthru
        _
      // Predicated region
      $region29: #{double_conv_cbam_forward.1} parent=11 // pred_check
        %p328 = pneg %p149
      $region30: #{double_conv_cbam_forward.1} parent=11 // pred_check_branch
        %330 = sbr.rel (%p328) target = $region32
      $region31: #{double_conv_cbam_forward.1} parent=11 // pred_region
        _
      $region32: #{double_conv_cbam_forward.1} parent=11 // pred_fallthru
        _
      // Predicated region
      $region33: #{double_conv_cbam_forward.1} parent=11 // pred_check
        %p331 = pneg %p170
      $region34: #{double_conv_cbam_forward.1} parent=11 // pred_check_branch
        %333 = sbr.rel (%p331) target = $region36
      $region35: #{double_conv_cbam_forward.1} parent=11 // pred_region
        _
      $region36: #{double_conv_cbam_forward.1} parent=11 // pred_fallthru
        _
      // Predicated region
      $region37: #{double_conv_cbam_forward.1} parent=11 // pred_check
        %p334 = pneg %p191
      $region38: #{double_conv_cbam_forward.1} parent=11 // pred_check_branch
        %336 = sbr.rel (%p334) target = $region40
      $region39: #{double_conv_cbam_forward.1} parent=11 // pred_region
        _
      $region40: #{double_conv_cbam_forward.1} parent=11 // pred_fallthru
        _
      // Predicated region
      $region41: #{double_conv_cbam_forward.1} parent=11 // pred_check
        %p337 = pneg %p212
      $region42: #{double_conv_cbam_forward.1} parent=11 // pred_check_branch
        %339 = sbr.rel (%p337) target = $region44
      $region43: #{double_conv_cbam_forward.1} parent=11 // pred_region
        _
      $region44: #{double_conv_cbam_forward.1} parent=11 // pred_fallthru
        _
      // Predicated region
      $region45: #{double_conv_cbam_forward.1} parent=11 // pred_check
        %p340 = pneg %p233
      $region46: #{double_conv_cbam_forward.1} parent=11 // pred_check_branch
        %342 = sbr.rel (%p340) target = $region48
      $region47: #{double_conv_cbam_forward.1} parent=11 // pred_region
        _
      $region48: #{double_conv_cbam_forward.1} parent=11 // pred_fallthru
        _
      // Predicated region
      $region49: #{double_conv_cbam_forward.1} parent=11 // pred_check
        %p343 = pneg %p254
      $region50: #{double_conv_cbam_forward.1} parent=11 // pred_check_branch
        %345 = sbr.rel (%p343) target = $region52
      $region51: #{double_conv_cbam_forward.1} parent=11 // pred_region
        _
      $region52: #{double_conv_cbam_forward.1} parent=11 // pred_fallthru
        _
      // Predicated region
      $region53: #{double_conv_cbam_forward.1} parent=11 // pred_check
        %p346 = pneg %p275
      $region54: #{double_conv_cbam_forward.1} parent=11 // pred_check_branch
        %348 = sbr.rel (%p346) target = $region56
      $region55: #{double_conv_cbam_forward.1} parent=11 // pred_region
        _
      $region56: #{double_conv_cbam_forward.1} parent=11 // pred_fallthru
        _
    $region12: #{double_conv_cbam_forward.1} parent=5 // pred_fallthru
      _
    %p349 = scmp.lt.s32.totalorder %s18, 2
    // Predicated region
    $region57: #{double_conv_cbam_forward.1} parent=5 // pred_check
      %p350 = pneg %p349
    $region58: #{double_conv_cbam_forward.1} parent=5 // pred_check_branch
      %352 = sbr.rel (%p350) target = $region60
    $region59: #{double_conv_cbam_forward.1} parent=5 // pred_region
      // Predicated region
      $region61: #{double_conv_cbam_forward.1} parent=59 // pred_check
        %p353 = pneg %p38
      $region62: #{double_conv_cbam_forward.1} parent=59 // pred_check_branch
        %355 = sbr.rel (%p353) target = $region64
      $region63: #{double_conv_cbam_forward.1} parent=59 // pred_region
        %p356 = scmp.lt.s32.totalorder %s18, 1
        %s357 = scalar_select %p356, %s18, 1
        %s358 = smul.addr %s357, 2
        %s359 = smul.addr %s358, 4
        %s360 = scalar_lea.vmem %s0, %s359
      $region64: #{double_conv_cbam_forward.1} parent=59 // pred_fallthru
        _
    $region60: #{double_conv_cbam_forward.1} parent=5 // pred_fallthru
      _
    %p361 = scmp.le.s32.totalorder 1, %s18
    %p362 = scmp.lt.s32.totalorder %s18, 3
    %p363 = pnand %p361, %p362
    %p364 = pneg %p363
    // Predicated region
    $region65: #{double_conv_cbam_forward.1} parent=5 // pred_check
      _
    $region66: #{double_conv_cbam_forward.1} parent=5 // pred_check_branch
      %366 = sbr.rel (%p363) target = $region68
    $region67: #{double_conv_cbam_forward.1} parent=5 // pred_region
      %s367 = ssub.s32 %s18, 1
      %p368 = scmp.lt.s32.totalorder %s23, 1
      %s369 = scalar_select %p368, %s23, 1
      %s370 = smul.addr %s369, 2
      %s371 = smul.addr %s370, 4
      %s372 = scalar_lea.vmem %s0, %s371
      %p373 = pneg %p44
      %p374 = pneg %p41
      %p375 = pneg %p65
      %p376 = pneg %p62
      %p377 = pneg %p86
      %p378 = pneg %p83
      %p379 = pneg %p107
      %p380 = pneg %p104
      %p381 = pneg %p128
      %p382 = pneg %p125
      %p383 = pneg %p149
      %p384 = pneg %p146
      %p385 = pneg %p170
      %p386 = pneg %p167
      %p387 = pneg %p191
      %p388 = pneg %p188
      %p389 = pneg %p212
      %p390 = pneg %p209
      %p391 = pneg %p233
      %p392 = pneg %p230
      %p393 = pneg %p254
      %p394 = pneg %p251
      %p395 = pneg %p275
      %p396 = pneg %p272
      %p397 = pneg %p301
      %p398 = pneg %p298
      %p399 = scmp.lt.s32.totalorder %s23, 1
      %s400 = scalar_select %p399, %s23, 1
      %s401 = smul.addr %s400, 8
      %s402 = smul.addr %s401, 8
      %s403 = scalar_lea.vmem %s12, %s402
      %p404 = scmp.lt.s32.totalorder %s23, 1
      %s405 = scalar_select %p404, %s23, 1
      %s406 = smul.addr %s405, 2
      %s407 = smul.addr %s406, 4
      %s408 = scalar_lea.vmem %s0, %s407
      %p409 = scmp.lt.s32.totalorder %s23, 1
      %s410 = scalar_select %p409, %s23, 1
      %s411 = smul.addr %s410, 8
      %s412 = smul.addr %s411, 8
      %s413 = scalar_lea.vmem %s12, %s412
      %v414 = vld [vmem:[%s1] sm:$0x3]
      %v415 = vld [vmem:[%s408] sm:$0xff]
      %v416 = vld [vmem:[%s2] sm:$0xff]
      %v417 = vld [vmem:[%s2 + $0x8] sm:$0xff]
      %v418 = vld [vmem:[%s2 + $0x10] sm:$0xff]
      %v419 = vld [vmem:[%s2 + $0x18] sm:$0xff]
      %v420 = vld [vmem:[%s3] sm:$0xff]
      %v421 = vld [vmem:[%s3 + $0x8] sm:$0xff]
      %v422 = vld [vmem:[%s3 + $0x10] sm:$0xff]
      %v423 = vld [vmem:[%s3 + $0x18] sm:$0xff]
      %v425 = vcombine.high %v415, %v415
      %426 = vrot.lane.b32.xlu0 %v415, 17
      %v427 = vpop.permute.xlu0 %426
      %428 = vrot.lane.b32.xlu0 %v425, 17
      %v429 = vpop.permute.xlu0 %428
      %vm430 = vcmask 138240
      %v431 = vsel %vm430, %v427, %v429
      %v435 = vsel %vm430, 0.0, %v427
      %v436 = vsel %vm430, %v429, 0.0
      %v437 = vadd.s32 %v414, 4294967295
      %vm438 = vcmp.ge.s32.totalorder %v437, 0
      %vm439 = vcmp.lt.s32.totalorder %v437, 16
      %vm440 = vmand %vm438, %vm439
      %v441 = vsel %vm440, 1, 0
      %v442 = vlaneseq
      %v443 = vshrl.u32 %v442, 7
      %v444 = vsub.s32 0, %v443
      %v445 = vrot.slane %v441, %v444
      %v446 = vlaneseq
      %v447 = vshrl.u32 %v446, 7
      %v448 = vsub.s32 1, %v447
      %v449 = vrot.slane %v441, %v448
      %vm450 = vcmp.eq.s32.totalorder %v445, 1
      %vm451 = vcmp.eq.s32.totalorder %v449, 1
      %v452 = vsel %vm450, %v435, 0.0
      %v453 = vsel %vm451, %v431, 0.0
      %v454 = vadd.s32 %v414, 1
      %vm455 = vcmp.ge.s32.totalorder %v454, 0
      %vm456 = vcmp.lt.s32.totalorder %v454, 16
      %vm457 = vmand %vm455, %vm456
      %v458 = vsel %vm457, 1, 0
      %v459 = vlaneseq
      %v460 = vshrl.u32 %v459, 7
      %v461 = vsub.s32 0, %v460
      %v462 = vrot.slane %v458, %v461
      %v463 = vlaneseq
      %v464 = vshrl.u32 %v463, 7
      %v465 = vsub.s32 1, %v464
      %v466 = vrot.slane %v458, %v465
      %vm467 = vcmp.eq.s32.totalorder %v462, 1
      %vm468 = vcmp.eq.s32.totalorder %v466, 1
      %471 = vrot.lane.b32.xlu0 %v435, 126
      %v472 = vpop.permute.xlu0 %471
      %473 = vrot.lane.b32.xlu0 %v431, 126
      %v474 = vpop.permute.xlu0 %473
      %475 = vrot.lane.b32.xlu0 %v436, 126
      %v476 = vpop.permute.xlu0 %475
      %vm477 = vcmask 1031168
      %v478 = vsel %vm477, %v472, %v474
      %v479 = vsel %vm477, %v474, %v476
      %v482 = vsel %vm467, %v478, 0.0
      %v483 = vsel %vm468, %v479, 0.0
      %484 = vrot.lane.b32.xlu0 %v435, 112
      %v485 = vpop.permute.xlu0 %484
      %486 = vrot.lane.b32.xlu0 %v431, 112
      %v487 = vpop.permute.xlu0 %486
      %488 = vrot.lane.b32.xlu0 %v436, 112
      %v489 = vpop.permute.xlu0 %488
      %vm490 = vcmask 916480
      %v491 = vsel %vm490, %v485, %v487
      %v492 = vsel %vm490, %v487, %v489
      %v495 = vsel %vm450, %v491, 0.0
      %v496 = vsel %vm451, %v492, 0.0
      %497 = vrot.lane.b32.xlu0 %v435, 110
      %v498 = vpop.permute.xlu0 %497
      %499 = vrot.lane.b32.xlu0 %v431, 110
      %v500 = vpop.permute.xlu0 %499
      %501 = vrot.lane.b32.xlu0 %v436, 110
      %v502 = vpop.permute.xlu0 %501
      %vm503 = vcmask 900096
      %v504 = vsel %vm503, %v498, %v500
      %v505 = vsel %vm503, %v500, %v502
      %v508 = vsel %vm467, %v504, 0.0
      %v509 = vsel %vm468, %v505, 0.0
      %510 = vrot.lane.b32.xlu0 %v435, 96
      %v511 = vpop.permute.xlu0 %510
      %512 = vrot.lane.b32.xlu0 %v431, 96
      %v513 = vpop.permute.xlu0 %512
      %514 = vrot.lane.b32.xlu0 %v436, 96
      %v515 = vpop.permute.xlu0 %514
      %vm516 = vcmask 785408
      %v517 = vsel %vm516, %v511, %v513
      %v518 = vsel %vm516, %v513, %v515
      %v521 = vsel %vm450, %v517, 0.0
      %v522 = vsel %vm451, %v518, 0.0
      %523 = vrot.lane.b32.xlu0 %v435, 94
      %v524 = vpop.permute.xlu0 %523
      %525 = vrot.lane.b32.xlu0 %v431, 94
      %v526 = vpop.permute.xlu0 %525
      %527 = vrot.lane.b32.xlu0 %v436, 94
      %v528 = vpop.permute.xlu0 %527
      %vm529 = vcmask 769024
      %v530 = vsel %vm529, %v524, %v526
      %v531 = vsel %vm529, %v526, %v528
      %v534 = vsel %vm467, %v530, 0.0
      %v535 = vsel %vm468, %v531, 0.0
      %v536 = vrot.slane %v435, 4
      %v537 = vrot.slane %v431, 4
      %v538 = vrot.slane %v436, 4
      %539 = vrot.lane.b32.xlu0 %v536, 127
      %v540 = vpop.permute.xlu0 %539
      %541 = vrot.lane.b32.xlu0 %v537, 127
      %v542 = vpop.permute.xlu0 %541
      %543 = vrot.lane.b32.xlu0 %v538, 127
      %v544 = vpop.permute.xlu0 %543
      %vm545 = vcmask 1039360
      %v546 = vsel %vm545, %v540, %v542
      %v547 = vsel %vm545, %v542, %v544
      %v552 = vrot.slane %v495, 4
      %v553 = vrot.slane %v496, 4
      %556 = vrot.lane.b32.xlu0 %v435, 111
      %v557 = vpop.permute.xlu0 %556
      %558 = vrot.lane.b32.xlu0 %v431, 111
      %v559 = vpop.permute.xlu0 %558
      %560 = vrot.lane.b32.xlu0 %v436, 111
      %v561 = vpop.permute.xlu0 %560
      %vm562 = vcmask 908288
      %v563 = vsel %vm562, %v557, %v559
      %v564 = vsel %vm562, %v559, %v561
      %v569 = vrot.slane %v508, 4
      %v570 = vrot.slane %v509, 4
      %573 = vrot.lane.b32.xlu0 %v536, 95
      %v574 = vpop.permute.xlu0 %573
      %575 = vrot.lane.b32.xlu0 %v537, 95
      %v576 = vpop.permute.xlu0 %575
      %577 = vrot.lane.b32.xlu0 %v538, 95
      %v578 = vpop.permute.xlu0 %577
      %vm579 = vcmask 777216
      %v580 = vsel %vm579, %v574, %v576
      %v581 = vsel %vm579, %v576, %v578
      %vm584 = vcmask 1043456
      %v585 = vsel %vm584, %v452, %v546
      %v586 = vsel %vm584, %v453, %v547
      %v587 = vsel %vm584, %v482, %v552
      %v588 = vsel %vm584, %v483, %v553
      %v589 = vsel %vm584, %v563, %v569
      %v590 = vsel %vm584, %v564, %v570
      %v591 = vsel %vm584, %v521, %v580
      %v592 = vsel %vm584, %v522, %v581
      %594 = vset.pattern.permute.xlu0 0
      %595 = vperm.xlu0 %594, %v420
      %v596 = vpop.permute.xlu0 %595
      %599 = vset.pattern.permute.xlu0 0
      %600 = vperm.xlu0 %599, %v421
      %v601 = vpop.permute.xlu0 %600
      %604 = vset.pattern.permute.xlu0 0
      %605 = vperm.xlu0 %604, %v422
      %v606 = vpop.permute.xlu0 %605
      %609 = vset.pattern.permute.xlu0 0
      %610 = vperm.xlu0 %609, %v423
      %v611 = vpop.permute.xlu0 %610
      %vm613 = vcmask 293888
      %v615 = vsel %vm613, %v416, 0
      %v618 = vsel %vm613, %v417, 0
      %v621 = vsel %vm613, %v418, 0
      %v624 = vsel %vm613, %v419, 0
      %v627 = vsel %vm584, %v534, 0
      %v630 = vsel %vm584, %v535, 0
      %632 = vmatprep.subr.mxu0 0.0
      %633 = vmatpush1.msra.mxu0 0.0
      %634 = vmatprep.subr.mxu0 0.0
      %635 = vmatpush1.msra.mxu0 0.0
      %636 = vmatprep.subr.mxu0 0.0
      %637 = vmatpush1.msra.mxu0 0.0
      %638 = vmatprep.subr.mxu0 0.0
      %639 = vmatpush1.msra.mxu0 0.0
      %640 = vmatprep.subr.mxu0 0.0
      %641 = vmatpush1.msra.mxu0 0.0
      %642 = vmatprep.subr.mxu0 0.0
      %643 = vmatpush1.msra.mxu0 0.0
      %644 = vmatprep.subr.mxu0 0.0
      %645 = vmatpush1.msra.mxu0 0.0
      %646 = vmatprep.subr.mxu0 0.0
      %647 = vmatpush1.msra.mxu0 0.0
      %648 = vmatprep.subr.mxu0 0.0
      %649 = vmatpush1.msra.mxu0 0.0
      %650 = vmatprep.subr.mxu0 0.0
      %651 = vmatpush1.msra.mxu0 0.0
      %652 = vmatprep.subr.mxu0 0.0
      %653 = vmatpush1.msra.mxu0 0.0
      %654 = vmatprep.subr.mxu0 %v630
      %655 = vmatpush1.msra.mxu0 %v627
      %656 = vmatprep.subr.mxu0 %v592
      %657 = vmatpush1.msra.mxu0 %v591
      %658 = vmatprep.subr.mxu0 %v590
      %659 = vmatpush1.msra.mxu0 %v589
      %660 = vmatprep.subr.mxu0 %v588
      %661 = vmatpush1.msra.mxu0 %v587
      %662 = vmatprep.subr.mxu0 %v586
      %663 = vmatpush1.msra.mxu0 %v585
      %664 = vmatprep.subr.mxu0 0.0
      %665 = vmatpush2.msra.mxu0 0.0
      %666 = vmatprep.subr.mxu0 0.0
      %667 = vmatpush2.msra.mxu0 0.0
      %668 = vmatprep.subr.mxu0 0.0
      %669 = vmatpush2.msra.mxu0 0.0
      %670 = vmatprep.subr.mxu0 0.0
      %671 = vmatpush2.msra.mxu0 0.0
      %672 = vmatprep.subr.mxu0 0.0
      %673 = vmatpush2.msra.mxu0 0.0
      %674 = vmatprep.subr.mxu0 0.0
      %675 = vmatpush2.msra.mxu0 0.0
      %676 = vmatprep.subr.mxu0 0.0
      %677 = vmatpush2.msra.mxu0 0.0
      %678 = vmatprep.subr.mxu0 0.0
      %679 = vmatpush2.msra.mxu0 0.0
      %680 = vmatprep.subr.mxu0 0.0
      %681 = vmatpush2.msra.mxu0 0.0
      %682 = vmatprep.subr.mxu0 0.0
      %683 = vmatpush2.msra.mxu0 0.0
      %684 = vmatprep.subr.mxu0 0.0
      %685 = vmatpush2.msra.mxu0 0.0
      %686 = vmatprep.subr.mxu0 0.0
      %687 = vmatpush2.msra.mxu0 0.0
      %688 = vmatprep.subr.mxu0 0.0
      %689 = vmatpush2.msra.mxu0 0.0
      %690 = vmatprep.subr.mxu0 0.0
      %691 = vmatpush2.msra.mxu0 0.0
      %692 = vmatprep.subr.mxu0 0.0
      %693 = vmatpush2.msra.mxu0 0.0
      %694 = vmatprep.subr.mxu0 0.0
      %695 = vmatpush2.msra.mxu0 0.0
      %696 = vmatprep.mubr.f32.mxu0 0.0
      %697 = vmatmul.mubr.f32.gmra.mxu0 %v615
      %v698 = vpop.f32.mrf.mxu0
      %v699 = vadd.f32 %v596, %v698
      %v700 = vpop.f32.mrf.mxu0
      %v701 = vadd.f32 %v596, %v700
      %702 = vmatprep.mubr.f32.mxu0 0.0
      %703 = vmatmul.mubr.f32.gmra.mxu0 %v618
      %v704 = vpop.f32.mrf.mxu0
      %v705 = vadd.f32 %v601, %v704
      %v706 = vpop.f32.mrf.mxu0
      %v707 = vadd.f32 %v601, %v706
      %708 = vmatprep.mubr.f32.mxu0 0.0
      %709 = vmatmul.mubr.f32.gmra.mxu0 %v621
      %v710 = vpop.f32.mrf.mxu0
      %v711 = vadd.f32 %v606, %v710
      %v712 = vpop.f32.mrf.mxu0
      %v713 = vadd.f32 %v606, %v712
      %714 = vmatprep.mubr.f32.mxu0 0.0
      %715 = vmatmul.mubr.f32.gmra.mxu0 %v624
      %v716 = vpop.f32.mrf.mxu0
      %v717 = vadd.f32 %v611, %v716
      %v718 = vpop.f32.mrf.mxu0
      %v719 = vadd.f32 %v611, %v718
      %720 = vdwg.mxu0
      %v721 = vmax.f32 %v699, 0.0
      %v722 = vmax.f32 %v701, 0.0
      %v723 = vmax.f32 %v705, 0.0
      %v724 = vmax.f32 %v707, 0.0
      %v725 = vmax.f32 %v711, 0.0
      %v726 = vmax.f32 %v713, 0.0
      %v727 = vmax.f32 %v717, 0.0
      %v728 = vmax.f32 %v719, 0.0
      %v729 = vld [vmem:[%s4] sm:$0x3]
      %v730 = vld [vmem:[%s5] sm:$0xff]
      %v731 = vld [vmem:[%s5 + $0x8] sm:$0xff]
      %v732 = vld [vmem:[%s5 + $0x10] sm:$0xff]
      %v733 = vld [vmem:[%s5 + $0x18] sm:$0xff]
      %v734 = vadd.f32 %v721, %v722
      %735 = vadd.xlane.f32.xlu0 %v734
      %v736 = vpop.xlane.xlu0 %735
      %v737 = vadd.f32 %v723, %v724
      %738 = vadd.xlane.f32.xlu0 %v737
      %v739 = vpop.xlane.xlu0 %738
      %v740 = vadd.f32 %v725, %v726
      %741 = vadd.xlane.f32.xlu0 %v740
      %v742 = vpop.xlane.xlu0 %741
      %v743 = vadd.f32 %v727, %v728
      %744 = vadd.xlane.f32.xlu0 %v743
      %v745 = vpop.xlane.xlu0 %744
      %v746 = vrcp.pop 256.0
      %v747 = vmul.f32 %v736, %v746
      %v748 = vmul.f32 %v739, %v746
      %v749 = vmul.f32 %v742, %v746
      %v750 = vmul.f32 %v745, %v746
      %v751 = vmax.f32 %v721, %v722
      %752 = vmax.xlane.f32.xlu0 %v751
      %v753 = vpop.xlane.xlu0 %752
      %v754 = vmax.f32 %v723, %v724
      %755 = vmax.xlane.f32.xlu0 %v754
      %v756 = vpop.xlane.xlu0 %755
      %v757 = vmax.f32 %v725, %v726
      %758 = vmax.xlane.f32.xlu0 %v757
      %v759 = vpop.xlane.xlu0 %758
      %v760 = vmax.f32 %v727, %v728
      %761 = vmax.xlane.f32.xlu0 %v760
      %v762 = vpop.xlane.xlu0 %761
      %vm763 = vcmask 7168
      %v764 = vsel %vm763, %v747, %v753
      %v765 = vsel %vm763, %v748, %v756
      %v766 = vsel %vm763, %v749, %v759
      %v767 = vsel %vm763, %v750, %v762
      %vm768 = vcmask 261120
      %v770 = vsel %vm768, %v729, 0
      %772 = vmatprep.subr.mxu0 0.0
      %773 = vmatpush1.msra.mxu0 0.0
      %774 = vmatprep.subr.mxu0 0.0
      %775 = vmatpush1.msra.mxu0 0.0
      %776 = vmatprep.subr.mxu0 0.0
      %777 = vmatpush1.msra.mxu0 0.0
      %778 = vmatprep.subr.mxu0 0.0
      %779 = vmatpush1.msra.mxu0 0.0
      %780 = vmatprep.subr.mxu0 0.0
      %781 = vmatpush1.msra.mxu0 0.0
      %782 = vmatprep.subr.mxu0 0.0
      %783 = vmatpush1.msra.mxu0 0.0
      %784 = vmatprep.subr.mxu0 0.0
      %785 = vmatpush1.msra.mxu0 0.0
      %786 = vmatprep.subr.mxu0 0.0
      %787 = vmatpush1.msra.mxu0 0.0
      %788 = vmatprep.subr.mxu0 0.0
      %789 = vmatpush1.msra.mxu0 0.0
      %790 = vmatprep.subr.mxu0 0.0
      %791 = vmatpush1.msra.mxu0 0.0
      %792 = vmatprep.subr.mxu0 0.0
      %793 = vmatpush1.msra.mxu0 0.0
      %794 = vmatprep.subr.mxu0 0.0
      %795 = vmatpush1.msra.mxu0 0.0
      %796 = vmatprep.subr.mxu0 0.0
      %797 = vmatpush1.msra.mxu0 %v767
      %798 = vmatprep.subr.mxu0 0.0
      %799 = vmatpush1.msra.mxu0 %v766
      %800 = vmatprep.subr.mxu0 0.0
      %801 = vmatpush1.msra.mxu0 %v765
      %802 = vmatprep.subr.mxu0 0.0
      %803 = vmatpush1.msra.mxu0 %v764
      %804 = vmatprep.subr.mxu0 0.0
      %805 = vmatpush2.msra.mxu0 0.0
      %806 = vmatprep.subr.mxu0 0.0
      %807 = vmatpush2.msra.mxu0 0.0
      %808 = vmatprep.subr.mxu0 0.0
      %809 = vmatpush2.msra.mxu0 0.0
      %810 = vmatprep.subr.mxu0 0.0
      %811 = vmatpush2.msra.mxu0 0.0
      %812 = vmatprep.subr.mxu0 0.0
      %813 = vmatpush2.msra.mxu0 0.0
      %814 = vmatprep.subr.mxu0 0.0
      %815 = vmatpush2.msra.mxu0 0.0
      %816 = vmatprep.subr.mxu0 0.0
      %817 = vmatpush2.msra.mxu0 0.0
      %818 = vmatprep.subr.mxu0 0.0
      %819 = vmatpush2.msra.mxu0 0.0
      %820 = vmatprep.subr.mxu0 0.0
      %821 = vmatpush2.msra.mxu0 0.0
      %822 = vmatprep.subr.mxu0 0.0
      %823 = vmatpush2.msra.mxu0 0.0
      %824 = vmatprep.subr.mxu0 0.0
      %825 = vmatpush2.msra.mxu0 0.0
      %826 = vmatprep.subr.mxu0 0.0
      %827 = vmatpush2.msra.mxu0 0.0
      %828 = vmatprep.subr.mxu0 0.0
      %829 = vmatpush2.msra.mxu0 0.0
      %830 = vmatprep.subr.mxu0 0.0
      %831 = vmatpush2.msra.mxu0 0.0
      %832 = vmatprep.subr.mxu0 0.0
      %833 = vmatpush2.msra.mxu0 0.0
      %834 = vmatprep.subr.mxu0 0.0
      %835 = vmatpush2.msra.mxu0 0.0
      %836 = vmatprep.mubr.f32.mxu0 0.0
      %837 = vmatmul.mubr.f32.gmra.mxu0 %v770
      %v838 = vpop.f32.mrf.mxu0
      %v839 = vadd.f32 0.0, %v838
      %v840 = vpop.f32.mrf.mxu0
      %841 = vdwg.mxu0
      %v842 = vmax.f32 %v839, 0.0
      %vm843 = vcmask 15360
      %v845 = vsel %vm843, %v730, 0
      %v848 = vsel %vm843, %v731, 0
      %v851 = vsel %vm843, %v732, 0
      %v854 = vsel %vm843, %v733, 0
      %vm856 = vcmask 1041408
      %v858 = vsel %vm856, %v842, 0
      %860 = vmatprep.subr.mxu0 0.0
      %861 = vmatpush1.msra.mxu0 0.0
      %862 = vmatprep.subr.mxu0 0.0
      %863 = vmatpush1.msra.mxu0 0.0
      %864 = vmatprep.subr.mxu0 0.0
      %865 = vmatpush1.msra.mxu0 0.0
      %866 = vmatprep.subr.mxu0 0.0
      %867 = vmatpush1.msra.mxu0 0.0
      %868 = vmatprep.subr.mxu0 0.0
      %869 = vmatpush1.msra.mxu0 0.0
      %870 = vmatprep.subr.mxu0 0.0
      %871 = vmatpush1.msra.mxu0 0.0
      %872 = vmatprep.subr.mxu0 0.0
      %873 = vmatpush1.msra.mxu0 0.0
      %874 = vmatprep.subr.mxu0 0.0
      %875 = vmatpush1.msra.mxu0 0.0
      %876 = vmatprep.subr.mxu0 0.0
      %877 = vmatpush1.msra.mxu0 0.0
      %878 = vmatprep.subr.mxu0 0.0
      %879 = vmatpush1.msra.mxu0 0.0
      %880 = vmatprep.subr.mxu0 0.0
      %881 = vmatpush1.msra.mxu0 0.0
      %882 = vmatprep.subr.mxu0 0.0
      %883 = vmatpush1.msra.mxu0 0.0
      %884 = vmatprep.subr.mxu0 0.0
      %885 = vmatpush1.msra.mxu0 0.0
      %886 = vmatprep.subr.mxu0 0.0
      %887 = vmatpush1.msra.mxu0 0.0
      %888 = vmatprep.subr.mxu0 0.0
      %889 = vmatpush1.msra.mxu0 0.0
      %890 = vmatprep.subr.mxu0 0.0
      %891 = vmatpush1.msra.mxu0 %v858
      %892 = vmatprep.subr.mxu0 0.0
      %893 = vmatpush2.msra.mxu0 0.0
      %894 = vmatprep.subr.mxu0 0.0
      %895 = vmatpush2.msra.mxu0 0.0
      %896 = vmatprep.subr.mxu0 0.0
      %897 = vmatpush2.msra.mxu0 0.0
      %898 = vmatprep.subr.mxu0 0.0
      %899 = vmatpush2.msra.mxu0 0.0
      %900 = vmatprep.subr.mxu0 0.0
      %901 = vmatpush2.msra.mxu0 0.0
      %902 = vmatprep.subr.mxu0 0.0
      %903 = vmatpush2.msra.mxu0 0.0
      %904 = vmatprep.subr.mxu0 0.0
      %905 = vmatpush2.msra.mxu0 0.0
      %906 = vmatprep.subr.mxu0 0.0
      %907 = vmatpush2.msra.mxu0 0.0
      %908 = vmatprep.subr.mxu0 0.0
      %909 = vmatpush2.msra.mxu0 0.0
      %910 = vmatprep.subr.mxu0 0.0
      %911 = vmatpush2.msra.mxu0 0.0
      %912 = vmatprep.subr.mxu0 0.0
      %913 = vmatpush2.msra.mxu0 0.0
      %914 = vmatprep.subr.mxu0 0.0
      %915 = vmatpush2.msra.mxu0 0.0
      %916 = vmatprep.subr.mxu0 0.0
      %917 = vmatpush2.msra.mxu0 0.0
      %918 = vmatprep.subr.mxu0 0.0
      %919 = vmatpush2.msra.mxu0 0.0
      %920 = vmatprep.subr.mxu0 0.0
      %921 = vmatpush2.msra.mxu0 0.0
      %922 = vmatprep.subr.mxu0 0.0
      %923 = vmatpush2.msra.mxu0 0.0
      %924 = vmatprep.mubr.f32.mxu0 0.0
      %925 = vmatmul.mubr.f32.gmra.mxu0 %v845
      %v926 = vpop.f32.mrf.mxu0
      %v927 = vadd.f32 0.0, %v926
      %v928 = vpop.f32.mrf.mxu0
      %929 = vmatprep.mubr.f32.mxu0 0.0
      %930 = vmatmul.mubr.f32.gmra.mxu0 %v848
      %v931 = vpop.f32.mrf.mxu0
      %v932 = vadd.f32 0.0, %v931
      %v933 = vpop.f32.mrf.mxu0
      %934 = vmatprep.mubr.f32.mxu0 0.0
      %935 = vmatmul.mubr.f32.gmra.mxu0 %v851
      %v936 = vpop.f32.mrf.mxu0
      %v937 = vadd.f32 0.0, %v936
      %v938 = vpop.f32.mrf.mxu0
      %939 = vmatprep.mubr.f32.mxu0 0.0
      %940 = vmatmul.mubr.f32.gmra.mxu0 %v854
      %v941 = vpop.f32.mrf.mxu0
      %v942 = vadd.f32 0.0, %v941
      %v943 = vpop.f32.mrf.mxu0
      %944 = vdwg.mxu0
      %949 = vrot.lane.b32.xlu0 %v927, 127
      %v950 = vpop.permute.xlu0 %949
      %951 = vrot.lane.b32.xlu0 %v932, 127
      %v952 = vpop.permute.xlu0 %951
      %953 = vrot.lane.b32.xlu0 %v937, 127
      %v954 = vpop.permute.xlu0 %953
      %955 = vrot.lane.b32.xlu0 %v942, 127
      %v956 = vpop.permute.xlu0 %955
      %v961 = vadd.f32 %v927, %v950
      %v962 = vadd.f32 %v932, %v952
      %v963 = vadd.f32 %v937, %v954
      %v964 = vadd.f32 %v942, %v956
      %v965 = vxor.u32 %v961, 2147483648
      %v966 = vxor.u32 %v962, 2147483648
      %v967 = vxor.u32 %v963, 2147483648
      %v968 = vxor.u32 %v964, 2147483648
      %v969 = vmul.f32 %v965, 1.442695
      %v970 = vpow.pop %v969
      %v971 = vmul.f32 %v966, 1.442695
      %v972 = vpow.pop %v971
      %v973 = vmul.f32 %v967, 1.442695
      %v974 = vpow.pop %v973
      %v975 = vmul.f32 %v968, 1.442695
      %v976 = vpow.pop %v975
      %v977 = vadd.f32 %v970, 1.0
      %v978 = vadd.f32 %v972, 1.0
      %v979 = vadd.f32 %v974, 1.0
      %v980 = vadd.f32 %v976, 1.0
      %v981 = vrcp.pop %v977
      %v982 = vmul.f32 1.0, %v981
      %v983 = vrcp.pop %v978
      %v984 = vmul.f32 1.0, %v983
      %v985 = vrcp.pop %v979
      %v986 = vmul.f32 1.0, %v985
      %v987 = vrcp.pop %v980
      %v988 = vmul.f32 1.0, %v987
      %990 = vset.pattern.permute.xlu0 0
      %991 = vperm.xlu0 %990, %v982
      %v992 = vpop.permute.xlu0 %991
      %995 = vset.pattern.permute.xlu0 0
      %996 = vperm.xlu0 %995, %v984
      %v997 = vpop.permute.xlu0 %996
      %1000 = vset.pattern.permute.xlu0 0
      %1001 = vperm.xlu0 %1000, %v986
      %v1002 = vpop.permute.xlu0 %1001
      %1005 = vset.pattern.permute.xlu0 0
      %1006 = vperm.xlu0 %1005, %v988
      %v1007 = vpop.permute.xlu0 %1006
      %v1009 = vmul.f32 %v721, %v992
      %v1010 = vmul.f32 %v722, %v992
      %v1011 = vmul.f32 %v723, %v997
      %v1012 = vmul.f32 %v724, %v997
      %v1013 = vmul.f32 %v725, %v1002
      %v1014 = vmul.f32 %v726, %v1002
      %v1015 = vmul.f32 %v727, %v1007
      %v1016 = vmul.f32 %v728, %v1007
      %v1017 = vld [vmem:[%s6] sm:$0xff]
      %v1018 = vld [vmem:[%s6 + $0x8] sm:$0xff]
      %v1019 = vld [vmem:[%s6 + $0x10] sm:$0xff]
      %v1020 = vld [vmem:[%s6 + $0x18] sm:$0xff]
      %v1021 = vld [vmem:[%s6 + $0x20] sm:$0xff]
      %v1022 = vld [vmem:[%s6 + $0x28] sm:$0xff]
      %v1023 = vld [vmem:[%s6 + $0x30] sm:$0xff]
      %v1024 = vld [vmem:[%s6 + $0x38] sm:$0xff]
      %v1025 = vld [vmem:[%s6 + $0x40] sm:$0xff]
      %v1026 = vld [vmem:[%s6 + $0x48] sm:$0xff]
      %v1027 = vld [vmem:[%s6 + $0x50] sm:$0xff]
      %v1028 = vld [vmem:[%s6 + $0x58] sm:$0xff]
      %v1029 = vld [vmem:[%s6 + $0x60] sm:$0x3]
      %v1030 = vadd.f32 %v1009, %v1011
      %v1031 = vadd.f32 %v1030, %v1013
      %v1032 = vadd.f32 %v1031, %v1015
      %v1033 = vrot.slane %v1032, 4
      %v1034 = vadd.f32 %v1032, %v1033
      %v1035 = vrot.slane %v1034, 2
      %v1036 = vadd.f32 %v1034, %v1035
      %v1037 = vrot.slane %v1036, 1
      %v1038 = vadd.f32 %v1036, %v1037
      %v1039 = vadd.f32 %v1010, %v1012
      %v1040 = vadd.f32 %v1039, %v1014
      %v1041 = vadd.f32 %v1040, %v1016
      %v1042 = vrot.slane %v1041, 4
      %v1043 = vadd.f32 %v1041, %v1042
      %v1044 = vrot.slane %v1043, 2
      %v1045 = vadd.f32 %v1043, %v1044
      %v1046 = vrot.slane %v1045, 1
      %v1047 = vadd.f32 %v1045, %v1046
      %v1048 = vrcp.pop 32.0
      %v1049 = vmul.f32 %v1038, %v1048
      %v1050 = vmul.f32 %v1047, %v1048
      %v1051 = vmax.f32 %v1009, %v1013
      %v1052 = vmax.f32 %v1011, %v1015
      %v1053 = vmax.f32 %v1051, %v1052
      %v1054 = vrot.slane %v1053, 4
      %v1055 = vmax.f32 %v1053, %v1054
      %v1056 = vrot.slane %v1055, 2
      %v1057 = vmax.f32 %v1055, %v1056
      %v1058 = vrot.slane %v1057, 1
      %v1059 = vmax.f32 %v1057, %v1058
      %v1060 = vmax.f32 %v1010, %v1014
      %v1061 = vmax.f32 %v1012, %v1016
      %v1062 = vmax.f32 %v1060, %v1061
      %v1063 = vrot.slane %v1062, 4
      %v1064 = vmax.f32 %v1062, %v1063
      %v1065 = vrot.slane %v1064, 2
      %v1066 = vmax.f32 %v1064, %v1065
      %v1067 = vrot.slane %v1066, 1
      %v1068 = vmax.f32 %v1066, %v1067
      %vm1069 = vcmask 1040384
      %v1070 = vsel %vm1069, %v1049, %v1059
      %v1071 = vsel %vm1069, %v1050, %v1068
      %1074 = vrot.lane.b32.xlu0 %v1070, 51
      %v1075 = vpop.permute.xlu0 %1074
      %1076 = vrot.lane.b32.xlu0 %v1071, 51
      %v1077 = vpop.permute.xlu0 %1076
      %vm1078 = vcmask 416768
      %v1079 = vsel %vm1078, %v1075, %v1077
      %v1083 = vsel %vm1078, 0.0, %v1075
      %v1084 = vsel %vm1078, %v1077, 0.0
      %v1085 = vadd.s32 %v414, 4294967293
      %vm1086 = vcmp.ge.s32.totalorder %v1085, 0
      %vm1087 = vcmp.lt.s32.totalorder %v1085, 16
      %vm1088 = vmand %vm1086, %vm1087
      %v1089 = vsel %vm1088, 1, 0
      %v1090 = vlaneseq
      %v1091 = vshrl.u32 %v1090, 7
      %v1092 = vsub.s32 0, %v1091
      %v1093 = vrot.slane %v1089, %v1092
      %v1094 = vlaneseq
      %v1095 = vshrl.u32 %v1094, 7
      %v1096 = vsub.s32 1, %v1095
      %v1097 = vrot.slane %v1089, %v1096
      %vm1098 = vcmp.eq.s32.totalorder %v1093, 1
      %vm1099 = vcmp.eq.s32.totalorder %v1097, 1
      %v1100 = vsel %vm1098, %v1083, 0.0
      %v1101 = vsel %vm1099, %v1079, 0.0
      %v1102 = vadd.s32 %v414, 4294967294
      %vm1103 = vcmp.ge.s32.totalorder %v1102, 0
      %vm1104 = vcmp.lt.s32.totalorder %v1102, 16
      %vm1105 = vmand %vm1103, %vm1104
      %v1106 = vsel %vm1105, 1, 0
      %v1107 = vlaneseq
      %v1108 = vshrl.u32 %v1107, 7
      %v1109 = vsub.s32 0, %v1108
      %v1110 = vrot.slane %v1106, %v1109
      %v1111 = vlaneseq
      %v1112 = vshrl.u32 %v1111, 7
      %v1113 = vsub.s32 1, %v1112
      %v1114 = vrot.slane %v1106, %v1113
      %vm1115 = vcmp.eq.s32.totalorder %v1110, 1
      %vm1116 = vcmp.eq.s32.totalorder %v1114, 1
      %1119 = vrot.lane.b32.xlu0 %v1083, 127
      %v1120 = vpop.permute.xlu0 %1119
      %1121 = vrot.lane.b32.xlu0 %v1079, 127
      %v1122 = vpop.permute.xlu0 %1121
      %1123 = vrot.lane.b32.xlu0 %v1084, 127
      %v1124 = vpop.permute.xlu0 %1123
      %v1125 = vsel %vm545, %v1120, %v1122
      %v1126 = vsel %vm545, %v1122, %v1124
      %v1129 = vsel %vm1115, %v1125, 0.0
      %v1130 = vsel %vm1116, %v1126, 0.0
      %1131 = vrot.lane.b32.xlu0 %v1083, 126
      %v1132 = vpop.permute.xlu0 %1131
      %1133 = vrot.lane.b32.xlu0 %v1079, 126
      %v1134 = vpop.permute.xlu0 %1133
      %1135 = vrot.lane.b32.xlu0 %v1084, 126
      %v1136 = vpop.permute.xlu0 %1135
      %v1137 = vsel %vm477, %v1132, %v1134
      %v1138 = vsel %vm477, %v1134, %v1136
      %v1141 = vsel %vm450, %v1137, 0.0
      %v1142 = vsel %vm451, %v1138, 0.0
      %1143 = vrot.lane.b32.xlu0 %v1083, 124
      %v1144 = vpop.permute.xlu0 %1143
      %1145 = vrot.lane.b32.xlu0 %v1079, 124
      %v1146 = vpop.permute.xlu0 %1145
      %1147 = vrot.lane.b32.xlu0 %v1084, 124
      %v1148 = vpop.permute.xlu0 %1147
      %vm1149 = vcmask 1014784
      %v1150 = vsel %vm1149, %v1144, %v1146
      %v1151 = vsel %vm1149, %v1146, %v1148
      %v1154 = vsel %vm467, %v1150, 0.0
      %v1155 = vsel %vm468, %v1151, 0.0
      %v1156 = vadd.s32 %v414, 2
      %vm1157 = vcmp.ge.s32.totalorder %v1156, 0
      %vm1158 = vcmp.lt.s32.totalorder %v1156, 16
      %vm1159 = vmand %vm1157, %vm1158
      %v1160 = vsel %vm1159, 1, 0
      %v1161 = vlaneseq
      %v1162 = vshrl.u32 %v1161, 7
      %v1163 = vsub.s32 0, %v1162
      %v1164 = vrot.slane %v1160, %v1163
      %v1165 = vlaneseq
      %v1166 = vshrl.u32 %v1165, 7
      %v1167 = vsub.s32 1, %v1166
      %v1168 = vrot.slane %v1160, %v1167
      %vm1169 = vcmp.eq.s32.totalorder %v1164, 1
      %vm1170 = vcmp.eq.s32.totalorder %v1168, 1
      %1171 = vrot.lane.b32.xlu0 %v1083, 123
      %v1172 = vpop.permute.xlu0 %1171
      %1173 = vrot.lane.b32.xlu0 %v1079, 123
      %v1174 = vpop.permute.xlu0 %1173
      %1175 = vrot.lane.b32.xlu0 %v1084, 123
      %v1176 = vpop.permute.xlu0 %1175
      %vm1177 = vcmask 1006592
      %v1178 = vsel %vm1177, %v1172, %v1174
      %v1179 = vsel %vm1177, %v1174, %v1176
      %v1182 = vsel %vm1169, %v1178, 0.0
      %v1183 = vsel %vm1170, %v1179, 0.0
      %v1184 = vadd.s32 %v414, 3
      %vm1185 = vcmp.ge.s32.totalorder %v1184, 0
      %vm1186 = vcmp.lt.s32.totalorder %v1184, 16
      %vm1187 = vmand %vm1185, %vm1186
      %v1188 = vsel %vm1187, 1, 0
      %v1189 = vlaneseq
      %v1190 = vshrl.u32 %v1189, 7
      %v1191 = vsub.s32 0, %v1190
      %v1192 = vrot.slane %v1188, %v1191
      %v1193 = vlaneseq
      %v1194 = vshrl.u32 %v1193, 7
      %v1195 = vsub.s32 1, %v1194
      %v1196 = vrot.slane %v1188, %v1195
      %vm1197 = vcmp.eq.s32.totalorder %v1192, 1
      %vm1198 = vcmp.eq.s32.totalorder %v1196, 1
      %1199 = vrot.lane.b32.xlu0 %v1083, 122
      %v1200 = vpop.permute.xlu0 %1199
      %1201 = vrot.lane.b32.xlu0 %v1079, 122
      %v1202 = vpop.permute.xlu0 %1201
      %1203 = vrot.lane.b32.xlu0 %v1084, 122
      %v1204 = vpop.permute.xlu0 %1203
      %vm1205 = vcmask 998400
      %v1206 = vsel %vm1205, %v1200, %v1202
      %v1207 = vsel %vm1205, %v1202, %v1204
      %v1210 = vsel %vm1197, %v1206, 0.0
      %v1211 = vsel %vm1198, %v1207, 0.0
      %1212 = vrot.lane.b32.xlu0 %v1083, 112
      %v1213 = vpop.permute.xlu0 %1212
      %1214 = vrot.lane.b32.xlu0 %v1079, 112
      %v1215 = vpop.permute.xlu0 %1214
      %1216 = vrot.lane.b32.xlu0 %v1084, 112
      %v1217 = vpop.permute.xlu0 %1216
      %v1218 = vsel %vm490, %v1213, %v1215
      %v1219 = vsel %vm490, %v1215, %v1217
      %v1222 = vsel %vm1098, %v1218, 0.0
      %v1223 = vsel %vm1099, %v1219, 0.0
      %1224 = vrot.lane.b32.xlu0 %v1083, 111
      %v1225 = vpop.permute.xlu0 %1224
      %1226 = vrot.lane.b32.xlu0 %v1079, 111
      %v1227 = vpop.permute.xlu0 %1226
      %1228 = vrot.lane.b32.xlu0 %v1084, 111
      %v1229 = vpop.permute.xlu0 %1228
      %v1230 = vsel %vm562, %v1225, %v1227
      %v1231 = vsel %vm562, %v1227, %v1229
      %v1234 = vsel %vm1115, %v1230, 0.0
      %v1235 = vsel %vm1116, %v1231, 0.0
      %1236 = vrot.lane.b32.xlu0 %v1083, 110
      %v1237 = vpop.permute.xlu0 %1236
      %1238 = vrot.lane.b32.xlu0 %v1079, 110
      %v1239 = vpop.permute.xlu0 %1238
      %1240 = vrot.lane.b32.xlu0 %v1084, 110
      %v1241 = vpop.permute.xlu0 %1240
      %v1242 = vsel %vm503, %v1237, %v1239
      %v1243 = vsel %vm503, %v1239, %v1241
      %v1246 = vsel %vm450, %v1242, 0.0
      %v1247 = vsel %vm451, %v1243, 0.0
      %1248 = vrot.lane.b32.xlu0 %v1083, 108
      %v1249 = vpop.permute.xlu0 %1248
      %1250 = vrot.lane.b32.xlu0 %v1079, 108
      %v1251 = vpop.permute.xlu0 %1250
      %1252 = vrot.lane.b32.xlu0 %v1084, 108
      %v1253 = vpop.permute.xlu0 %1252
      %vm1254 = vcmask 883712
      %v1255 = vsel %vm1254, %v1249, %v1251
      %v1256 = vsel %vm1254, %v1251, %v1253
      %v1259 = vsel %vm467, %v1255, 0.0
      %v1260 = vsel %vm468, %v1256, 0.0
      %1261 = vrot.lane.b32.xlu0 %v1083, 107
      %v1262 = vpop.permute.xlu0 %1261
      %1263 = vrot.lane.b32.xlu0 %v1079, 107
      %v1264 = vpop.permute.xlu0 %1263
      %1265 = vrot.lane.b32.xlu0 %v1084, 107
      %v1266 = vpop.permute.xlu0 %1265
      %vm1267 = vcmask 875520
      %v1268 = vsel %vm1267, %v1262, %v1264
      %v1269 = vsel %vm1267, %v1264, %v1266
      %v1272 = vsel %vm1169, %v1268, 0.0
      %v1273 = vsel %vm1170, %v1269, 0.0
      %1274 = vrot.lane.b32.xlu0 %v1083, 106
      %v1275 = vpop.permute.xlu0 %1274
      %1276 = vrot.lane.b32.xlu0 %v1079, 106
      %v1277 = vpop.permute.xlu0 %1276
      %1278 = vrot.lane.b32.xlu0 %v1084, 106
      %v1279 = vpop.permute.xlu0 %1278
      %vm1280 = vcmask 867328
      %v1281 = vsel %vm1280, %v1275, %v1277
      %v1282 = vsel %vm1280, %v1277, %v1279
      %v1285 = vsel %vm1197, %v1281, 0.0
      %v1286 = vsel %vm1198, %v1282, 0.0
      %1287 = vrot.lane.b32.xlu0 %v1083, 96
      %v1288 = vpop.permute.xlu0 %1287
      %1289 = vrot.lane.b32.xlu0 %v1079, 96
      %v1290 = vpop.permute.xlu0 %1289
      %1291 = vrot.lane.b32.xlu0 %v1084, 96
      %v1292 = vpop.permute.xlu0 %1291
      %v1293 = vsel %vm516, %v1288, %v1290
      %v1294 = vsel %vm516, %v1290, %v1292
      %v1297 = vsel %vm1098, %v1293, 0.0
      %v1298 = vsel %vm1099, %v1294, 0.0
      %1299 = vrot.lane.b32.xlu0 %v1083, 95
      %v1300 = vpop.permute.xlu0 %1299
      %1301 = vrot.lane.b32.xlu0 %v1079, 95
      %v1302 = vpop.permute.xlu0 %1301
      %1303 = vrot.lane.b32.xlu0 %v1084, 95
      %v1304 = vpop.permute.xlu0 %1303
      %v1305 = vsel %vm579, %v1300, %v1302
      %v1306 = vsel %vm579, %v1302, %v1304
      %v1309 = vsel %vm1115, %v1305, 0.0
      %v1310 = vsel %vm1116, %v1306, 0.0
      %1311 = vrot.lane.b32.xlu0 %v1083, 94
      %v1312 = vpop.permute.xlu0 %1311
      %1313 = vrot.lane.b32.xlu0 %v1079, 94
      %v1314 = vpop.permute.xlu0 %1313
      %1315 = vrot.lane.b32.xlu0 %v1084, 94
      %v1316 = vpop.permute.xlu0 %1315
      %v1317 = vsel %vm529, %v1312, %v1314
      %v1318 = vsel %vm529, %v1314, %v1316
      %v1321 = vsel %vm450, %v1317, 0.0
      %v1322 = vsel %vm451, %v1318, 0.0
      %1323 = vrot.lane.b32.xlu0 %v1083, 92
      %v1324 = vpop.permute.xlu0 %1323
      %1325 = vrot.lane.b32.xlu0 %v1079, 92
      %v1326 = vpop.permute.xlu0 %1325
      %1327 = vrot.lane.b32.xlu0 %v1084, 92
      %v1328 = vpop.permute.xlu0 %1327
      %vm1329 = vcmask 752640
      %v1330 = vsel %vm1329, %v1324, %v1326
      %v1331 = vsel %vm1329, %v1326, %v1328
      %v1334 = vsel %vm467, %v1330, 0.0
      %v1335 = vsel %vm468, %v1331, 0.0
      %1336 = vrot.lane.b32.xlu0 %v1083, 91
      %v1337 = vpop.permute.xlu0 %1336
      %1338 = vrot.lane.b32.xlu0 %v1079, 91
      %v1339 = vpop.permute.xlu0 %1338
      %1340 = vrot.lane.b32.xlu0 %v1084, 91
      %v1341 = vpop.permute.xlu0 %1340
      %vm1342 = vcmask 744448
      %v1343 = vsel %vm1342, %v1337, %v1339
      %v1344 = vsel %vm1342, %v1339, %v1341
      %v1347 = vsel %vm1169, %v1343, 0.0
      %v1348 = vsel %vm1170, %v1344, 0.0
      %1349 = vrot.lane.b32.xlu0 %v1083, 90
      %v1350 = vpop.permute.xlu0 %1349
      %1351 = vrot.lane.b32.xlu0 %v1079, 90
      %v1352 = vpop.permute.xlu0 %1351
      %1353 = vrot.lane.b32.xlu0 %v1084, 90
      %v1354 = vpop.permute.xlu0 %1353
      %vm1355 = vcmask 736256
      %v1356 = vsel %vm1355, %v1350, %v1352
      %v1357 = vsel %vm1355, %v1352, %v1354
      %v1360 = vsel %vm1197, %v1356, 0.0
      %v1361 = vsel %vm1198, %v1357, 0.0
      %1362 = vrot.lane.b32.xlu0 %v1083, 80
      %v1363 = vpop.permute.xlu0 %1362
      %1364 = vrot.lane.b32.xlu0 %v1079, 80
      %v1365 = vpop.permute.xlu0 %1364
      %1366 = vrot.lane.b32.xlu0 %v1084, 80
      %v1367 = vpop.permute.xlu0 %1366
      %vm1368 = vcmask 654336
      %v1369 = vsel %vm1368, %v1363, %v1365
      %v1370 = vsel %vm1368, %v1365, %v1367
      %v1373 = vsel %vm1098, %v1369, 0.0
      %v1374 = vsel %vm1099, %v1370, 0.0
      %1375 = vrot.lane.b32.xlu0 %v1083, 79
      %v1376 = vpop.permute.xlu0 %1375
      %1377 = vrot.lane.b32.xlu0 %v1079, 79
      %v1378 = vpop.permute.xlu0 %1377
      %1379 = vrot.lane.b32.xlu0 %v1084, 79
      %v1380 = vpop.permute.xlu0 %1379
      %vm1381 = vcmask 646144
      %v1382 = vsel %vm1381, %v1376, %v1378
      %v1383 = vsel %vm1381, %v1378, %v1380
      %v1386 = vsel %vm1115, %v1382, 0.0
      %v1387 = vsel %vm1116, %v1383, 0.0
      %1388 = vrot.lane.b32.xlu0 %v1083, 78
      %v1389 = vpop.permute.xlu0 %1388
      %1390 = vrot.lane.b32.xlu0 %v1079, 78
      %v1391 = vpop.permute.xlu0 %1390
      %1392 = vrot.lane.b32.xlu0 %v1084, 78
      %v1393 = vpop.permute.xlu0 %1392
      %vm1394 = vcmask 637952
      %v1395 = vsel %vm1394, %v1389, %v1391
      %v1396 = vsel %vm1394, %v1391, %v1393
      %v1399 = vsel %vm450, %v1395, 0.0
      %v1400 = vsel %vm451, %v1396, 0.0
      %1401 = vrot.lane.b32.xlu0 %v1083, 76
      %v1402 = vpop.permute.xlu0 %1401
      %1403 = vrot.lane.b32.xlu0 %v1079, 76
      %v1404 = vpop.permute.xlu0 %1403
      %1405 = vrot.lane.b32.xlu0 %v1084, 76
      %v1406 = vpop.permute.xlu0 %1405
      %vm1407 = vcmask 621568
      %v1408 = vsel %vm1407, %v1402, %v1404
      %v1409 = vsel %vm1407, %v1404, %v1406
      %v1412 = vsel %vm467, %v1408, 0.0
      %v1413 = vsel %vm468, %v1409, 0.0
      %1414 = vrot.lane.b32.xlu0 %v1083, 75
      %v1415 = vpop.permute.xlu0 %1414
      %1416 = vrot.lane.b32.xlu0 %v1079, 75
      %v1417 = vpop.permute.xlu0 %1416
      %1418 = vrot.lane.b32.xlu0 %v1084, 75
      %v1419 = vpop.permute.xlu0 %1418
      %vm1420 = vcmask 613376
      %v1421 = vsel %vm1420, %v1415, %v1417
      %v1422 = vsel %vm1420, %v1417, %v1419
      %v1425 = vsel %vm1169, %v1421, 0.0
      %v1426 = vsel %vm1170, %v1422, 0.0
      %1427 = vrot.lane.b32.xlu0 %v1083, 74
      %v1428 = vpop.permute.xlu0 %1427
      %1429 = vrot.lane.b32.xlu0 %v1079, 74
      %v1430 = vpop.permute.xlu0 %1429
      %1431 = vrot.lane.b32.xlu0 %v1084, 74
      %v1432 = vpop.permute.xlu0 %1431
      %vm1433 = vcmask 605184
      %v1434 = vsel %vm1433, %v1428, %v1430
      %v1435 = vsel %vm1433, %v1430, %v1432
      %v1438 = vsel %vm1197, %v1434, 0.0
      %v1439 = vsel %vm1198, %v1435, 0.0
      %1440 = vrot.lane.b32.xlu0 %v1083, 64
      %v1441 = vpop.permute.xlu0 %1440
      %1442 = vrot.lane.b32.xlu0 %v1079, 64
      %v1443 = vpop.permute.xlu0 %1442
      %1444 = vrot.lane.b32.xlu0 %v1084, 64
      %v1445 = vpop.permute.xlu0 %1444
      %vm1446 = vcmask 523264
      %v1447 = vsel %vm1446, %v1441, %v1443
      %v1448 = vsel %vm1446, %v1443, %v1445
      %v1451 = vsel %vm1098, %v1447, 0.0
      %v1452 = vsel %vm1099, %v1448, 0.0
      %1453 = vrot.lane.b32.xlu0 %v1083, 63
      %v1454 = vpop.permute.xlu0 %1453
      %1455 = vrot.lane.b32.xlu0 %v1079, 63
      %v1456 = vpop.permute.xlu0 %1455
      %1457 = vrot.lane.b32.xlu0 %v1084, 63
      %v1458 = vpop.permute.xlu0 %1457
      %vm1459 = vcmask 515072
      %v1460 = vsel %vm1459, %v1454, %v1456
      %v1461 = vsel %vm1459, %v1456, %v1458
      %v1464 = vsel %vm1115, %v1460, 0.0
      %v1465 = vsel %vm1116, %v1461, 0.0
      %1466 = vrot.lane.b32.xlu0 %v1083, 62
      %v1467 = vpop.permute.xlu0 %1466
      %1468 = vrot.lane.b32.xlu0 %v1079, 62
      %v1469 = vpop.permute.xlu0 %1468
      %1470 = vrot.lane.b32.xlu0 %v1084, 62
      %v1471 = vpop.permute.xlu0 %1470
      %vm1472 = vcmask 506880
      %v1473 = vsel %vm1472, %v1467, %v1469
      %v1474 = vsel %vm1472, %v1469, %v1471
      %v1477 = vsel %vm450, %v1473, 0.0
      %v1478 = vsel %vm451, %v1474, 0.0
      %1479 = vrot.lane.b32.xlu0 %v1083, 60
      %v1480 = vpop.permute.xlu0 %1479
      %1481 = vrot.lane.b32.xlu0 %v1079, 60
      %v1482 = vpop.permute.xlu0 %1481
      %1483 = vrot.lane.b32.xlu0 %v1084, 60
      %v1484 = vpop.permute.xlu0 %1483
      %vm1485 = vcmask 490496
      %v1486 = vsel %vm1485, %v1480, %v1482
      %v1487 = vsel %vm1485, %v1482, %v1484
      %v1490 = vsel %vm467, %v1486, 0.0
      %v1491 = vsel %vm468, %v1487, 0.0
      %1492 = vrot.lane.b32.xlu0 %v1083, 59
      %v1493 = vpop.permute.xlu0 %1492
      %1494 = vrot.lane.b32.xlu0 %v1079, 59
      %v1495 = vpop.permute.xlu0 %1494
      %1496 = vrot.lane.b32.xlu0 %v1084, 59
      %v1497 = vpop.permute.xlu0 %1496
      %vm1498 = vcmask 482304
      %v1499 = vsel %vm1498, %v1493, %v1495
      %v1500 = vsel %vm1498, %v1495, %v1497
      %v1503 = vsel %vm1169, %v1499, 0.0
      %v1504 = vsel %vm1170, %v1500, 0.0
      %1505 = vrot.lane.b32.xlu0 %v1083, 58
      %v1506 = vpop.permute.xlu0 %1505
      %1507 = vrot.lane.b32.xlu0 %v1079, 58
      %v1508 = vpop.permute.xlu0 %1507
      %1509 = vrot.lane.b32.xlu0 %v1084, 58
      %v1510 = vpop.permute.xlu0 %1509
      %vm1511 = vcmask 474112
      %v1512 = vsel %vm1511, %v1506, %v1508
      %v1513 = vsel %vm1511, %v1508, %v1510
      %v1516 = vsel %vm1197, %v1512, 0.0
      %v1517 = vsel %vm1198, %v1513, 0.0
      %1518 = vrot.lane.b32.xlu0 %v1083, 48
      %v1519 = vpop.permute.xlu0 %1518
      %1520 = vrot.lane.b32.xlu0 %v1079, 48
      %v1521 = vpop.permute.xlu0 %1520
      %1522 = vrot.lane.b32.xlu0 %v1084, 48
      %v1523 = vpop.permute.xlu0 %1522
      %vm1524 = vcmask 392192
      %v1525 = vsel %vm1524, %v1519, %v1521
      %v1526 = vsel %vm1524, %v1521, %v1523
      %v1529 = vsel %vm1098, %v1525, 0.0
      %v1530 = vsel %vm1099, %v1526, 0.0
      %1531 = vrot.lane.b32.xlu0 %v1083, 47
      %v1532 = vpop.permute.xlu0 %1531
      %1533 = vrot.lane.b32.xlu0 %v1079, 47
      %v1534 = vpop.permute.xlu0 %1533
      %1535 = vrot.lane.b32.xlu0 %v1084, 47
      %v1536 = vpop.permute.xlu0 %1535
      %vm1537 = vcmask 384000
      %v1538 = vsel %vm1537, %v1532, %v1534
      %v1539 = vsel %vm1537, %v1534, %v1536
      %v1542 = vsel %vm1115, %v1538, 0.0
      %v1543 = vsel %vm1116, %v1539, 0.0
      %1544 = vrot.lane.b32.xlu0 %v1083, 46
      %v1545 = vpop.permute.xlu0 %1544
      %1546 = vrot.lane.b32.xlu0 %v1079, 46
      %v1547 = vpop.permute.xlu0 %1546
      %1548 = vrot.lane.b32.xlu0 %v1084, 46
      %v1549 = vpop.permute.xlu0 %1548
      %vm1550 = vcmask 375808
      %v1551 = vsel %vm1550, %v1545, %v1547
      %v1552 = vsel %vm1550, %v1547, %v1549
      %v1555 = vsel %vm450, %v1551, 0.0
      %v1556 = vsel %vm451, %v1552, 0.0
      %1557 = vrot.lane.b32.xlu0 %v1083, 44
      %v1558 = vpop.permute.xlu0 %1557
      %1559 = vrot.lane.b32.xlu0 %v1079, 44
      %v1560 = vpop.permute.xlu0 %1559
      %1561 = vrot.lane.b32.xlu0 %v1084, 44
      %v1562 = vpop.permute.xlu0 %1561
      %vm1563 = vcmask 359424
      %v1564 = vsel %vm1563, %v1558, %v1560
      %v1565 = vsel %vm1563, %v1560, %v1562
      %v1568 = vsel %vm467, %v1564, 0.0
      %v1569 = vsel %vm468, %v1565, 0.0
      %1570 = vrot.lane.b32.xlu0 %v1083, 43
      %v1571 = vpop.permute.xlu0 %1570
      %1572 = vrot.lane.b32.xlu0 %v1079, 43
      %v1573 = vpop.permute.xlu0 %1572
      %1574 = vrot.lane.b32.xlu0 %v1084, 43
      %v1575 = vpop.permute.xlu0 %1574
      %vm1576 = vcmask 351232
      %v1577 = vsel %vm1576, %v1571, %v1573
      %v1578 = vsel %vm1576, %v1573, %v1575
      %v1581 = vsel %vm1169, %v1577, 0.0
      %v1582 = vsel %vm1170, %v1578, 0.0
      %1583 = vrot.lane.b32.xlu0 %v1083, 42
      %v1584 = vpop.permute.xlu0 %1583
      %1585 = vrot.lane.b32.xlu0 %v1079, 42
      %v1586 = vpop.permute.xlu0 %1585
      %1587 = vrot.lane.b32.xlu0 %v1084, 42
      %v1588 = vpop.permute.xlu0 %1587
      %vm1589 = vcmask 343040
      %v1590 = vsel %vm1589, %v1584, %v1586
      %v1591 = vsel %vm1589, %v1586, %v1588
      %v1594 = vsel %vm1197, %v1590, 0.0
      %v1595 = vsel %vm1198, %v1591, 0.0
      %1596 = vrot.lane.b32.xlu0 %v1083, 32
      %v1597 = vpop.permute.xlu0 %1596
      %1598 = vrot.lane.b32.xlu0 %v1079, 32
      %v1599 = vpop.permute.xlu0 %1598
      %1600 = vrot.lane.b32.xlu0 %v1084, 32
      %v1601 = vpop.permute.xlu0 %1600
      %v1602 = vsel %vm768, %v1597, %v1599
      %v1603 = vsel %vm768, %v1599, %v1601
      %v1606 = vsel %vm1098, %v1602, 0.0
      %v1607 = vsel %vm1099, %v1603, 0.0
      %1608 = vrot.lane.b32.xlu0 %v1083, 31
      %v1609 = vpop.permute.xlu0 %1608
      %1610 = vrot.lane.b32.xlu0 %v1079, 31
      %v1611 = vpop.permute.xlu0 %1610
      %1612 = vrot.lane.b32.xlu0 %v1084, 31
      %v1613 = vpop.permute.xlu0 %1612
      %vm1614 = vcmask 252928
      %v1615 = vsel %vm1614, %v1609, %v1611
      %v1616 = vsel %vm1614, %v1611, %v1613
      %v1619 = vsel %vm1115, %v1615, 0.0
      %v1620 = vsel %vm1116, %v1616, 0.0
      %1621 = vrot.lane.b32.xlu0 %v1083, 30
      %v1622 = vpop.permute.xlu0 %1621
      %1623 = vrot.lane.b32.xlu0 %v1079, 30
      %v1624 = vpop.permute.xlu0 %1623
      %1625 = vrot.lane.b32.xlu0 %v1084, 30
      %v1626 = vpop.permute.xlu0 %1625
      %vm1627 = vcmask 244736
      %v1628 = vsel %vm1627, %v1622, %v1624
      %v1629 = vsel %vm1627, %v1624, %v1626
      %v1632 = vsel %vm450, %v1628, 0.0
      %v1633 = vsel %vm451, %v1629, 0.0
      %1634 = vrot.lane.b32.xlu0 %v1083, 28
      %v1635 = vpop.permute.xlu0 %1634
      %1636 = vrot.lane.b32.xlu0 %v1079, 28
      %v1637 = vpop.permute.xlu0 %1636
      %1638 = vrot.lane.b32.xlu0 %v1084, 28
      %v1639 = vpop.permute.xlu0 %1638
      %vm1640 = vcmask 228352
      %v1641 = vsel %vm1640, %v1635, %v1637
      %v1642 = vsel %vm1640, %v1637, %v1639
      %v1645 = vsel %vm467, %v1641, 0.0
      %v1646 = vsel %vm468, %v1642, 0.0
      %1647 = vrot.lane.b32.xlu0 %v1083, 27
      %v1648 = vpop.permute.xlu0 %1647
      %1649 = vrot.lane.b32.xlu0 %v1079, 27
      %v1650 = vpop.permute.xlu0 %1649
      %1651 = vrot.lane.b32.xlu0 %v1084, 27
      %v1652 = vpop.permute.xlu0 %1651
      %vm1653 = vcmask 220160
      %v1654 = vsel %vm1653, %v1648, %v1650
      %v1655 = vsel %vm1653, %v1650, %v1652
      %v1658 = vsel %vm1169, %v1654, 0.0
      %v1659 = vsel %vm1170, %v1655, 0.0
      %1660 = vrot.lane.b32.xlu0 %v1083, 26
      %v1661 = vpop.permute.xlu0 %1660
      %1662 = vrot.lane.b32.xlu0 %v1079, 26
      %v1663 = vpop.permute.xlu0 %1662
      %1664 = vrot.lane.b32.xlu0 %v1084, 26
      %v1665 = vpop.permute.xlu0 %1664
      %vm1666 = vcmask 211968
      %v1667 = vsel %vm1666, %v1661, %v1663
      %v1668 = vsel %vm1666, %v1663, %v1665
      %v1671 = vsel %vm1197, %v1667, 0.0
      %v1672 = vsel %vm1198, %v1668, 0.0
      %v1675 = vrot.slane %v1129, 6
      %v1676 = vrot.slane %v1130, 6
      %v1681 = vrot.slane %v1141, 4
      %v1682 = vrot.slane %v1142, 4
      %v1685 = vrot.slane %v1083, 2
      %v1686 = vrot.slane %v1079, 2
      %v1687 = vrot.slane %v1084, 2
      %1688 = vrot.lane.b32.xlu0 %v1685, 125
      %v1689 = vpop.permute.xlu0 %1688
      %1690 = vrot.lane.b32.xlu0 %v1686, 125
      %v1691 = vpop.permute.xlu0 %1690
      %1692 = vrot.lane.b32.xlu0 %v1687, 125
      %v1693 = vpop.permute.xlu0 %1692
      %vm1694 = vcmask 1022976
      %v1695 = vsel %vm1694, %v1689, %v1691
      %v1696 = vsel %vm1694, %v1691, %v1693
      %v1701 = vrot.slane %v1182, 6
      %v1702 = vrot.slane %v1183, 6
      %v1707 = vrot.slane %v1210, 4
      %v1708 = vrot.slane %v1211, 4
      %v1713 = vrot.slane %v1222, 2
      %v1714 = vrot.slane %v1223, 2
      %v1719 = vrot.slane %v1246, 6
      %v1720 = vrot.slane %v1247, 6
      %v1723 = vrot.slane %v1083, 4
      %v1724 = vrot.slane %v1079, 4
      %v1725 = vrot.slane %v1084, 4
      %1726 = vrot.lane.b32.xlu0 %v1723, 109
      %v1727 = vpop.permute.xlu0 %1726
      %1728 = vrot.lane.b32.xlu0 %v1724, 109
      %v1729 = vpop.permute.xlu0 %1728
      %1730 = vrot.lane.b32.xlu0 %v1725, 109
      %v1731 = vpop.permute.xlu0 %1730
      %vm1732 = vcmask 891904
      %v1733 = vsel %vm1732, %v1727, %v1729
      %v1734 = vsel %vm1732, %v1729, %v1731
      %v1739 = vrot.slane %v1259, 2
      %v1740 = vrot.slane %v1260, 2
      %v1745 = vrot.slane %v1285, 6
      %v1746 = vrot.slane %v1286, 6
      %v1751 = vrot.slane %v1297, 4
      %v1752 = vrot.slane %v1298, 4
      %v1757 = vrot.slane %v1309, 2
      %v1758 = vrot.slane %v1310, 2
      %v1761 = vsel %vm856, %v1100, %v1675
      %v1762 = vsel %vm856, %v1101, %v1676
      %v1763 = vsel %vm584, %v1761, %v1681
      %v1764 = vsel %vm584, %v1762, %v1682
      %vm1765 = vcmask 1045504
      %v1766 = vsel %vm1765, %v1763, %v1695
      %v1767 = vsel %vm1765, %v1764, %v1696
      %v1768 = vsel %vm856, %v1154, %v1701
      %v1769 = vsel %vm856, %v1155, %v1702
      %v1770 = vsel %vm584, %v1768, %v1707
      %v1771 = vsel %vm584, %v1769, %v1708
      %v1772 = vsel %vm1765, %v1770, %v1713
      %v1773 = vsel %vm1765, %v1771, %v1714
      %v1774 = vsel %vm856, %v1234, %v1719
      %v1775 = vsel %vm856, %v1235, %v1720
      %v1776 = vsel %vm584, %v1774, %v1733
      %v1777 = vsel %vm584, %v1775, %v1734
      %v1778 = vsel %vm1765, %v1776, %v1739
      %v1779 = vsel %vm1765, %v1777, %v1740
      %v1780 = vsel %vm856, %v1272, %v1745
      %v1781 = vsel %vm856, %v1273, %v1746
      %v1782 = vsel %vm584, %v1780, %v1751
      %v1783 = vsel %vm584, %v1781, %v1752
      %v1784 = vsel %vm1765, %v1782, %v1757
      %v1785 = vsel %vm1765, %v1783, %v1758
      %v1786 = vrot.slane %v1083, 6
      %v1787 = vrot.slane %v1079, 6
      %v1788 = vrot.slane %v1084, 6
      %1789 = vrot.lane.b32.xlu0 %v1786, 93
      %v1790 = vpop.permute.xlu0 %1789
      %1791 = vrot.lane.b32.xlu0 %v1787, 93
      %v1792 = vpop.permute.xlu0 %1791
      %1793 = vrot.lane.b32.xlu0 %v1788, 93
      %v1794 = vpop.permute.xlu0 %1793
      %vm1795 = vcmask 760832
      %v1796 = vsel %vm1795, %v1790, %v1792
      %v1797 = vsel %vm1795, %v1792, %v1794
      %v1802 = vrot.slane %v1334, 4
      %v1803 = vrot.slane %v1335, 4
      %v1808 = vrot.slane %v1347, 2
      %v1809 = vrot.slane %v1348, 2
      %v1814 = vrot.slane %v1373, 6
      %v1815 = vrot.slane %v1374, 6
      %v1820 = vrot.slane %v1386, 4
      %v1821 = vrot.slane %v1387, 4
      %v1826 = vrot.slane %v1399, 2
      %v1827 = vrot.slane %v1400, 2
      %1830 = vrot.lane.b32.xlu0 %v1083, 77
      %v1831 = vpop.permute.xlu0 %1830
      %1832 = vrot.lane.b32.xlu0 %v1079, 77
      %v1833 = vpop.permute.xlu0 %1832
      %1834 = vrot.lane.b32.xlu0 %v1084, 77
      %v1835 = vpop.permute.xlu0 %1834
      %vm1836 = vcmask 629760
      %v1837 = vsel %vm1836, %v1831, %v1833
      %v1838 = vsel %vm1836, %v1833, %v1835
      %v1843 = vrot.slane %v1412, 6
      %v1844 = vrot.slane %v1413, 6
      %v1849 = vrot.slane %v1425, 4
      %v1850 = vrot.slane %v1426, 4
      %v1855 = vrot.slane %v1438, 2
      %v1856 = vrot.slane %v1439, 2
      %v1861 = vrot.slane %v1464, 6
      %v1862 = vrot.slane %v1465, 6
      %v1867 = vrot.slane %v1477, 4
      %v1868 = vrot.slane %v1478, 4
      %1871 = vrot.lane.b32.xlu0 %v1685, 61
      %v1872 = vpop.permute.xlu0 %1871
      %1873 = vrot.lane.b32.xlu0 %v1686, 61
      %v1874 = vpop.permute.xlu0 %1873
      %1875 = vrot.lane.b32.xlu0 %v1687, 61
      %v1876 = vpop.permute.xlu0 %1875
      %vm1877 = vcmask 498688
      %v1878 = vsel %vm1877, %v1872, %v1874
      %v1879 = vsel %vm1877, %v1874, %v1876
      %v1882 = vsel %vm856, %v1321, %v1796
      %v1883 = vsel %vm856, %v1322, %v1797
      %v1884 = vsel %vm584, %v1882, %v1802
      %v1885 = vsel %vm584, %v1883, %v1803
      %v1886 = vsel %vm1765, %v1884, %v1808
      %v1887 = vsel %vm1765, %v1885, %v1809
      %v1888 = vsel %vm856, %v1360, %v1814
      %v1889 = vsel %vm856, %v1361, %v1815
      %v1890 = vsel %vm584, %v1888, %v1820
      %v1891 = vsel %vm584, %v1889, %v1821
      %v1892 = vsel %vm1765, %v1890, %v1826
      %v1893 = vsel %vm1765, %v1891, %v1827
      %v1894 = vsel %vm856, %v1837, %v1843
      %v1895 = vsel %vm856, %v1838, %v1844
      %v1896 = vsel %vm584, %v1894, %v1849
      %v1897 = vsel %vm584, %v1895, %v1850
      %v1898 = vsel %vm1765, %v1896, %v1855
      %v1899 = vsel %vm1765, %v1897, %v1856
      %v1900 = vsel %vm856, %v1451, %v1861
      %v1901 = vsel %vm856, %v1452, %v1862
      %v1902 = vsel %vm584, %v1900, %v1867
      %v1903 = vsel %vm584, %v1901, %v1868
      %v1904 = vsel %vm1765, %v1902, %v1878
      %v1905 = vsel %vm1765, %v1903, %v1879
      %v1908 = vrot.slane %v1503, 6
      %v1909 = vrot.slane %v1504, 6
      %v1914 = vrot.slane %v1516, 4
      %v1915 = vrot.slane %v1517, 4
      %v1920 = vrot.slane %v1529, 2
      %v1921 = vrot.slane %v1530, 2
      %v1926 = vrot.slane %v1555, 6
      %v1927 = vrot.slane %v1556, 6
      %1930 = vrot.lane.b32.xlu0 %v1723, 45
      %v1931 = vpop.permute.xlu0 %1930
      %1932 = vrot.lane.b32.xlu0 %v1724, 45
      %v1933 = vpop.permute.xlu0 %1932
      %1934 = vrot.lane.b32.xlu0 %v1725, 45
      %v1935 = vpop.permute.xlu0 %1934
      %vm1936 = vcmask 367616
      %v1937 = vsel %vm1936, %v1931, %v1933
      %v1938 = vsel %vm1936, %v1933, %v1935
      %v1943 = vrot.slane %v1568, 2
      %v1944 = vrot.slane %v1569, 2
      %v1949 = vrot.slane %v1594, 6
      %v1950 = vrot.slane %v1595, 6
      %v1955 = vrot.slane %v1606, 4
      %v1956 = vrot.slane %v1607, 4
      %v1961 = vrot.slane %v1619, 2
      %v1962 = vrot.slane %v1620, 2
      %1965 = vrot.lane.b32.xlu0 %v1786, 29
      %v1966 = vpop.permute.xlu0 %1965
      %1967 = vrot.lane.b32.xlu0 %v1787, 29
      %v1968 = vpop.permute.xlu0 %1967
      %1969 = vrot.lane.b32.xlu0 %v1788, 29
      %v1970 = vpop.permute.xlu0 %1969
      %vm1971 = vcmask 236544
      %v1972 = vsel %vm1971, %v1966, %v1968
      %v1973 = vsel %vm1971, %v1968, %v1970
      %v1978 = vrot.slane %v1645, 4
      %v1979 = vrot.slane %v1646, 4
      %v1984 = vrot.slane %v1658, 2
      %v1985 = vrot.slane %v1659, 2
      %v1988 = vsel %vm856, %v1490, %v1908
      %v1989 = vsel %vm856, %v1491, %v1909
      %v1990 = vsel %vm584, %v1988, %v1914
      %v1991 = vsel %vm584, %v1989, %v1915
      %v1992 = vsel %vm1765, %v1990, %v1920
      %v1993 = vsel %vm1765, %v1991, %v1921
      %v1994 = vsel %vm856, %v1542, %v1926
      %v1995 = vsel %vm856, %v1543, %v1927
      %v1996 = vsel %vm584, %v1994, %v1937
      %v1997 = vsel %vm584, %v1995, %v1938
      %v1998 = vsel %vm1765, %v1996, %v1943
      %v1999 = vsel %vm1765, %v1997, %v1944
      %v2000 = vsel %vm856, %v1581, %v1949
      %v2001 = vsel %vm856, %v1582, %v1950
      %v2002 = vsel %vm584, %v2000, %v1955
      %v2003 = vsel %vm584, %v2001, %v1956
      %v2004 = vsel %vm1765, %v2002, %v1961
      %v2005 = vsel %vm1765, %v2003, %v1962
      %v2006 = vsel %vm856, %v1632, %v1972
      %v2007 = vsel %vm856, %v1633, %v1973
      %v2008 = vsel %vm584, %v2006, %v1978
      %v2009 = vsel %vm584, %v2007, %v1979
      %v2010 = vsel %vm1765, %v2008, %v1984
      %v2011 = vsel %vm1765, %v2009, %v1985
      %2013 = vset.pattern.permute.xlu0 0
      %2014 = vperm.xlu0 %2013, %v1017
      %v2015 = vpop.permute.xlu0 %2014
      %2018 = vset.pattern.permute.xlu0 0
      %2019 = vperm.xlu0 %2018, %v1018
      %v2020 = vpop.permute.xlu0 %2019
      %2023 = vset.pattern.permute.xlu0 0
      %2024 = vperm.xlu0 %2023, %v1019
      %v2025 = vpop.permute.xlu0 %2024
      %2028 = vset.pattern.permute.xlu0 0
      %2029 = vperm.xlu0 %2028, %v1020
      %v2030 = vpop.permute.xlu0 %2029
      %2033 = vset.pattern.permute.xlu0 0
      %2034 = vperm.xlu0 %2033, %v1021
      %v2035 = vpop.permute.xlu0 %2034
      %2038 = vset.pattern.permute.xlu0 0
      %2039 = vperm.xlu0 %2038, %v1022
      %v2040 = vpop.permute.xlu0 %2039
      %2043 = vset.pattern.permute.xlu0 0
      %2044 = vperm.xlu0 %2043, %v1023
      %v2045 = vpop.permute.xlu0 %2044
      %2048 = vset.pattern.permute.xlu0 0
      %2049 = vperm.xlu0 %2048, %v1024
      %v2050 = vpop.permute.xlu0 %2049
      %2053 = vset.pattern.permute.xlu0 0
      %2054 = vperm.xlu0 %2053, %v1025
      %v2055 = vpop.permute.xlu0 %2054
      %2058 = vset.pattern.permute.xlu0 0
      %2059 = vperm.xlu0 %2058, %v1026
      %v2060 = vpop.permute.xlu0 %2059
      %2063 = vset.pattern.permute.xlu0 0
      %2064 = vperm.xlu0 %2063, %v1027
      %v2065 = vpop.permute.xlu0 %2064
      %2068 = vset.pattern.permute.xlu0 0
      %2069 = vperm.xlu0 %2068, %v1028
      %v2070 = vpop.permute.xlu0 %2069
      %2073 = vset.pattern.permute.xlu0 0
      %2074 = vperm.xlu0 %2073, %v1029
      %v2075 = vpop.permute.xlu0 %2074
      %v2077 = vmul.f32 %v1766, %v2015
      %v2078 = vmul.f32 %v1767, %v2015
      %v2079 = vmul.f32 %v1772, %v2020
      %v2080 = vmul.f32 %v1773, %v2020
      %v2081 = vmul.f32 %v1778, %v2025
      %v2082 = vmul.f32 %v1779, %v2025
      %v2083 = vmul.f32 %v1784, %v2030
      %v2084 = vmul.f32 %v1785, %v2030
      %v2085 = vmul.f32 %v1886, %v2035
      %v2086 = vmul.f32 %v1887, %v2035
      %v2087 = vmul.f32 %v1892, %v2040
      %v2088 = vmul.f32 %v1893, %v2040
      %v2089 = vmul.f32 %v1898, %v2045
      %v2090 = vmul.f32 %v1899, %v2045
      %v2091 = vmul.f32 %v1904, %v2050
      %v2092 = vmul.f32 %v1905, %v2050
      %v2093 = vmul.f32 %v1992, %v2055
      %v2094 = vmul.f32 %v1993, %v2055
      %v2095 = vmul.f32 %v1998, %v2060
      %v2096 = vmul.f32 %v1999, %v2060
      %v2097 = vmul.f32 %v2004, %v2065
      %v2098 = vmul.f32 %v2005, %v2065
      %v2099 = vmul.f32 %v2010, %v2070
      %v2100 = vmul.f32 %v2011, %v2070
      %v2101 = vmul.f32 %v1671, %v2075
      %v2102 = vmul.f32 %v1672, %v2075
      %v2103 = vadd.f32 %v2077, %v2079
      %v2104 = vadd.f32 %v2103, %v2081
      %v2105 = vadd.f32 %v2104, %v2083
      %v2106 = vadd.f32 %v2105, %v2085
      %v2107 = vadd.f32 %v2106, %v2087
      %v2108 = vadd.f32 %v2107, %v2089
      %v2109 = vadd.f32 %v2108, %v2091
      %v2110 = vadd.f32 %v2109, %v2093
      %v2111 = vadd.f32 %v2110, %v2095
      %v2112 = vadd.f32 %v2111, %v2097
      %v2113 = vadd.f32 %v2112, %v2099
      %v2114 = vsel %vm856, %v2101, 0.0
      %v2115 = vadd.f32 %v2113, %v2114
      %v2116 = vrot.slane %v2115, 4
      %v2117 = vadd.f32 %v2115, %v2116
      %v2118 = vrot.slane %v2117, 2
      %v2119 = vadd.f32 %v2117, %v2118
      %v2120 = vrot.slane %v2119, 1
      %v2121 = vadd.f32 %v2119, %v2120
      %v2122 = vadd.f32 %v2078, %v2080
      %v2123 = vadd.f32 %v2122, %v2082
      %v2124 = vadd.f32 %v2123, %v2084
      %v2125 = vadd.f32 %v2124, %v2086
      %v2126 = vadd.f32 %v2125, %v2088
      %v2127 = vadd.f32 %v2126, %v2090
      %v2128 = vadd.f32 %v2127, %v2092
      %v2129 = vadd.f32 %v2128, %v2094
      %v2130 = vadd.f32 %v2129, %v2096
      %v2131 = vadd.f32 %v2130, %v2098
      %v2132 = vadd.f32 %v2131, %v2100
      %v2133 = vsel %vm856, %v2102, 0.0
      %v2134 = vadd.f32 %v2132, %v2133
      %v2135 = vrot.slane %v2134, 4
      %v2136 = vadd.f32 %v2134, %v2135
      %v2137 = vrot.slane %v2136, 2
      %v2138 = vadd.f32 %v2136, %v2137
      %v2139 = vrot.slane %v2138, 1
      %v2140 = vadd.f32 %v2138, %v2139
      %v2141 = vxor.u32 %v2121, 2147483648
      %v2142 = vxor.u32 %v2140, 2147483648
      %v2143 = vmul.f32 %v2141, 1.442695
      %v2144 = vpow.pop %v2143
      %v2145 = vmul.f32 %v2142, 1.442695
      %v2146 = vpow.pop %v2145
      %v2147 = vadd.f32 %v2144, 1.0
      %v2148 = vadd.f32 %v2146, 1.0
      %v2149 = vrcp.pop %v2147
      %v2150 = vmul.f32 1.0, %v2149
      %v2151 = vrcp.pop %v2148
      %v2152 = vmul.f32 1.0, %v2151
      %v2153 = vmul.f32 %v1009, %v2150
      %v2154 = vmul.f32 %v1010, %v2152
      %v2155 = vmul.f32 %v1011, %v2150
      %v2156 = vmul.f32 %v1012, %v2152
      %v2157 = vmul.f32 %v1013, %v2150
      %v2158 = vmul.f32 %v1014, %v2152
      %v2159 = vmul.f32 %v1015, %v2150
      %v2160 = vmul.f32 %v1016, %v2152
      %v2161 = vld [vmem:[%s7] sm:$0xff]
      %v2162 = vld [vmem:[%s7 + $0x8] sm:$0xff]
      %v2163 = vld [vmem:[%s7 + $0x10] sm:$0xff]
      %v2164 = vld [vmem:[%s7 + $0x18] sm:$0xff]
      %v2165 = vld [vmem:[%s7 + $0x20] sm:$0xff]
      %v2166 = vld [vmem:[%s7 + $0x28] sm:$0xff]
      %v2167 = vld [vmem:[%s7 + $0x30] sm:$0xff]
      %v2168 = vld [vmem:[%s7 + $0x38] sm:$0xff]
      %v2169 = vld [vmem:[%s7 + $0x40] sm:$0xff]
      %v2170 = vld [vmem:[%s7 + $0x48] sm:$0xff]
      %v2171 = vld [vmem:[%s7 + $0x50] sm:$0xff]
      %v2172 = vld [vmem:[%s7 + $0x58] sm:$0xff]
      %v2173 = vld [vmem:[%s8] sm:$0xff]
      %v2174 = vld [vmem:[%s8 + $0x8] sm:$0xff]
      %v2175 = vld [vmem:[%s8 + $0x10] sm:$0xff]
      %v2176 = vld [vmem:[%s8 + $0x18] sm:$0xff]
      %2185 = vrot.lane.b32.xlu0 %v2153, 17
      %v2186 = vpop.permute.xlu0 %2185
      %2187 = vrot.lane.b32.xlu0 %v2154, 17
      %v2188 = vpop.permute.xlu0 %2187
      %2189 = vrot.lane.b32.xlu0 %v2155, 17
      %v2190 = vpop.permute.xlu0 %2189
      %2191 = vrot.lane.b32.xlu0 %v2156, 17
      %v2192 = vpop.permute.xlu0 %2191
      %2193 = vrot.lane.b32.xlu0 %v2157, 17
      %v2194 = vpop.permute.xlu0 %2193
      %2195 = vrot.lane.b32.xlu0 %v2158, 17
      %v2196 = vpop.permute.xlu0 %2195
      %2197 = vrot.lane.b32.xlu0 %v2159, 17
      %v2198 = vpop.permute.xlu0 %2197
      %2199 = vrot.lane.b32.xlu0 %v2160, 17
      %v2200 = vpop.permute.xlu0 %2199
      %v2201 = vsel %vm430, %v2186, %v2188
      %v2202 = vsel %vm430, %v2190, %v2192
      %v2203 = vsel %vm430, %v2194, %v2196
      %v2204 = vsel %vm430, %v2198, %v2200
      %v2217 = vsel %vm430, 0.0, %v2186
      %v2218 = vsel %vm430, 0.0, %v2190
      %v2219 = vsel %vm430, 0.0, %v2194
      %v2220 = vsel %vm430, 0.0, %v2198
      %v2221 = vsel %vm430, %v2188, 0.0
      %v2222 = vsel %vm430, %v2192, 0.0
      %v2223 = vsel %vm430, %v2196, 0.0
      %v2224 = vsel %vm430, %v2200, 0.0
      %v2225 = vsel %vm450, %v2217, 0.0
      %v2226 = vsel %vm451, %v2201, 0.0
      %v2227 = vsel %vm450, %v2218, 0.0
      %v2228 = vsel %vm451, %v2202, 0.0
      %v2229 = vsel %vm450, %v2219, 0.0
      %v2230 = vsel %vm451, %v2203, 0.0
      %v2231 = vsel %vm450, %v2220, 0.0
      %v2232 = vsel %vm451, %v2204, 0.0
      %2241 = vrot.lane.b32.xlu0 %v2217, 126
      %v2242 = vpop.permute.xlu0 %2241
      %2243 = vrot.lane.b32.xlu0 %v2201, 126
      %v2244 = vpop.permute.xlu0 %2243
      %2245 = vrot.lane.b32.xlu0 %v2221, 126
      %v2246 = vpop.permute.xlu0 %2245
      %2247 = vrot.lane.b32.xlu0 %v2218, 126
      %v2248 = vpop.permute.xlu0 %2247
      %2249 = vrot.lane.b32.xlu0 %v2202, 126
      %v2250 = vpop.permute.xlu0 %2249
      %2251 = vrot.lane.b32.xlu0 %v2222, 126
      %v2252 = vpop.permute.xlu0 %2251
      %2253 = vrot.lane.b32.xlu0 %v2219, 126
      %v2254 = vpop.permute.xlu0 %2253
      %2255 = vrot.lane.b32.xlu0 %v2203, 126
      %v2256 = vpop.permute.xlu0 %2255
      %2257 = vrot.lane.b32.xlu0 %v2223, 126
      %v2258 = vpop.permute.xlu0 %2257
      %2259 = vrot.lane.b32.xlu0 %v2220, 126
      %v2260 = vpop.permute.xlu0 %2259
      %2261 = vrot.lane.b32.xlu0 %v2204, 126
      %v2262 = vpop.permute.xlu0 %2261
      %2263 = vrot.lane.b32.xlu0 %v2224, 126
      %v2264 = vpop.permute.xlu0 %2263
      %v2265 = vsel %vm477, %v2242, %v2244
      %v2266 = vsel %vm477, %v2244, %v2246
      %v2267 = vsel %vm477, %v2248, %v2250
      %v2268 = vsel %vm477, %v2250, %v2252
      %v2269 = vsel %vm477, %v2254, %v2256
      %v2270 = vsel %vm477, %v2256, %v2258
      %v2271 = vsel %vm477, %v2260, %v2262
      %v2272 = vsel %vm477, %v2262, %v2264
      %v2281 = vsel %vm467, %v2265, 0.0
      %v2282 = vsel %vm468, %v2266, 0.0
      %v2283 = vsel %vm467, %v2267, 0.0
      %v2284 = vsel %vm468, %v2268, 0.0
      %v2285 = vsel %vm467, %v2269, 0.0
      %v2286 = vsel %vm468, %v2270, 0.0
      %v2287 = vsel %vm467, %v2271, 0.0
      %v2288 = vsel %vm468, %v2272, 0.0
      %2289 = vrot.lane.b32.xlu0 %v2217, 112
      %v2290 = vpop.permute.xlu0 %2289
      %2291 = vrot.lane.b32.xlu0 %v2201, 112
      %v2292 = vpop.permute.xlu0 %2291
      %2293 = vrot.lane.b32.xlu0 %v2221, 112
      %v2294 = vpop.permute.xlu0 %2293
      %2295 = vrot.lane.b32.xlu0 %v2218, 112
      %v2296 = vpop.permute.xlu0 %2295
      %2297 = vrot.lane.b32.xlu0 %v2202, 112
      %v2298 = vpop.permute.xlu0 %2297
      %2299 = vrot.lane.b32.xlu0 %v2222, 112
      %v2300 = vpop.permute.xlu0 %2299
      %2301 = vrot.lane.b32.xlu0 %v2219, 112
      %v2302 = vpop.permute.xlu0 %2301
      %2303 = vrot.lane.b32.xlu0 %v2203, 112
      %v2304 = vpop.permute.xlu0 %2303
      %2305 = vrot.lane.b32.xlu0 %v2223, 112
      %v2306 = vpop.permute.xlu0 %2305
      %2307 = vrot.lane.b32.xlu0 %v2220, 112
      %v2308 = vpop.permute.xlu0 %2307
      %2309 = vrot.lane.b32.xlu0 %v2204, 112
      %v2310 = vpop.permute.xlu0 %2309
      %2311 = vrot.lane.b32.xlu0 %v2224, 112
      %v2312 = vpop.permute.xlu0 %2311
      %v2313 = vsel %vm490, %v2290, %v2292
      %v2314 = vsel %vm490, %v2292, %v2294
      %v2315 = vsel %vm490, %v2296, %v2298
      %v2316 = vsel %vm490, %v2298, %v2300
      %v2317 = vsel %vm490, %v2302, %v2304
      %v2318 = vsel %vm490, %v2304, %v2306
      %v2319 = vsel %vm490, %v2308, %v2310
      %v2320 = vsel %vm490, %v2310, %v2312
      %v2329 = vsel %vm450, %v2313, 0.0
      %v2330 = vsel %vm451, %v2314, 0.0
      %v2331 = vsel %vm450, %v2315, 0.0
      %v2332 = vsel %vm451, %v2316, 0.0
      %v2333 = vsel %vm450, %v2317, 0.0
      %v2334 = vsel %vm451, %v2318, 0.0
      %v2335 = vsel %vm450, %v2319, 0.0
      %v2336 = vsel %vm451, %v2320, 0.0
      %2337 = vrot.lane.b32.xlu0 %v2217, 110
      %v2338 = vpop.permute.xlu0 %2337
      %2339 = vrot.lane.b32.xlu0 %v2201, 110
      %v2340 = vpop.permute.xlu0 %2339
      %2341 = vrot.lane.b32.xlu0 %v2221, 110
      %v2342 = vpop.permute.xlu0 %2341
      %2343 = vrot.lane.b32.xlu0 %v2218, 110
      %v2344 = vpop.permute.xlu0 %2343
      %2345 = vrot.lane.b32.xlu0 %v2202, 110
      %v2346 = vpop.permute.xlu0 %2345
      %2347 = vrot.lane.b32.xlu0 %v2222, 110
      %v2348 = vpop.permute.xlu0 %2347
      %2349 = vrot.lane.b32.xlu0 %v2219, 110
      %v2350 = vpop.permute.xlu0 %2349
      %2351 = vrot.lane.b32.xlu0 %v2203, 110
      %v2352 = vpop.permute.xlu0 %2351
      %2353 = vrot.lane.b32.xlu0 %v2223, 110
      %v2354 = vpop.permute.xlu0 %2353
      %2355 = vrot.lane.b32.xlu0 %v2220, 110
      %v2356 = vpop.permute.xlu0 %2355
      %2357 = vrot.lane.b32.xlu0 %v2204, 110
      %v2358 = vpop.permute.xlu0 %2357
      %2359 = vrot.lane.b32.xlu0 %v2224, 110
      %v2360 = vpop.permute.xlu0 %2359
      %v2361 = vsel %vm503, %v2338, %v2340
      %v2362 = vsel %vm503, %v2340, %v2342
      %v2363 = vsel %vm503, %v2344, %v2346
      %v2364 = vsel %vm503, %v2346, %v2348
      %v2365 = vsel %vm503, %v2350, %v2352
      %v2366 = vsel %vm503, %v2352, %v2354
      %v2367 = vsel %vm503, %v2356, %v2358
      %v2368 = vsel %vm503, %v2358, %v2360
      %v2377 = vsel %vm467, %v2361, 0.0
      %v2378 = vsel %vm468, %v2362, 0.0
      %v2379 = vsel %vm467, %v2363, 0.0
      %v2380 = vsel %vm468, %v2364, 0.0
      %v2381 = vsel %vm467, %v2365, 0.0
      %v2382 = vsel %vm468, %v2366, 0.0
      %v2383 = vsel %vm467, %v2367, 0.0
      %v2384 = vsel %vm468, %v2368, 0.0
      %2385 = vrot.lane.b32.xlu0 %v2217, 96
      %v2386 = vpop.permute.xlu0 %2385
      %2387 = vrot.lane.b32.xlu0 %v2201, 96
      %v2388 = vpop.permute.xlu0 %2387
      %2389 = vrot.lane.b32.xlu0 %v2221, 96
      %v2390 = vpop.permute.xlu0 %2389
      %2391 = vrot.lane.b32.xlu0 %v2218, 96
      %v2392 = vpop.permute.xlu0 %2391
      %2393 = vrot.lane.b32.xlu0 %v2202, 96
      %v2394 = vpop.permute.xlu0 %2393
      %2395 = vrot.lane.b32.xlu0 %v2222, 96
      %v2396 = vpop.permute.xlu0 %2395
      %2397 = vrot.lane.b32.xlu0 %v2219, 96
      %v2398 = vpop.permute.xlu0 %2397
      %2399 = vrot.lane.b32.xlu0 %v2203, 96
      %v2400 = vpop.permute.xlu0 %2399
      %2401 = vrot.lane.b32.xlu0 %v2223, 96
      %v2402 = vpop.permute.xlu0 %2401
      %2403 = vrot.lane.b32.xlu0 %v2220, 96
      %v2404 = vpop.permute.xlu0 %2403
      %2405 = vrot.lane.b32.xlu0 %v2204, 96
      %v2406 = vpop.permute.xlu0 %2405
      %2407 = vrot.lane.b32.xlu0 %v2224, 96
      %v2408 = vpop.permute.xlu0 %2407
      %v2409 = vsel %vm516, %v2386, %v2388
      %v2410 = vsel %vm516, %v2388, %v2390
      %v2411 = vsel %vm516, %v2392, %v2394
      %v2412 = vsel %vm516, %v2394, %v2396
      %v2413 = vsel %vm516, %v2398, %v2400
      %v2414 = vsel %vm516, %v2400, %v2402
      %v2415 = vsel %vm516, %v2404, %v2406
      %v2416 = vsel %vm516, %v2406, %v2408
      %v2425 = vsel %vm450, %v2409, 0.0
      %v2426 = vsel %vm451, %v2410, 0.0
      %v2427 = vsel %vm450, %v2411, 0.0
      %v2428 = vsel %vm451, %v2412, 0.0
      %v2429 = vsel %vm450, %v2413, 0.0
      %v2430 = vsel %vm451, %v2414, 0.0
      %v2431 = vsel %vm450, %v2415, 0.0
      %v2432 = vsel %vm451, %v2416, 0.0
      %2433 = vrot.lane.b32.xlu0 %v2217, 94
      %v2434 = vpop.permute.xlu0 %2433
      %2435 = vrot.lane.b32.xlu0 %v2201, 94
      %v2436 = vpop.permute.xlu0 %2435
      %2437 = vrot.lane.b32.xlu0 %v2221, 94
      %v2438 = vpop.permute.xlu0 %2437
      %2439 = vrot.lane.b32.xlu0 %v2218, 94
      %v2440 = vpop.permute.xlu0 %2439
      %2441 = vrot.lane.b32.xlu0 %v2202, 94
      %v2442 = vpop.permute.xlu0 %2441
      %2443 = vrot.lane.b32.xlu0 %v2222, 94
      %v2444 = vpop.permute.xlu0 %2443
      %2445 = vrot.lane.b32.xlu0 %v2219, 94
      %v2446 = vpop.permute.xlu0 %2445
      %2447 = vrot.lane.b32.xlu0 %v2203, 94
      %v2448 = vpop.permute.xlu0 %2447
      %2449 = vrot.lane.b32.xlu0 %v2223, 94
      %v2450 = vpop.permute.xlu0 %2449
      %2451 = vrot.lane.b32.xlu0 %v2220, 94
      %v2452 = vpop.permute.xlu0 %2451
      %2453 = vrot.lane.b32.xlu0 %v2204, 94
      %v2454 = vpop.permute.xlu0 %2453
      %2455 = vrot.lane.b32.xlu0 %v2224, 94
      %v2456 = vpop.permute.xlu0 %2455
      %v2457 = vsel %vm529, %v2434, %v2436
      %v2458 = vsel %vm529, %v2436, %v2438
      %v2459 = vsel %vm529, %v2440, %v2442
      %v2460 = vsel %vm529, %v2442, %v2444
      %v2461 = vsel %vm529, %v2446, %v2448
      %v2462 = vsel %vm529, %v2448, %v2450
      %v2463 = vsel %vm529, %v2452, %v2454
      %v2464 = vsel %vm529, %v2454, %v2456
      %v2473 = vsel %vm467, %v2457, 0.0
      %v2474 = vsel %vm468, %v2458, 0.0
      %v2475 = vsel %vm467, %v2459, 0.0
      %v2476 = vsel %vm468, %v2460, 0.0
      %v2477 = vsel %vm467, %v2461, 0.0
      %v2478 = vsel %vm468, %v2462, 0.0
      %v2479 = vsel %vm467, %v2463, 0.0
      %v2480 = vsel %vm468, %v2464, 0.0
      %2481 = vrot.lane.b32.xlu0 %v2217, 127
      %v2482 = vpop.permute.xlu0 %2481
      %2483 = vrot.lane.b32.xlu0 %v2201, 127
      %v2484 = vpop.permute.xlu0 %2483
      %2485 = vrot.lane.b32.xlu0 %v2221, 127
      %v2486 = vpop.permute.xlu0 %2485
      %2487 = vrot.lane.b32.xlu0 %v2218, 127
      %v2488 = vpop.permute.xlu0 %2487
      %2489 = vrot.lane.b32.xlu0 %v2202, 127
      %v2490 = vpop.permute.xlu0 %2489
      %2491 = vrot.lane.b32.xlu0 %v2222, 127
      %v2492 = vpop.permute.xlu0 %2491
      %2493 = vrot.lane.b32.xlu0 %v2219, 127
      %v2494 = vpop.permute.xlu0 %2493
      %2495 = vrot.lane.b32.xlu0 %v2203, 127
      %v2496 = vpop.permute.xlu0 %2495
      %2497 = vrot.lane.b32.xlu0 %v2223, 127
      %v2498 = vpop.permute.xlu0 %2497
      %2499 = vrot.lane.b32.xlu0 %v2220, 127
      %v2500 = vpop.permute.xlu0 %2499
      %2501 = vrot.lane.b32.xlu0 %v2204, 127
      %v2502 = vpop.permute.xlu0 %2501
      %2503 = vrot.lane.b32.xlu0 %v2224, 127
      %v2504 = vpop.permute.xlu0 %2503
      %v2505 = vsel %vm545, %v2482, %v2484
      %v2506 = vsel %vm545, %v2484, %v2486
      %v2507 = vsel %vm545, %v2488, %v2490
      %v2508 = vsel %vm545, %v2490, %v2492
      %v2509 = vsel %vm545, %v2494, %v2496
      %v2510 = vsel %vm545, %v2496, %v2498
      %v2511 = vsel %vm545, %v2500, %v2502
      %v2512 = vsel %vm545, %v2502, %v2504
      %2521 = vrot.lane.b32.xlu0 %v2217, 111
      %v2522 = vpop.permute.xlu0 %2521
      %2523 = vrot.lane.b32.xlu0 %v2201, 111
      %v2524 = vpop.permute.xlu0 %2523
      %2525 = vrot.lane.b32.xlu0 %v2221, 111
      %v2526 = vpop.permute.xlu0 %2525
      %2527 = vrot.lane.b32.xlu0 %v2218, 111
      %v2528 = vpop.permute.xlu0 %2527
      %2529 = vrot.lane.b32.xlu0 %v2202, 111
      %v2530 = vpop.permute.xlu0 %2529
      %2531 = vrot.lane.b32.xlu0 %v2222, 111
      %v2532 = vpop.permute.xlu0 %2531
      %2533 = vrot.lane.b32.xlu0 %v2219, 111
      %v2534 = vpop.permute.xlu0 %2533
      %2535 = vrot.lane.b32.xlu0 %v2203, 111
      %v2536 = vpop.permute.xlu0 %2535
      %2537 = vrot.lane.b32.xlu0 %v2223, 111
      %v2538 = vpop.permute.xlu0 %2537
      %2539 = vrot.lane.b32.xlu0 %v2220, 111
      %v2540 = vpop.permute.xlu0 %2539
      %2541 = vrot.lane.b32.xlu0 %v2204, 111
      %v2542 = vpop.permute.xlu0 %2541
      %2543 = vrot.lane.b32.xlu0 %v2224, 111
      %v2544 = vpop.permute.xlu0 %2543
      %v2545 = vsel %vm562, %v2522, %v2524
      %v2546 = vsel %vm562, %v2524, %v2526
      %v2547 = vsel %vm562, %v2528, %v2530
      %v2548 = vsel %vm562, %v2530, %v2532
      %v2549 = vsel %vm562, %v2534, %v2536
      %v2550 = vsel %vm562, %v2536, %v2538
      %v2551 = vsel %vm562, %v2540, %v2542
      %v2552 = vsel %vm562, %v2542, %v2544
      %2561 = vrot.lane.b32.xlu0 %v2217, 95
      %v2562 = vpop.permute.xlu0 %2561
      %2563 = vrot.lane.b32.xlu0 %v2201, 95
      %v2564 = vpop.permute.xlu0 %2563
      %2565 = vrot.lane.b32.xlu0 %v2221, 95
      %v2566 = vpop.permute.xlu0 %2565
      %2567 = vrot.lane.b32.xlu0 %v2218, 95
      %v2568 = vpop.permute.xlu0 %2567
      %2569 = vrot.lane.b32.xlu0 %v2202, 95
      %v2570 = vpop.permute.xlu0 %2569
      %2571 = vrot.lane.b32.xlu0 %v2222, 95
      %v2572 = vpop.permute.xlu0 %2571
      %2573 = vrot.lane.b32.xlu0 %v2219, 95
      %v2574 = vpop.permute.xlu0 %2573
      %2575 = vrot.lane.b32.xlu0 %v2203, 95
      %v2576 = vpop.permute.xlu0 %2575
      %2577 = vrot.lane.b32.xlu0 %v2223, 95
      %v2578 = vpop.permute.xlu0 %2577
      %2579 = vrot.lane.b32.xlu0 %v2220, 95
      %v2580 = vpop.permute.xlu0 %2579
      %2581 = vrot.lane.b32.xlu0 %v2204, 95
      %v2582 = vpop.permute.xlu0 %2581
      %2583 = vrot.lane.b32.xlu0 %v2224, 95
      %v2584 = vpop.permute.xlu0 %2583
      %v2585 = vsel %vm579, %v2562, %v2564
      %v2586 = vsel %vm579, %v2564, %v2566
      %v2587 = vsel %vm579, %v2568, %v2570
      %v2588 = vsel %vm579, %v2570, %v2572
      %v2589 = vsel %vm579, %v2574, %v2576
      %v2590 = vsel %vm579, %v2576, %v2578
      %v2591 = vsel %vm579, %v2580, %v2582
      %v2592 = vsel %vm579, %v2582, %v2584
      %2602 = vset.pattern.permute.xlu0 0
      %2603 = vperm.xlu0 %2602, %v2173
      %v2604 = vpop.permute.xlu0 %2603
      %2607 = vset.pattern.permute.xlu0 0
      %2608 = vperm.xlu0 %2607, %v2174
      %v2609 = vpop.permute.xlu0 %2608
      %2612 = vset.pattern.permute.xlu0 0
      %2613 = vperm.xlu0 %2612, %v2175
      %v2614 = vpop.permute.xlu0 %2613
      %2617 = vset.pattern.permute.xlu0 0
      %2618 = vperm.xlu0 %2617, %v2176
      %v2619 = vpop.permute.xlu0 %2618
      %v2622 = vsel %vm768, %v2163, 0
      %v2625 = vsel %vm768, %v2166, 0
      %v2628 = vsel %vm768, %v2169, 0
      %v2631 = vsel %vm768, %v2172, 0
      %2633 = vmatprep.subr.mxu0 %v2336
      %2634 = vmatpush1.msra.mxu0 %v2335
      %2635 = vmatprep.subr.mxu0 %v2334
      %2636 = vmatpush1.msra.mxu0 %v2333
      %2637 = vmatprep.subr.mxu0 %v2332
      %2638 = vmatpush1.msra.mxu0 %v2331
      %2639 = vmatprep.subr.mxu0 %v2330
      %2640 = vmatpush1.msra.mxu0 %v2329
      %2641 = vmatprep.subr.mxu0 %v2288
      %2642 = vmatpush1.msra.mxu0 %v2287
      %2643 = vmatprep.subr.mxu0 %v2286
      %2644 = vmatpush1.msra.mxu0 %v2285
      %2645 = vmatprep.subr.mxu0 %v2284
      %2646 = vmatpush1.msra.mxu0 %v2283
      %2647 = vmatprep.subr.mxu0 %v2282
      %2648 = vmatpush1.msra.mxu0 %v2281
      %2649 = vmatprep.subr.mxu0 %v2512
      %2650 = vmatpush1.msra.mxu0 %v2511
      %2651 = vmatprep.subr.mxu0 %v2510
      %2652 = vmatpush1.msra.mxu0 %v2509
      %2653 = vmatprep.subr.mxu0 %v2508
      %2654 = vmatpush1.msra.mxu0 %v2507
      %2655 = vmatprep.subr.mxu0 %v2506
      %2656 = vmatpush1.msra.mxu0 %v2505
      %2657 = vmatprep.subr.mxu0 %v2232
      %2658 = vmatpush1.msra.mxu0 %v2231
      %2659 = vmatprep.subr.mxu0 %v2230
      %2660 = vmatpush1.msra.mxu0 %v2229
      %2661 = vmatprep.subr.mxu0 %v2228
      %2662 = vmatpush1.msra.mxu0 %v2227
      %2663 = vmatprep.subr.mxu0 %v2226
      %2664 = vmatpush1.msra.mxu0 %v2225
      %2665 = vmatprep.subr.mxu0 %v2592
      %2666 = vmatpush2.msra.mxu0 %v2591
      %2667 = vmatprep.subr.mxu0 %v2590
      %2668 = vmatpush2.msra.mxu0 %v2589
      %2669 = vmatprep.subr.mxu0 %v2588
      %2670 = vmatpush2.msra.mxu0 %v2587
      %2671 = vmatprep.subr.mxu0 %v2586
      %2672 = vmatpush2.msra.mxu0 %v2585
      %2673 = vmatprep.subr.mxu0 %v2432
      %2674 = vmatpush2.msra.mxu0 %v2431
      %2675 = vmatprep.subr.mxu0 %v2430
      %2676 = vmatpush2.msra.mxu0 %v2429
      %2677 = vmatprep.subr.mxu0 %v2428
      %2678 = vmatpush2.msra.mxu0 %v2427
      %2679 = vmatprep.subr.mxu0 %v2426
      %2680 = vmatpush2.msra.mxu0 %v2425
      %2681 = vmatprep.subr.mxu0 %v2384
      %2682 = vmatpush2.msra.mxu0 %v2383
      %2683 = vmatprep.subr.mxu0 %v2382
      %2684 = vmatpush2.msra.mxu0 %v2381
      %2685 = vmatprep.subr.mxu0 %v2380
      %2686 = vmatpush2.msra.mxu0 %v2379
      %2687 = vmatprep.subr.mxu0 %v2378
      %2688 = vmatpush2.msra.mxu0 %v2377
      %2689 = vmatprep.subr.mxu0 %v2552
      %2690 = vmatpush2.msra.mxu0 %v2551
      %2691 = vmatprep.subr.mxu0 %v2550
      %2692 = vmatpush2.msra.mxu0 %v2549
      %2693 = vmatprep.subr.mxu0 %v2548
      %2694 = vmatpush2.msra.mxu0 %v2547
      %2695 = vmatprep.subr.mxu0 %v2546
      %2696 = vmatpush2.msra.mxu0 %v2545
      %2697 = vmatprep.mubr.f32.mxu0 %v2162
      %2698 = vmatmul.mubr.f32.gmra.mxu0 %v2161
      %v2699 = vpop.f32.mrf.mxu0
      %v2700 = vadd.f32 %v2604, %v2699
      %v2701 = vpop.f32.mrf.mxu0
      %v2702 = vadd.f32 %v2604, %v2701
      %2703 = vmatprep.mubr.f32.mxu0 %v2165
      %2704 = vmatmul.mubr.f32.gmra.mxu0 %v2164
      %v2705 = vpop.f32.mrf.mxu0
      %v2706 = vadd.f32 %v2609, %v2705
      %v2707 = vpop.f32.mrf.mxu0
      %v2708 = vadd.f32 %v2609, %v2707
      %2709 = vmatprep.mubr.f32.mxu0 %v2168
      %2710 = vmatmul.mubr.f32.gmra.mxu0 %v2167
      %v2711 = vpop.f32.mrf.mxu0
      %v2712 = vadd.f32 %v2614, %v2711
      %v2713 = vpop.f32.mrf.mxu0
      %v2714 = vadd.f32 %v2614, %v2713
      %2715 = vmatprep.mubr.f32.mxu0 %v2171
      %2716 = vmatmul.mubr.f32.gmra.mxu0 %v2170
      %v2717 = vpop.f32.mrf.mxu0
      %v2718 = vadd.f32 %v2619, %v2717
      %v2719 = vpop.f32.mrf.mxu0
      %v2720 = vadd.f32 %v2619, %v2719
      %2721 = vdwg.mxu0
      %2722 = vmatprep.subr.mxu0 0.0
      %2723 = vmatpush1.msra.mxu0 0.0
      %2724 = vmatprep.subr.mxu0 0.0
      %2725 = vmatpush1.msra.mxu0 0.0
      %2726 = vmatprep.subr.mxu0 0.0
      %2727 = vmatpush1.msra.mxu0 0.0
      %2728 = vmatprep.subr.mxu0 0.0
      %2729 = vmatpush1.msra.mxu0 0.0
      %2730 = vmatprep.subr.mxu0 0.0
      %2731 = vmatpush1.msra.mxu0 0.0
      %2732 = vmatprep.subr.mxu0 0.0
      %2733 = vmatpush1.msra.mxu0 0.0
      %2734 = vmatprep.subr.mxu0 0.0
      %2735 = vmatpush1.msra.mxu0 0.0
      %2736 = vmatprep.subr.mxu0 0.0
      %2737 = vmatpush1.msra.mxu0 0.0
      %2738 = vmatprep.subr.mxu0 0.0
      %2739 = vmatpush1.msra.mxu0 0.0
      %2740 = vmatprep.subr.mxu0 0.0
      %2741 = vmatpush1.msra.mxu0 0.0
      %2742 = vmatprep.subr.mxu0 0.0
      %2743 = vmatpush1.msra.mxu0 0.0
      %2744 = vmatprep.subr.mxu0 0.0
      %2745 = vmatpush1.msra.mxu0 0.0
      %2746 = vmatprep.subr.mxu0 %v2480
      %2747 = vmatpush1.msra.mxu0 %v2479
      %2748 = vmatprep.subr.mxu0 %v2478
      %2749 = vmatpush1.msra.mxu0 %v2477
      %2750 = vmatprep.subr.mxu0 %v2476
      %2751 = vmatpush1.msra.mxu0 %v2475
      %2752 = vmatprep.subr.mxu0 %v2474
      %2753 = vmatpush1.msra.mxu0 %v2473
      %2754 = vmatprep.subr.mxu0 0.0
      %2755 = vmatpush2.msra.mxu0 0.0
      %2756 = vmatprep.subr.mxu0 0.0
      %2757 = vmatpush2.msra.mxu0 0.0
      %2758 = vmatprep.subr.mxu0 0.0
      %2759 = vmatpush2.msra.mxu0 0.0
      %2760 = vmatprep.subr.mxu0 0.0
      %2761 = vmatpush2.msra.mxu0 0.0
      %2762 = vmatprep.subr.mxu0 0.0
      %2763 = vmatpush2.msra.mxu0 0.0
      %2764 = vmatprep.subr.mxu0 0.0
      %2765 = vmatpush2.msra.mxu0 0.0
      %2766 = vmatprep.subr.mxu0 0.0
      %2767 = vmatpush2.msra.mxu0 0.0
      %2768 = vmatprep.subr.mxu0 0.0
      %2769 = vmatpush2.msra.mxu0 0.0
      %2770 = vmatprep.subr.mxu0 0.0
      %2771 = vmatpush2.msra.mxu0 0.0
      %2772 = vmatprep.subr.mxu0 0.0
      %2773 = vmatpush2.msra.mxu0 0.0
      %2774 = vmatprep.subr.mxu0 0.0
      %2775 = vmatpush2.msra.mxu0 0.0
      %2776 = vmatprep.subr.mxu0 0.0
      %2777 = vmatpush2.msra.mxu0 0.0
      %2778 = vmatprep.subr.mxu0 0.0
      %2779 = vmatpush2.msra.mxu0 0.0
      %2780 = vmatprep.subr.mxu0 0.0
      %2781 = vmatpush2.msra.mxu0 0.0
      %2782 = vmatprep.subr.mxu0 0.0
      %2783 = vmatpush2.msra.mxu0 0.0
      %2784 = vmatprep.subr.mxu0 0.0
      %2785 = vmatpush2.msra.mxu0 0.0
      %2786 = vmatprep.mubr.f32.mxu0 0.0
      %2787 = vmatmul.mubr.f32.gmra.mxu0 %v2622
      %v2788 = vpop.f32.mrf.mxu0
      %v2789 = vadd.f32 %v2700, %v2788
      %v2790 = vpop.f32.mrf.mxu0
      %v2791 = vadd.f32 %v2702, %v2790
      %2792 = vmatprep.mubr.f32.mxu0 0.0
      %2793 = vmatmul.mubr.f32.gmra.mxu0 %v2625
      %v2794 = vpop.f32.mrf.mxu0
      %v2795 = vadd.f32 %v2706, %v2794
      %v2796 = vpop.f32.mrf.mxu0
      %v2797 = vadd.f32 %v2708, %v2796
      %2798 = vmatprep.mubr.f32.mxu0 0.0
      %2799 = vmatmul.mubr.f32.gmra.mxu0 %v2628
      %v2800 = vpop.f32.mrf.mxu0
      %v2801 = vadd.f32 %v2712, %v2800
      %v2802 = vpop.f32.mrf.mxu0
      %v2803 = vadd.f32 %v2714, %v2802
      %2804 = vmatprep.mubr.f32.mxu0 0.0
      %2805 = vmatmul.mubr.f32.gmra.mxu0 %v2631
      %v2806 = vpop.f32.mrf.mxu0
      %v2807 = vadd.f32 %v2718, %v2806
      %v2808 = vpop.f32.mrf.mxu0
      %v2809 = vadd.f32 %v2720, %v2808
      %2810 = vdwg.mxu0
      %v2811 = vmax.f32 %v2789, 0.0
      %v2812 = vmax.f32 %v2791, 0.0
      %v2813 = vmax.f32 %v2795, 0.0
      %v2814 = vmax.f32 %v2797, 0.0
      %v2815 = vmax.f32 %v2801, 0.0
      %v2816 = vmax.f32 %v2803, 0.0
      %v2817 = vmax.f32 %v2807, 0.0
      %v2818 = vmax.f32 %v2809, 0.0
      %v2819 = vld [vmem:[%s9] sm:$0x3]
      %v2820 = vld [vmem:[%s10] sm:$0xff]
      %v2821 = vld [vmem:[%s10 + $0x8] sm:$0xff]
      %v2822 = vld [vmem:[%s10 + $0x10] sm:$0xff]
      %v2823 = vld [vmem:[%s10 + $0x18] sm:$0xff]
      %v2824 = vadd.f32 %v2811, %v2812
      %2825 = vadd.xlane.f32.xlu0 %v2824
      %v2826 = vpop.xlane.xlu0 %2825
      %v2827 = vadd.f32 %v2813, %v2814
      %2828 = vadd.xlane.f32.xlu0 %v2827
      %v2829 = vpop.xlane.xlu0 %2828
      %v2830 = vadd.f32 %v2815, %v2816
      %2831 = vadd.xlane.f32.xlu0 %v2830
      %v2832 = vpop.xlane.xlu0 %2831
      %v2833 = vadd.f32 %v2817, %v2818
      %2834 = vadd.xlane.f32.xlu0 %v2833
      %v2835 = vpop.xlane.xlu0 %2834
      %v2836 = vmul.f32 %v2826, %v746
      %v2837 = vmul.f32 %v2829, %v746
      %v2838 = vmul.f32 %v2832, %v746
      %v2839 = vmul.f32 %v2835, %v746
      %v2840 = vmax.f32 %v2811, %v2812
      %2841 = vmax.xlane.f32.xlu0 %v2840
      %v2842 = vpop.xlane.xlu0 %2841
      %v2843 = vmax.f32 %v2813, %v2814
      %2844 = vmax.xlane.f32.xlu0 %v2843
      %v2845 = vpop.xlane.xlu0 %2844
      %v2846 = vmax.f32 %v2815, %v2816
      %2847 = vmax.xlane.f32.xlu0 %v2846
      %v2848 = vpop.xlane.xlu0 %2847
      %v2849 = vmax.f32 %v2817, %v2818
      %2850 = vmax.xlane.f32.xlu0 %v2849
      %v2851 = vpop.xlane.xlu0 %2850
      %v2852 = vsel %vm763, %v2836, %v2842
      %v2853 = vsel %vm763, %v2837, %v2845
      %v2854 = vsel %vm763, %v2838, %v2848
      %v2855 = vsel %vm763, %v2839, %v2851
      %v2857 = vsel %vm768, %v2819, 0
      %2859 = vmatprep.subr.mxu0 0.0
      %2860 = vmatpush1.msra.mxu0 0.0
      %2861 = vmatprep.subr.mxu0 0.0
      %2862 = vmatpush1.msra.mxu0 0.0
      %2863 = vmatprep.subr.mxu0 0.0
      %2864 = vmatpush1.msra.mxu0 0.0
      %2865 = vmatprep.subr.mxu0 0.0
      %2866 = vmatpush1.msra.mxu0 0.0
      %2867 = vmatprep.subr.mxu0 0.0
      %2868 = vmatpush1.msra.mxu0 0.0
      %2869 = vmatprep.subr.mxu0 0.0
      %2870 = vmatpush1.msra.mxu0 0.0
      %2871 = vmatprep.subr.mxu0 0.0
      %2872 = vmatpush1.msra.mxu0 0.0
      %2873 = vmatprep.subr.mxu0 0.0
      %2874 = vmatpush1.msra.mxu0 0.0
      %2875 = vmatprep.subr.mxu0 0.0
      %2876 = vmatpush1.msra.mxu0 0.0
      %2877 = vmatprep.subr.mxu0 0.0
      %2878 = vmatpush1.msra.mxu0 0.0
      %2879 = vmatprep.subr.mxu0 0.0
      %2880 = vmatpush1.msra.mxu0 0.0
      %2881 = vmatprep.subr.mxu0 0.0
      %2882 = vmatpush1.msra.mxu0 0.0
      %2883 = vmatprep.subr.mxu0 0.0
      %2884 = vmatpush1.msra.mxu0 %v2855
      %2885 = vmatprep.subr.mxu0 0.0
      %2886 = vmatpush1.msra.mxu0 %v2854
      %2887 = vmatprep.subr.mxu0 0.0
      %2888 = vmatpush1.msra.mxu0 %v2853
      %2889 = vmatprep.subr.mxu0 0.0
      %2890 = vmatpush1.msra.mxu0 %v2852
      %2891 = vmatprep.subr.mxu0 0.0
      %2892 = vmatpush2.msra.mxu0 0.0
      %2893 = vmatprep.subr.mxu0 0.0
      %2894 = vmatpush2.msra.mxu0 0.0
      %2895 = vmatprep.subr.mxu0 0.0
      %2896 = vmatpush2.msra.mxu0 0.0
      %2897 = vmatprep.subr.mxu0 0.0
      %2898 = vmatpush2.msra.mxu0 0.0
      %2899 = vmatprep.subr.mxu0 0.0
      %2900 = vmatpush2.msra.mxu0 0.0
      %2901 = vmatprep.subr.mxu0 0.0
      %2902 = vmatpush2.msra.mxu0 0.0
      %2903 = vmatprep.subr.mxu0 0.0
      %2904 = vmatpush2.msra.mxu0 0.0
      %2905 = vmatprep.subr.mxu0 0.0
      %2906 = vmatpush2.msra.mxu0 0.0
      %2907 = vmatprep.subr.mxu0 0.0
      %2908 = vmatpush2.msra.mxu0 0.0
      %2909 = vmatprep.subr.mxu0 0.0
      %2910 = vmatpush2.msra.mxu0 0.0
      %2911 = vmatprep.subr.mxu0 0.0
      %2912 = vmatpush2.msra.mxu0 0.0
      %2913 = vmatprep.subr.mxu0 0.0
      %2914 = vmatpush2.msra.mxu0 0.0
      %2915 = vmatprep.subr.mxu0 0.0
      %2916 = vmatpush2.msra.mxu0 0.0
      %2917 = vmatprep.subr.mxu0 0.0
      %2918 = vmatpush2.msra.mxu0 0.0
      %2919 = vmatprep.subr.mxu0 0.0
      %2920 = vmatpush2.msra.mxu0 0.0
      %2921 = vmatprep.subr.mxu0 0.0
      %2922 = vmatpush2.msra.mxu0 0.0
      %2923 = vmatprep.mubr.f32.mxu0 0.0
      %2924 = vmatmul.mubr.f32.gmra.mxu0 %v2857
      %v2925 = vpop.f32.mrf.mxu0
      %v2926 = vadd.f32 0.0, %v2925
      %v2927 = vpop.f32.mrf.mxu0
      %2928 = vdwg.mxu0
      %v2929 = vmax.f32 %v2926, 0.0
      %v2931 = vsel %vm843, %v2820, 0
      %v2934 = vsel %vm843, %v2821, 0
      %v2937 = vsel %vm843, %v2822, 0
      %v2940 = vsel %vm843, %v2823, 0
      %v2943 = vsel %vm856, %v2929, 0
      %2945 = vmatprep.subr.mxu0 0.0
      %2946 = vmatpush1.msra.mxu0 0.0
      %2947 = vmatprep.subr.mxu0 0.0
      %2948 = vmatpush1.msra.mxu0 0.0
      %2949 = vmatprep.subr.mxu0 0.0
      %2950 = vmatpush1.msra.mxu0 0.0
      %2951 = vmatprep.subr.mxu0 0.0
      %2952 = vmatpush1.msra.mxu0 0.0
      %2953 = vmatprep.subr.mxu0 0.0
      %2954 = vmatpush1.msra.mxu0 0.0
      %2955 = vmatprep.subr.mxu0 0.0
      %2956 = vmatpush1.msra.mxu0 0.0
      %2957 = vmatprep.subr.mxu0 0.0
      %2958 = vmatpush1.msra.mxu0 0.0
      %2959 = vmatprep.subr.mxu0 0.0
      %2960 = vmatpush1.msra.mxu0 0.0
      %2961 = vmatprep.subr.mxu0 0.0
      %2962 = vmatpush1.msra.mxu0 0.0
      %2963 = vmatprep.subr.mxu0 0.0
      %2964 = vmatpush1.msra.mxu0 0.0
      %2965 = vmatprep.subr.mxu0 0.0
      %2966 = vmatpush1.msra.mxu0 0.0
      %2967 = vmatprep.subr.mxu0 0.0
      %2968 = vmatpush1.msra.mxu0 0.0
      %2969 = vmatprep.subr.mxu0 0.0
      %2970 = vmatpush1.msra.mxu0 0.0
      %2971 = vmatprep.subr.mxu0 0.0
      %2972 = vmatpush1.msra.mxu0 0.0
      %2973 = vmatprep.subr.mxu0 0.0
      %2974 = vmatpush1.msra.mxu0 0.0
      %2975 = vmatprep.subr.mxu0 0.0
      %2976 = vmatpush1.msra.mxu0 %v2943
      %2977 = vmatprep.subr.mxu0 0.0
      %2978 = vmatpush2.msra.mxu0 0.0
      %2979 = vmatprep.subr.mxu0 0.0
      %2980 = vmatpush2.msra.mxu0 0.0
      %2981 = vmatprep.subr.mxu0 0.0
      %2982 = vmatpush2.msra.mxu0 0.0
      %2983 = vmatprep.subr.mxu0 0.0
      %2984 = vmatpush2.msra.mxu0 0.0
      %2985 = vmatprep.subr.mxu0 0.0
      %2986 = vmatpush2.msra.mxu0 0.0
      %2987 = vmatprep.subr.mxu0 0.0
      %2988 = vmatpush2.msra.mxu0 0.0
      %2989 = vmatprep.subr.mxu0 0.0
      %2990 = vmatpush2.msra.mxu0 0.0
      %2991 = vmatprep.subr.mxu0 0.0
      %2992 = vmatpush2.msra.mxu0 0.0
      %2993 = vmatprep.subr.mxu0 0.0
      %2994 = vmatpush2.msra.mxu0 0.0
      %2995 = vmatprep.subr.mxu0 0.0
      %2996 = vmatpush2.msra.mxu0 0.0
      %2997 = vmatprep.subr.mxu0 0.0
      %2998 = vmatpush2.msra.mxu0 0.0
      %2999 = vmatprep.subr.mxu0 0.0
      %3000 = vmatpush2.msra.mxu0 0.0
      %3001 = vmatprep.subr.mxu0 0.0
      %3002 = vmatpush2.msra.mxu0 0.0
      %3003 = vmatprep.subr.mxu0 0.0
      %3004 = vmatpush2.msra.mxu0 0.0
      %3005 = vmatprep.subr.mxu0 0.0
      %3006 = vmatpush2.msra.mxu0 0.0
      %3007 = vmatprep.subr.mxu0 0.0
      %3008 = vmatpush2.msra.mxu0 0.0
      %3009 = vmatprep.mubr.f32.mxu0 0.0
      %3010 = vmatmul.mubr.f32.gmra.mxu0 %v2931
      %v3011 = vpop.f32.mrf.mxu0
      %v3012 = vadd.f32 0.0, %v3011
      %v3013 = vpop.f32.mrf.mxu0
      %3014 = vmatprep.mubr.f32.mxu0 0.0
      %3015 = vmatmul.mubr.f32.gmra.mxu0 %v2934
      %v3016 = vpop.f32.mrf.mxu0
      %v3017 = vadd.f32 0.0, %v3016
      %v3018 = vpop.f32.mrf.mxu0
      %3019 = vmatprep.mubr.f32.mxu0 0.0
      %3020 = vmatmul.mubr.f32.gmra.mxu0 %v2937
      %v3021 = vpop.f32.mrf.mxu0
      %v3022 = vadd.f32 0.0, %v3021
      %v3023 = vpop.f32.mrf.mxu0
      %3024 = vmatprep.mubr.f32.mxu0 0.0
      %3025 = vmatmul.mubr.f32.gmra.mxu0 %v2940
      %v3026 = vpop.f32.mrf.mxu0
      %v3027 = vadd.f32 0.0, %v3026
      %v3028 = vpop.f32.mrf.mxu0
      %3029 = vdwg.mxu0
      %3034 = vrot.lane.b32.xlu0 %v3012, 127
      %v3035 = vpop.permute.xlu0 %3034
      %3036 = vrot.lane.b32.xlu0 %v3017, 127
      %v3037 = vpop.permute.xlu0 %3036
      %3038 = vrot.lane.b32.xlu0 %v3022, 127
      %v3039 = vpop.permute.xlu0 %3038
      %3040 = vrot.lane.b32.xlu0 %v3027, 127
      %v3041 = vpop.permute.xlu0 %3040
      %v3046 = vadd.f32 %v3012, %v3035
      %v3047 = vadd.f32 %v3017, %v3037
      %v3048 = vadd.f32 %v3022, %v3039
      %v3049 = vadd.f32 %v3027, %v3041
      %v3050 = vxor.u32 %v3046, 2147483648
      %v3051 = vxor.u32 %v3047, 2147483648
      %v3052 = vxor.u32 %v3048, 2147483648
      %v3053 = vxor.u32 %v3049, 2147483648
      %v3054 = vmul.f32 %v3050, 1.442695
      %v3055 = vpow.pop %v3054
      %v3056 = vmul.f32 %v3051, 1.442695
      %v3057 = vpow.pop %v3056
      %v3058 = vmul.f32 %v3052, 1.442695
      %v3059 = vpow.pop %v3058
      %v3060 = vmul.f32 %v3053, 1.442695
      %v3061 = vpow.pop %v3060
      %v3062 = vadd.f32 %v3055, 1.0
      %v3063 = vadd.f32 %v3057, 1.0
      %v3064 = vadd.f32 %v3059, 1.0
      %v3065 = vadd.f32 %v3061, 1.0
      %v3066 = vrcp.pop %v3062
      %v3067 = vmul.f32 1.0, %v3066
      %v3068 = vrcp.pop %v3063
      %v3069 = vmul.f32 1.0, %v3068
      %v3070 = vrcp.pop %v3064
      %v3071 = vmul.f32 1.0, %v3070
      %v3072 = vrcp.pop %v3065
      %v3073 = vmul.f32 1.0, %v3072
      %3075 = vset.pattern.permute.xlu0 0
      %3076 = vperm.xlu0 %3075, %v3067
      %v3077 = vpop.permute.xlu0 %3076
      %3080 = vset.pattern.permute.xlu0 0
      %3081 = vperm.xlu0 %3080, %v3069
      %v3082 = vpop.permute.xlu0 %3081
      %3085 = vset.pattern.permute.xlu0 0
      %3086 = vperm.xlu0 %3085, %v3071
      %v3087 = vpop.permute.xlu0 %3086
      %3090 = vset.pattern.permute.xlu0 0
      %3091 = vperm.xlu0 %3090, %v3073
      %v3092 = vpop.permute.xlu0 %3091
      %v3094 = vmul.f32 %v2811, %v3077
      %v3095 = vmul.f32 %v2812, %v3077
      %v3096 = vmul.f32 %v2813, %v3082
      %v3097 = vmul.f32 %v2814, %v3082
      %v3098 = vmul.f32 %v2815, %v3087
      %v3099 = vmul.f32 %v2816, %v3087
      %v3100 = vmul.f32 %v2817, %v3092
      %v3101 = vmul.f32 %v2818, %v3092
      %v3102 = vld [vmem:[%s11] sm:$0xff]
      %v3103 = vld [vmem:[%s11 + $0x8] sm:$0xff]
      %v3104 = vld [vmem:[%s11 + $0x10] sm:$0xff]
      %v3105 = vld [vmem:[%s11 + $0x18] sm:$0xff]
      %v3106 = vld [vmem:[%s11 + $0x20] sm:$0xff]
      %v3107 = vld [vmem:[%s11 + $0x28] sm:$0xff]
      %v3108 = vld [vmem:[%s11 + $0x30] sm:$0xff]
      %v3109 = vld [vmem:[%s11 + $0x38] sm:$0xff]
      %v3110 = vld [vmem:[%s11 + $0x40] sm:$0xff]
      %v3111 = vld [vmem:[%s11 + $0x48] sm:$0xff]
      %v3112 = vld [vmem:[%s11 + $0x50] sm:$0xff]
      %v3113 = vld [vmem:[%s11 + $0x58] sm:$0xff]
      %v3114 = vld [vmem:[%s11 + $0x60] sm:$0x3]
      %v3115 = vadd.f32 %v3094, %v3096
      %v3116 = vadd.f32 %v3115, %v3098
      %v3117 = vadd.f32 %v3116, %v3100
      %v3118 = vrot.slane %v3117, 4
      %v3119 = vadd.f32 %v3117, %v3118
      %v3120 = vrot.slane %v3119, 2
      %v3121 = vadd.f32 %v3119, %v3120
      %v3122 = vrot.slane %v3121, 1
      %v3123 = vadd.f32 %v3121, %v3122
      %v3124 = vadd.f32 %v3095, %v3097
      %v3125 = vadd.f32 %v3124, %v3099
      %v3126 = vadd.f32 %v3125, %v3101
      %v3127 = vrot.slane %v3126, 4
      %v3128 = vadd.f32 %v3126, %v3127
      %v3129 = vrot.slane %v3128, 2
      %v3130 = vadd.f32 %v3128, %v3129
      %v3131 = vrot.slane %v3130, 1
      %v3132 = vadd.f32 %v3130, %v3131
      %v3133 = vmul.f32 %v3123, %v1048
      %v3134 = vmul.f32 %v3132, %v1048
      %v3135 = vmax.f32 %v3094, %v3098
      %v3136 = vmax.f32 %v3096, %v3100
      %v3137 = vmax.f32 %v3135, %v3136
      %v3138 = vrot.slane %v3137, 4
      %v3139 = vmax.f32 %v3137, %v3138
      %v3140 = vrot.slane %v3139, 2
      %v3141 = vmax.f32 %v3139, %v3140
      %v3142 = vrot.slane %v3141, 1
      %v3143 = vmax.f32 %v3141, %v3142
      %v3144 = vmax.f32 %v3095, %v3099
      %v3145 = vmax.f32 %v3097, %v3101
      %v3146 = vmax.f32 %v3144, %v3145
      %v3147 = vrot.slane %v3146, 4
      %v3148 = vmax.f32 %v3146, %v3147
      %v3149 = vrot.slane %v3148, 2
      %v3150 = vmax.f32 %v3148, %v3149
      %v3151 = vrot.slane %v3150, 1
      %v3152 = vmax.f32 %v3150, %v3151
      %v3153 = vsel %vm1069, %v3133, %v3143
      %v3154 = vsel %vm1069, %v3134, %v3152
      %3157 = vrot.lane.b32.xlu0 %v3153, 51
      %v3158 = vpop.permute.xlu0 %3157
      %3159 = vrot.lane.b32.xlu0 %v3154, 51
      %v3160 = vpop.permute.xlu0 %3159
      %v3161 = vsel %vm1078, %v3158, %v3160
      %v3165 = vsel %vm1078, 0.0, %v3158
      %v3166 = vsel %vm1078, %v3160, 0.0
      %v3167 = vsel %vm1098, %v3165, 0.0
      %v3168 = vsel %vm1099, %v3161, 0.0
      %3171 = vrot.lane.b32.xlu0 %v3165, 127
      %v3172 = vpop.permute.xlu0 %3171
      %3173 = vrot.lane.b32.xlu0 %v3161, 127
      %v3174 = vpop.permute.xlu0 %3173
      %3175 = vrot.lane.b32.xlu0 %v3166, 127
      %v3176 = vpop.permute.xlu0 %3175
      %v3177 = vsel %vm545, %v3172, %v3174
      %v3178 = vsel %vm545, %v3174, %v3176
      %v3181 = vsel %vm1115, %v3177, 0.0
      %v3182 = vsel %vm1116, %v3178, 0.0
      %3183 = vrot.lane.b32.xlu0 %v3165, 126
      %v3184 = vpop.permute.xlu0 %3183
      %3185 = vrot.lane.b32.xlu0 %v3161, 126
      %v3186 = vpop.permute.xlu0 %3185
      %3187 = vrot.lane.b32.xlu0 %v3166, 126
      %v3188 = vpop.permute.xlu0 %3187
      %v3189 = vsel %vm477, %v3184, %v3186
      %v3190 = vsel %vm477, %v3186, %v3188
      %v3193 = vsel %vm450, %v3189, 0.0
      %v3194 = vsel %vm451, %v3190, 0.0
      %3195 = vrot.lane.b32.xlu0 %v3165, 124
      %v3196 = vpop.permute.xlu0 %3195
      %3197 = vrot.lane.b32.xlu0 %v3161, 124
      %v3198 = vpop.permute.xlu0 %3197
      %3199 = vrot.lane.b32.xlu0 %v3166, 124
      %v3200 = vpop.permute.xlu0 %3199
      %v3201 = vsel %vm1149, %v3196, %v3198
      %v3202 = vsel %vm1149, %v3198, %v3200
      %v3205 = vsel %vm467, %v3201, 0.0
      %v3206 = vsel %vm468, %v3202, 0.0
      %3207 = vrot.lane.b32.xlu0 %v3165, 123
      %v3208 = vpop.permute.xlu0 %3207
      %3209 = vrot.lane.b32.xlu0 %v3161, 123
      %v3210 = vpop.permute.xlu0 %3209
      %3211 = vrot.lane.b32.xlu0 %v3166, 123
      %v3212 = vpop.permute.xlu0 %3211
      %v3213 = vsel %vm1177, %v3208, %v3210
      %v3214 = vsel %vm1177, %v3210, %v3212
      %v3217 = vsel %vm1169, %v3213, 0.0
      %v3218 = vsel %vm1170, %v3214, 0.0
      %3219 = vrot.lane.b32.xlu0 %v3165, 122
      %v3220 = vpop.permute.xlu0 %3219
      %3221 = vrot.lane.b32.xlu0 %v3161, 122
      %v3222 = vpop.permute.xlu0 %3221
      %3223 = vrot.lane.b32.xlu0 %v3166, 122
      %v3224 = vpop.permute.xlu0 %3223
      %v3225 = vsel %vm1205, %v3220, %v3222
      %v3226 = vsel %vm1205, %v3222, %v3224
      %v3229 = vsel %vm1197, %v3225, 0.0
      %v3230 = vsel %vm1198, %v3226, 0.0
      %3231 = vrot.lane.b32.xlu0 %v3165, 112
      %v3232 = vpop.permute.xlu0 %3231
      %3233 = vrot.lane.b32.xlu0 %v3161, 112
      %v3234 = vpop.permute.xlu0 %3233
      %3235 = vrot.lane.b32.xlu0 %v3166, 112
      %v3236 = vpop.permute.xlu0 %3235
      %v3237 = vsel %vm490, %v3232, %v3234
      %v3238 = vsel %vm490, %v3234, %v3236
      %v3241 = vsel %vm1098, %v3237, 0.0
      %v3242 = vsel %vm1099, %v3238, 0.0
      %3243 = vrot.lane.b32.xlu0 %v3165, 111
      %v3244 = vpop.permute.xlu0 %3243
      %3245 = vrot.lane.b32.xlu0 %v3161, 111
      %v3246 = vpop.permute.xlu0 %3245
      %3247 = vrot.lane.b32.xlu0 %v3166, 111
      %v3248 = vpop.permute.xlu0 %3247
      %v3249 = vsel %vm562, %v3244, %v3246
      %v3250 = vsel %vm562, %v3246, %v3248
      %v3253 = vsel %vm1115, %v3249, 0.0
      %v3254 = vsel %vm1116, %v3250, 0.0
      %3255 = vrot.lane.b32.xlu0 %v3165, 110
      %v3256 = vpop.permute.xlu0 %3255
      %3257 = vrot.lane.b32.xlu0 %v3161, 110
      %v3258 = vpop.permute.xlu0 %3257
      %3259 = vrot.lane.b32.xlu0 %v3166, 110
      %v3260 = vpop.permute.xlu0 %3259
      %v3261 = vsel %vm503, %v3256, %v3258
      %v3262 = vsel %vm503, %v3258, %v3260
      %v3265 = vsel %vm450, %v3261, 0.0
      %v3266 = vsel %vm451, %v3262, 0.0
      %3267 = vrot.lane.b32.xlu0 %v3165, 108
      %v3268 = vpop.permute.xlu0 %3267
      %3269 = vrot.lane.b32.xlu0 %v3161, 108
      %v3270 = vpop.permute.xlu0 %3269
      %3271 = vrot.lane.b32.xlu0 %v3166, 108
      %v3272 = vpop.permute.xlu0 %3271
      %v3273 = vsel %vm1254, %v3268, %v3270
      %v3274 = vsel %vm1254, %v3270, %v3272
      %v3277 = vsel %vm467, %v3273, 0.0
      %v3278 = vsel %vm468, %v3274, 0.0
      %3279 = vrot.lane.b32.xlu0 %v3165, 107
      %v3280 = vpop.permute.xlu0 %3279
      %3281 = vrot.lane.b32.xlu0 %v3161, 107
      %v3282 = vpop.permute.xlu0 %3281
      %3283 = vrot.lane.b32.xlu0 %v3166, 107
      %v3284 = vpop.permute.xlu0 %3283
      %v3285 = vsel %vm1267, %v3280, %v3282
      %v3286 = vsel %vm1267, %v3282, %v3284
      %v3289 = vsel %vm1169, %v3285, 0.0
      %v3290 = vsel %vm1170, %v3286, 0.0
      %3291 = vrot.lane.b32.xlu0 %v3165, 106
      %v3292 = vpop.permute.xlu0 %3291
      %3293 = vrot.lane.b32.xlu0 %v3161, 106
      %v3294 = vpop.permute.xlu0 %3293
      %3295 = vrot.lane.b32.xlu0 %v3166, 106
      %v3296 = vpop.permute.xlu0 %3295
      %v3297 = vsel %vm1280, %v3292, %v3294
      %v3298 = vsel %vm1280, %v3294, %v3296
      %v3301 = vsel %vm1197, %v3297, 0.0
      %v3302 = vsel %vm1198, %v3298, 0.0
      %3303 = vrot.lane.b32.xlu0 %v3165, 96
      %v3304 = vpop.permute.xlu0 %3303
      %3305 = vrot.lane.b32.xlu0 %v3161, 96
      %v3306 = vpop.permute.xlu0 %3305
      %3307 = vrot.lane.b32.xlu0 %v3166, 96
      %v3308 = vpop.permute.xlu0 %3307
      %v3309 = vsel %vm516, %v3304, %v3306
      %v3310 = vsel %vm516, %v3306, %v3308
      %v3313 = vsel %vm1098, %v3309, 0.0
      %v3314 = vsel %vm1099, %v3310, 0.0
      %3315 = vrot.lane.b32.xlu0 %v3165, 95
      %v3316 = vpop.permute.xlu0 %3315
      %3317 = vrot.lane.b32.xlu0 %v3161, 95
      %v3318 = vpop.permute.xlu0 %3317
      %3319 = vrot.lane.b32.xlu0 %v3166, 95
      %v3320 = vpop.permute.xlu0 %3319
      %v3321 = vsel %vm579, %v3316, %v3318
      %v3322 = vsel %vm579, %v3318, %v3320
      %v3325 = vsel %vm1115, %v3321, 0.0
      %v3326 = vsel %vm1116, %v3322, 0.0
      %3327 = vrot.lane.b32.xlu0 %v3165, 94
      %v3328 = vpop.permute.xlu0 %3327
      %3329 = vrot.lane.b32.xlu0 %v3161, 94
      %v3330 = vpop.permute.xlu0 %3329
      %3331 = vrot.lane.b32.xlu0 %v3166, 94
      %v3332 = vpop.permute.xlu0 %3331
      %v3333 = vsel %vm529, %v3328, %v3330
      %v3334 = vsel %vm529, %v3330, %v3332
      %v3337 = vsel %vm450, %v3333, 0.0
      %v3338 = vsel %vm451, %v3334, 0.0
      %3339 = vrot.lane.b32.xlu0 %v3165, 92
      %v3340 = vpop.permute.xlu0 %3339
      %3341 = vrot.lane.b32.xlu0 %v3161, 92
      %v3342 = vpop.permute.xlu0 %3341
      %3343 = vrot.lane.b32.xlu0 %v3166, 92
      %v3344 = vpop.permute.xlu0 %3343
      %v3345 = vsel %vm1329, %v3340, %v3342
      %v3346 = vsel %vm1329, %v3342, %v3344
      %v3349 = vsel %vm467, %v3345, 0.0
      %v3350 = vsel %vm468, %v3346, 0.0
      %3351 = vrot.lane.b32.xlu0 %v3165, 91
      %v3352 = vpop.permute.xlu0 %3351
      %3353 = vrot.lane.b32.xlu0 %v3161, 91
      %v3354 = vpop.permute.xlu0 %3353
      %3355 = vrot.lane.b32.xlu0 %v3166, 91
      %v3356 = vpop.permute.xlu0 %3355
      %v3357 = vsel %vm1342, %v3352, %v3354
      %v3358 = vsel %vm1342, %v3354, %v3356
      %v3361 = vsel %vm1169, %v3357, 0.0
      %v3362 = vsel %vm1170, %v3358, 0.0
      %3363 = vrot.lane.b32.xlu0 %v3165, 90
      %v3364 = vpop.permute.xlu0 %3363
      %3365 = vrot.lane.b32.xlu0 %v3161, 90
      %v3366 = vpop.permute.xlu0 %3365
      %3367 = vrot.lane.b32.xlu0 %v3166, 90
      %v3368 = vpop.permute.xlu0 %3367
      %v3369 = vsel %vm1355, %v3364, %v3366
      %v3370 = vsel %vm1355, %v3366, %v3368
      %v3373 = vsel %vm1197, %v3369, 0.0
      %v3374 = vsel %vm1198, %v3370, 0.0
      %3375 = vrot.lane.b32.xlu0 %v3165, 80
      %v3376 = vpop.permute.xlu0 %3375
      %3377 = vrot.lane.b32.xlu0 %v3161, 80
      %v3378 = vpop.permute.xlu0 %3377
      %3379 = vrot.lane.b32.xlu0 %v3166, 80
      %v3380 = vpop.permute.xlu0 %3379
      %v3381 = vsel %vm1368, %v3376, %v3378
      %v3382 = vsel %vm1368, %v3378, %v3380
      %v3385 = vsel %vm1098, %v3381, 0.0
      %v3386 = vsel %vm1099, %v3382, 0.0
      %3387 = vrot.lane.b32.xlu0 %v3165, 79
      %v3388 = vpop.permute.xlu0 %3387
      %3389 = vrot.lane.b32.xlu0 %v3161, 79
      %v3390 = vpop.permute.xlu0 %3389
      %3391 = vrot.lane.b32.xlu0 %v3166, 79
      %v3392 = vpop.permute.xlu0 %3391
      %v3393 = vsel %vm1381, %v3388, %v3390
      %v3394 = vsel %vm1381, %v3390, %v3392
      %v3397 = vsel %vm1115, %v3393, 0.0
      %v3398 = vsel %vm1116, %v3394, 0.0
      %3399 = vrot.lane.b32.xlu0 %v3165, 78
      %v3400 = vpop.permute.xlu0 %3399
      %3401 = vrot.lane.b32.xlu0 %v3161, 78
      %v3402 = vpop.permute.xlu0 %3401
      %3403 = vrot.lane.b32.xlu0 %v3166, 78
      %v3404 = vpop.permute.xlu0 %3403
      %v3405 = vsel %vm1394, %v3400, %v3402
      %v3406 = vsel %vm1394, %v3402, %v3404
      %v3409 = vsel %vm450, %v3405, 0.0
      %v3410 = vsel %vm451, %v3406, 0.0
      %3411 = vrot.lane.b32.xlu0 %v3165, 76
      %v3412 = vpop.permute.xlu0 %3411
      %3413 = vrot.lane.b32.xlu0 %v3161, 76
      %v3414 = vpop.permute.xlu0 %3413
      %3415 = vrot.lane.b32.xlu0 %v3166, 76
      %v3416 = vpop.permute.xlu0 %3415
      %v3417 = vsel %vm1407, %v3412, %v3414
      %v3418 = vsel %vm1407, %v3414, %v3416
      %v3421 = vsel %vm467, %v3417, 0.0
      %v3422 = vsel %vm468, %v3418, 0.0
      %3423 = vrot.lane.b32.xlu0 %v3165, 75
      %v3424 = vpop.permute.xlu0 %3423
      %3425 = vrot.lane.b32.xlu0 %v3161, 75
      %v3426 = vpop.permute.xlu0 %3425
      %3427 = vrot.lane.b32.xlu0 %v3166, 75
      %v3428 = vpop.permute.xlu0 %3427
      %v3429 = vsel %vm1420, %v3424, %v3426
      %v3430 = vsel %vm1420, %v3426, %v3428
      %v3433 = vsel %vm1169, %v3429, 0.0
      %v3434 = vsel %vm1170, %v3430, 0.0
      %3435 = vrot.lane.b32.xlu0 %v3165, 74
      %v3436 = vpop.permute.xlu0 %3435
      %3437 = vrot.lane.b32.xlu0 %v3161, 74
      %v3438 = vpop.permute.xlu0 %3437
      %3439 = vrot.lane.b32.xlu0 %v3166, 74
      %v3440 = vpop.permute.xlu0 %3439
      %v3441 = vsel %vm1433, %v3436, %v3438
      %v3442 = vsel %vm1433, %v3438, %v3440
      %v3445 = vsel %vm1197, %v3441, 0.0
      %v3446 = vsel %vm1198, %v3442, 0.0
      %3447 = vrot.lane.b32.xlu0 %v3165, 64
      %v3448 = vpop.permute.xlu0 %3447
      %3449 = vrot.lane.b32.xlu0 %v3161, 64
      %v3450 = vpop.permute.xlu0 %3449
      %3451 = vrot.lane.b32.xlu0 %v3166, 64
      %v3452 = vpop.permute.xlu0 %3451
      %v3453 = vsel %vm1446, %v3448, %v3450
      %v3454 = vsel %vm1446, %v3450, %v3452
      %v3457 = vsel %vm1098, %v3453, 0.0
      %v3458 = vsel %vm1099, %v3454, 0.0
      %3459 = vrot.lane.b32.xlu0 %v3165, 63
      %v3460 = vpop.permute.xlu0 %3459
      %3461 = vrot.lane.b32.xlu0 %v3161, 63
      %v3462 = vpop.permute.xlu0 %3461
      %3463 = vrot.lane.b32.xlu0 %v3166, 63
      %v3464 = vpop.permute.xlu0 %3463
      %v3465 = vsel %vm1459, %v3460, %v3462
      %v3466 = vsel %vm1459, %v3462, %v3464
      %v3469 = vsel %vm1115, %v3465, 0.0
      %v3470 = vsel %vm1116, %v3466, 0.0
      %3471 = vrot.lane.b32.xlu0 %v3165, 62
      %v3472 = vpop.permute.xlu0 %3471
      %3473 = vrot.lane.b32.xlu0 %v3161, 62
      %v3474 = vpop.permute.xlu0 %3473
      %3475 = vrot.lane.b32.xlu0 %v3166, 62
      %v3476 = vpop.permute.xlu0 %3475
      %v3477 = vsel %vm1472, %v3472, %v3474
      %v3478 = vsel %vm1472, %v3474, %v3476
      %v3481 = vsel %vm450, %v3477, 0.0
      %v3482 = vsel %vm451, %v3478, 0.0
      %3483 = vrot.lane.b32.xlu0 %v3165, 60
      %v3484 = vpop.permute.xlu0 %3483
      %3485 = vrot.lane.b32.xlu0 %v3161, 60
      %v3486 = vpop.permute.xlu0 %3485
      %3487 = vrot.lane.b32.xlu0 %v3166, 60
      %v3488 = vpop.permute.xlu0 %3487
      %v3489 = vsel %vm1485, %v3484, %v3486
      %v3490 = vsel %vm1485, %v3486, %v3488
      %v3493 = vsel %vm467, %v3489, 0.0
      %v3494 = vsel %vm468, %v3490, 0.0
      %3495 = vrot.lane.b32.xlu0 %v3165, 59
      %v3496 = vpop.permute.xlu0 %3495
      %3497 = vrot.lane.b32.xlu0 %v3161, 59
      %v3498 = vpop.permute.xlu0 %3497
      %3499 = vrot.lane.b32.xlu0 %v3166, 59
      %v3500 = vpop.permute.xlu0 %3499
      %v3501 = vsel %vm1498, %v3496, %v3498
      %v3502 = vsel %vm1498, %v3498, %v3500
      %v3505 = vsel %vm1169, %v3501, 0.0
      %v3506 = vsel %vm1170, %v3502, 0.0
      %3507 = vrot.lane.b32.xlu0 %v3165, 58
      %v3508 = vpop.permute.xlu0 %3507
      %3509 = vrot.lane.b32.xlu0 %v3161, 58
      %v3510 = vpop.permute.xlu0 %3509
      %3511 = vrot.lane.b32.xlu0 %v3166, 58
      %v3512 = vpop.permute.xlu0 %3511
      %v3513 = vsel %vm1511, %v3508, %v3510
      %v3514 = vsel %vm1511, %v3510, %v3512
      %v3517 = vsel %vm1197, %v3513, 0.0
      %v3518 = vsel %vm1198, %v3514, 0.0
      %3519 = vrot.lane.b32.xlu0 %v3165, 48
      %v3520 = vpop.permute.xlu0 %3519
      %3521 = vrot.lane.b32.xlu0 %v3161, 48
      %v3522 = vpop.permute.xlu0 %3521
      %3523 = vrot.lane.b32.xlu0 %v3166, 48
      %v3524 = vpop.permute.xlu0 %3523
      %v3525 = vsel %vm1524, %v3520, %v3522
      %v3526 = vsel %vm1524, %v3522, %v3524
      %v3529 = vsel %vm1098, %v3525, 0.0
      %v3530 = vsel %vm1099, %v3526, 0.0
      %3531 = vrot.lane.b32.xlu0 %v3165, 47
      %v3532 = vpop.permute.xlu0 %3531
      %3533 = vrot.lane.b32.xlu0 %v3161, 47
      %v3534 = vpop.permute.xlu0 %3533
      %3535 = vrot.lane.b32.xlu0 %v3166, 47
      %v3536 = vpop.permute.xlu0 %3535
      %v3537 = vsel %vm1537, %v3532, %v3534
      %v3538 = vsel %vm1537, %v3534, %v3536
      %v3541 = vsel %vm1115, %v3537, 0.0
      %v3542 = vsel %vm1116, %v3538, 0.0
      %3543 = vrot.lane.b32.xlu0 %v3165, 46
      %v3544 = vpop.permute.xlu0 %3543
      %3545 = vrot.lane.b32.xlu0 %v3161, 46
      %v3546 = vpop.permute.xlu0 %3545
      %3547 = vrot.lane.b32.xlu0 %v3166, 46
      %v3548 = vpop.permute.xlu0 %3547
      %v3549 = vsel %vm1550, %v3544, %v3546
      %v3550 = vsel %vm1550, %v3546, %v3548
      %v3553 = vsel %vm450, %v3549, 0.0
      %v3554 = vsel %vm451, %v3550, 0.0
      %3555 = vrot.lane.b32.xlu0 %v3165, 44
      %v3556 = vpop.permute.xlu0 %3555
      %3557 = vrot.lane.b32.xlu0 %v3161, 44
      %v3558 = vpop.permute.xlu0 %3557
      %3559 = vrot.lane.b32.xlu0 %v3166, 44
      %v3560 = vpop.permute.xlu0 %3559
      %v3561 = vsel %vm1563, %v3556, %v3558
      %v3562 = vsel %vm1563, %v3558, %v3560
      %v3565 = vsel %vm467, %v3561, 0.0
      %v3566 = vsel %vm468, %v3562, 0.0
      %3567 = vrot.lane.b32.xlu0 %v3165, 43
      %v3568 = vpop.permute.xlu0 %3567
      %3569 = vrot.lane.b32.xlu0 %v3161, 43
      %v3570 = vpop.permute.xlu0 %3569
      %3571 = vrot.lane.b32.xlu0 %v3166, 43
      %v3572 = vpop.permute.xlu0 %3571
      %v3573 = vsel %vm1576, %v3568, %v3570
      %v3574 = vsel %vm1576, %v3570, %v3572
      %v3577 = vsel %vm1169, %v3573, 0.0
      %v3578 = vsel %vm1170, %v3574, 0.0
      %3579 = vrot.lane.b32.xlu0 %v3165, 42
      %v3580 = vpop.permute.xlu0 %3579
      %3581 = vrot.lane.b32.xlu0 %v3161, 42
      %v3582 = vpop.permute.xlu0 %3581
      %3583 = vrot.lane.b32.xlu0 %v3166, 42
      %v3584 = vpop.permute.xlu0 %3583
      %v3585 = vsel %vm1589, %v3580, %v3582
      %v3586 = vsel %vm1589, %v3582, %v3584
      %v3589 = vsel %vm1197, %v3585, 0.0
      %v3590 = vsel %vm1198, %v3586, 0.0
      %3591 = vrot.lane.b32.xlu0 %v3165, 32
      %v3592 = vpop.permute.xlu0 %3591
      %3593 = vrot.lane.b32.xlu0 %v3161, 32
      %v3594 = vpop.permute.xlu0 %3593
      %3595 = vrot.lane.b32.xlu0 %v3166, 32
      %v3596 = vpop.permute.xlu0 %3595
      %v3597 = vsel %vm768, %v3592, %v3594
      %v3598 = vsel %vm768, %v3594, %v3596
      %v3601 = vsel %vm1098, %v3597, 0.0
      %v3602 = vsel %vm1099, %v3598, 0.0
      %3603 = vrot.lane.b32.xlu0 %v3165, 31
      %v3604 = vpop.permute.xlu0 %3603
      %3605 = vrot.lane.b32.xlu0 %v3161, 31
      %v3606 = vpop.permute.xlu0 %3605
      %3607 = vrot.lane.b32.xlu0 %v3166, 31
      %v3608 = vpop.permute.xlu0 %3607
      %v3609 = vsel %vm1614, %v3604, %v3606
      %v3610 = vsel %vm1614, %v3606, %v3608
      %v3613 = vsel %vm1115, %v3609, 0.0
      %v3614 = vsel %vm1116, %v3610, 0.0
      %3615 = vrot.lane.b32.xlu0 %v3165, 30
      %v3616 = vpop.permute.xlu0 %3615
      %3617 = vrot.lane.b32.xlu0 %v3161, 30
      %v3618 = vpop.permute.xlu0 %3617
      %3619 = vrot.lane.b32.xlu0 %v3166, 30
      %v3620 = vpop.permute.xlu0 %3619
      %v3621 = vsel %vm1627, %v3616, %v3618
      %v3622 = vsel %vm1627, %v3618, %v3620
      %v3625 = vsel %vm450, %v3621, 0.0
      %v3626 = vsel %vm451, %v3622, 0.0
      %3627 = vrot.lane.b32.xlu0 %v3165, 28
      %v3628 = vpop.permute.xlu0 %3627
      %3629 = vrot.lane.b32.xlu0 %v3161, 28
      %v3630 = vpop.permute.xlu0 %3629
      %3631 = vrot.lane.b32.xlu0 %v3166, 28
      %v3632 = vpop.permute.xlu0 %3631
      %v3633 = vsel %vm1640, %v3628, %v3630
      %v3634 = vsel %vm1640, %v3630, %v3632
      %v3637 = vsel %vm467, %v3633, 0.0
      %v3638 = vsel %vm468, %v3634, 0.0
      %3639 = vrot.lane.b32.xlu0 %v3165, 27
      %v3640 = vpop.permute.xlu0 %3639
      %3641 = vrot.lane.b32.xlu0 %v3161, 27
      %v3642 = vpop.permute.xlu0 %3641
      %3643 = vrot.lane.b32.xlu0 %v3166, 27
      %v3644 = vpop.permute.xlu0 %3643
      %v3645 = vsel %vm1653, %v3640, %v3642
      %v3646 = vsel %vm1653, %v3642, %v3644
      %v3649 = vsel %vm1169, %v3645, 0.0
      %v3650 = vsel %vm1170, %v3646, 0.0
      %3651 = vrot.lane.b32.xlu0 %v3165, 26
      %v3652 = vpop.permute.xlu0 %3651
      %3653 = vrot.lane.b32.xlu0 %v3161, 26
      %v3654 = vpop.permute.xlu0 %3653
      %3655 = vrot.lane.b32.xlu0 %v3166, 26
      %v3656 = vpop.permute.xlu0 %3655
      %v3657 = vsel %vm1666, %v3652, %v3654
      %v3658 = vsel %vm1666, %v3654, %v3656
      %v3661 = vsel %vm1197, %v3657, 0.0
      %v3662 = vsel %vm1198, %v3658, 0.0
      %v3665 = vrot.slane %v3181, 6
      %v3666 = vrot.slane %v3182, 6
      %v3671 = vrot.slane %v3193, 4
      %v3672 = vrot.slane %v3194, 4
      %v3675 = vrot.slane %v3165, 2
      %v3676 = vrot.slane %v3161, 2
      %v3677 = vrot.slane %v3166, 2
      %3678 = vrot.lane.b32.xlu0 %v3675, 125
      %v3679 = vpop.permute.xlu0 %3678
      %3680 = vrot.lane.b32.xlu0 %v3676, 125
      %v3681 = vpop.permute.xlu0 %3680
      %3682 = vrot.lane.b32.xlu0 %v3677, 125
      %v3683 = vpop.permute.xlu0 %3682
      %v3684 = vsel %vm1694, %v3679, %v3681
      %v3685 = vsel %vm1694, %v3681, %v3683
      %v3690 = vrot.slane %v3217, 6
      %v3691 = vrot.slane %v3218, 6
      %v3696 = vrot.slane %v3229, 4
      %v3697 = vrot.slane %v3230, 4
      %v3702 = vrot.slane %v3241, 2
      %v3703 = vrot.slane %v3242, 2
      %v3708 = vrot.slane %v3265, 6
      %v3709 = vrot.slane %v3266, 6
      %v3712 = vrot.slane %v3165, 4
      %v3713 = vrot.slane %v3161, 4
      %v3714 = vrot.slane %v3166, 4
      %3715 = vrot.lane.b32.xlu0 %v3712, 109
      %v3716 = vpop.permute.xlu0 %3715
      %3717 = vrot.lane.b32.xlu0 %v3713, 109
      %v3718 = vpop.permute.xlu0 %3717
      %3719 = vrot.lane.b32.xlu0 %v3714, 109
      %v3720 = vpop.permute.xlu0 %3719
      %v3721 = vsel %vm1732, %v3716, %v3718
      %v3722 = vsel %vm1732, %v3718, %v3720
      %v3727 = vrot.slane %v3277, 2
      %v3728 = vrot.slane %v3278, 2
      %v3733 = vrot.slane %v3301, 6
      %v3734 = vrot.slane %v3302, 6
      %v3739 = vrot.slane %v3313, 4
      %v3740 = vrot.slane %v3314, 4
      %v3745 = vrot.slane %v3325, 2
      %v3746 = vrot.slane %v3326, 2
      %v3749 = vsel %vm856, %v3167, %v3665
      %v3750 = vsel %vm856, %v3168, %v3666
      %v3751 = vsel %vm584, %v3749, %v3671
      %v3752 = vsel %vm584, %v3750, %v3672
      %v3753 = vsel %vm1765, %v3751, %v3684
      %v3754 = vsel %vm1765, %v3752, %v3685
      %v3755 = vsel %vm856, %v3205, %v3690
      %v3756 = vsel %vm856, %v3206, %v3691
      %v3757 = vsel %vm584, %v3755, %v3696
      %v3758 = vsel %vm584, %v3756, %v3697
      %v3759 = vsel %vm1765, %v3757, %v3702
      %v3760 = vsel %vm1765, %v3758, %v3703
      %v3761 = vsel %vm856, %v3253, %v3708
      %v3762 = vsel %vm856, %v3254, %v3709
      %v3763 = vsel %vm584, %v3761, %v3721
      %v3764 = vsel %vm584, %v3762, %v3722
      %v3765 = vsel %vm1765, %v3763, %v3727
      %v3766 = vsel %vm1765, %v3764, %v3728
      %v3767 = vsel %vm856, %v3289, %v3733
      %v3768 = vsel %vm856, %v3290, %v3734
      %v3769 = vsel %vm584, %v3767, %v3739
      %v3770 = vsel %vm584, %v3768, %v3740
      %v3771 = vsel %vm1765, %v3769, %v3745
      %v3772 = vsel %vm1765, %v3770, %v3746
      %v3773 = vrot.slane %v3165, 6
      %v3774 = vrot.slane %v3161, 6
      %v3775 = vrot.slane %v3166, 6
      %3776 = vrot.lane.b32.xlu0 %v3773, 93
      %v3777 = vpop.permute.xlu0 %3776
      %3778 = vrot.lane.b32.xlu0 %v3774, 93
      %v3779 = vpop.permute.xlu0 %3778
      %3780 = vrot.lane.b32.xlu0 %v3775, 93
      %v3781 = vpop.permute.xlu0 %3780
      %v3782 = vsel %vm1795, %v3777, %v3779
      %v3783 = vsel %vm1795, %v3779, %v3781
      %v3788 = vrot.slane %v3349, 4
      %v3789 = vrot.slane %v3350, 4
      %v3794 = vrot.slane %v3361, 2
      %v3795 = vrot.slane %v3362, 2
      %v3800 = vrot.slane %v3385, 6
      %v3801 = vrot.slane %v3386, 6
      %v3806 = vrot.slane %v3397, 4
      %v3807 = vrot.slane %v3398, 4
      %v3812 = vrot.slane %v3409, 2
      %v3813 = vrot.slane %v3410, 2
      %3816 = vrot.lane.b32.xlu0 %v3165, 77
      %v3817 = vpop.permute.xlu0 %3816
      %3818 = vrot.lane.b32.xlu0 %v3161, 77
      %v3819 = vpop.permute.xlu0 %3818
      %3820 = vrot.lane.b32.xlu0 %v3166, 77
      %v3821 = vpop.permute.xlu0 %3820
      %v3822 = vsel %vm1836, %v3817, %v3819
      %v3823 = vsel %vm1836, %v3819, %v3821
      %v3828 = vrot.slane %v3421, 6
      %v3829 = vrot.slane %v3422, 6
      %v3834 = vrot.slane %v3433, 4
      %v3835 = vrot.slane %v3434, 4
      %v3840 = vrot.slane %v3445, 2
      %v3841 = vrot.slane %v3446, 2
      %v3846 = vrot.slane %v3469, 6
      %v3847 = vrot.slane %v3470, 6
      %v3852 = vrot.slane %v3481, 4
      %v3853 = vrot.slane %v3482, 4
      %3856 = vrot.lane.b32.xlu0 %v3675, 61
      %v3857 = vpop.permute.xlu0 %3856
      %3858 = vrot.lane.b32.xlu0 %v3676, 61
      %v3859 = vpop.permute.xlu0 %3858
      %3860 = vrot.lane.b32.xlu0 %v3677, 61
      %v3861 = vpop.permute.xlu0 %3860
      %v3862 = vsel %vm1877, %v3857, %v3859
      %v3863 = vsel %vm1877, %v3859, %v3861
      %v3866 = vsel %vm856, %v3337, %v3782
      %v3867 = vsel %vm856, %v3338, %v3783
      %v3868 = vsel %vm584, %v3866, %v3788
      %v3869 = vsel %vm584, %v3867, %v3789
      %v3870 = vsel %vm1765, %v3868, %v3794
      %v3871 = vsel %vm1765, %v3869, %v3795
      %v3872 = vsel %vm856, %v3373, %v3800
      %v3873 = vsel %vm856, %v3374, %v3801
      %v3874 = vsel %vm584, %v3872, %v3806
      %v3875 = vsel %vm584, %v3873, %v3807
      %v3876 = vsel %vm1765, %v3874, %v3812
      %v3877 = vsel %vm1765, %v3875, %v3813
      %v3878 = vsel %vm856, %v3822, %v3828
      %v3879 = vsel %vm856, %v3823, %v3829
      %v3880 = vsel %vm584, %v3878, %v3834
      %v3881 = vsel %vm584, %v3879, %v3835
      %v3882 = vsel %vm1765, %v3880, %v3840
      %v3883 = vsel %vm1765, %v3881, %v3841
      %v3884 = vsel %vm856, %v3457, %v3846
      %v3885 = vsel %vm856, %v3458, %v3847
      %v3886 = vsel %vm584, %v3884, %v3852
      %v3887 = vsel %vm584, %v3885, %v3853
      %v3888 = vsel %vm1765, %v3886, %v3862
      %v3889 = vsel %vm1765, %v3887, %v3863
      %v3892 = vrot.slane %v3505, 6
      %v3893 = vrot.slane %v3506, 6
      %v3898 = vrot.slane %v3517, 4
      %v3899 = vrot.slane %v3518, 4
      %v3904 = vrot.slane %v3529, 2
      %v3905 = vrot.slane %v3530, 2
      %v3910 = vrot.slane %v3553, 6
      %v3911 = vrot.slane %v3554, 6
      %3914 = vrot.lane.b32.xlu0 %v3712, 45
      %v3915 = vpop.permute.xlu0 %3914
      %3916 = vrot.lane.b32.xlu0 %v3713, 45
      %v3917 = vpop.permute.xlu0 %3916
      %3918 = vrot.lane.b32.xlu0 %v3714, 45
      %v3919 = vpop.permute.xlu0 %3918
      %v3920 = vsel %vm1936, %v3915, %v3917
      %v3921 = vsel %vm1936, %v3917, %v3919
      %v3926 = vrot.slane %v3565, 2
      %v3927 = vrot.slane %v3566, 2
      %v3932 = vrot.slane %v3589, 6
      %v3933 = vrot.slane %v3590, 6
      %v3938 = vrot.slane %v3601, 4
      %v3939 = vrot.slane %v3602, 4
      %v3944 = vrot.slane %v3613, 2
      %v3945 = vrot.slane %v3614, 2
      %3948 = vrot.lane.b32.xlu0 %v3773, 29
      %v3949 = vpop.permute.xlu0 %3948
      %3950 = vrot.lane.b32.xlu0 %v3774, 29
      %v3951 = vpop.permute.xlu0 %3950
      %3952 = vrot.lane.b32.xlu0 %v3775, 29
      %v3953 = vpop.permute.xlu0 %3952
      %v3954 = vsel %vm1971, %v3949, %v3951
      %v3955 = vsel %vm1971, %v3951, %v3953
      %v3960 = vrot.slane %v3637, 4
      %v3961 = vrot.slane %v3638, 4
      %v3966 = vrot.slane %v3649, 2
      %v3967 = vrot.slane %v3650, 2
      %v3970 = vsel %vm856, %v3493, %v3892
      %v3971 = vsel %vm856, %v3494, %v3893
      %v3972 = vsel %vm584, %v3970, %v3898
      %v3973 = vsel %vm584, %v3971, %v3899
      %v3974 = vsel %vm1765, %v3972, %v3904
      %v3975 = vsel %vm1765, %v3973, %v3905
      %v3976 = vsel %vm856, %v3541, %v3910
      %v3977 = vsel %vm856, %v3542, %v3911
      %v3978 = vsel %vm584, %v3976, %v3920
      %v3979 = vsel %vm584, %v3977, %v3921
      %v3980 = vsel %vm1765, %v3978, %v3926
      %v3981 = vsel %vm1765, %v3979, %v3927
      %v3982 = vsel %vm856, %v3577, %v3932
      %v3983 = vsel %vm856, %v3578, %v3933
      %v3984 = vsel %vm584, %v3982, %v3938
      %v3985 = vsel %vm584, %v3983, %v3939
      %v3986 = vsel %vm1765, %v3984, %v3944
      %v3987 = vsel %vm1765, %v3985, %v3945
      %v3988 = vsel %vm856, %v3625, %v3954
      %v3989 = vsel %vm856, %v3626, %v3955
      %v3990 = vsel %vm584, %v3988, %v3960
      %v3991 = vsel %vm584, %v3989, %v3961
      %v3992 = vsel %vm1765, %v3990, %v3966
      %v3993 = vsel %vm1765, %v3991, %v3967
      %3995 = vset.pattern.permute.xlu0 0
      %3996 = vperm.xlu0 %3995, %v3102
      %v3997 = vpop.permute.xlu0 %3996
      %4000 = vset.pattern.permute.xlu0 0
      %4001 = vperm.xlu0 %4000, %v3103
      %v4002 = vpop.permute.xlu0 %4001
      %4005 = vset.pattern.permute.xlu0 0
      %4006 = vperm.xlu0 %4005, %v3104
      %v4007 = vpop.permute.xlu0 %4006
      %4010 = vset.pattern.permute.xlu0 0
      %4011 = vperm.xlu0 %4010, %v3105
      %v4012 = vpop.permute.xlu0 %4011
      %4015 = vset.pattern.permute.xlu0 0
      %4016 = vperm.xlu0 %4015, %v3106
      %v4017 = vpop.permute.xlu0 %4016
      %4020 = vset.pattern.permute.xlu0 0
      %4021 = vperm.xlu0 %4020, %v3107
      %v4022 = vpop.permute.xlu0 %4021
      %4025 = vset.pattern.permute.xlu0 0
      %4026 = vperm.xlu0 %4025, %v3108
      %v4027 = vpop.permute.xlu0 %4026
      %4030 = vset.pattern.permute.xlu0 0
      %4031 = vperm.xlu0 %4030, %v3109
      %v4032 = vpop.permute.xlu0 %4031
      %4035 = vset.pattern.permute.xlu0 0
      %4036 = vperm.xlu0 %4035, %v3110
      %v4037 = vpop.permute.xlu0 %4036
      %4040 = vset.pattern.permute.xlu0 0
      %4041 = vperm.xlu0 %4040, %v3111
      %v4042 = vpop.permute.xlu0 %4041
      %4045 = vset.pattern.permute.xlu0 0
      %4046 = vperm.xlu0 %4045, %v3112
      %v4047 = vpop.permute.xlu0 %4046
      %4050 = vset.pattern.permute.xlu0 0
      %4051 = vperm.xlu0 %4050, %v3113
      %v4052 = vpop.permute.xlu0 %4051
      %4055 = vset.pattern.permute.xlu0 0
      %4056 = vperm.xlu0 %4055, %v3114
      %v4057 = vpop.permute.xlu0 %4056
      %v4059 = vmul.f32 %v3753, %v3997
      %v4060 = vmul.f32 %v3754, %v3997
      %v4061 = vmul.f32 %v3759, %v4002
      %v4062 = vmul.f32 %v3760, %v4002
      %v4063 = vmul.f32 %v3765, %v4007
      %v4064 = vmul.f32 %v3766, %v4007
      %v4065 = vmul.f32 %v3771, %v4012
      %v4066 = vmul.f32 %v3772, %v4012
      %v4067 = vmul.f32 %v3870, %v4017
      %v4068 = vmul.f32 %v3871, %v4017
      %v4069 = vmul.f32 %v3876, %v4022
      %v4070 = vmul.f32 %v3877, %v4022
      %v4071 = vmul.f32 %v3882, %v4027
      %v4072 = vmul.f32 %v3883, %v4027
      %v4073 = vmul.f32 %v3888, %v4032
      %v4074 = vmul.f32 %v3889, %v4032
      %v4075 = vmul.f32 %v3974, %v4037
      %v4076 = vmul.f32 %v3975, %v4037
      %v4077 = vmul.f32 %v3980, %v4042
      %v4078 = vmul.f32 %v3981, %v4042
      %v4079 = vmul.f32 %v3986, %v4047
      %v4080 = vmul.f32 %v3987, %v4047
      %v4081 = vmul.f32 %v3992, %v4052
      %v4082 = vmul.f32 %v3993, %v4052
      %v4083 = vmul.f32 %v3661, %v4057
      %v4084 = vmul.f32 %v3662, %v4057
      %v4085 = vadd.f32 %v4059, %v4061
      %v4086 = vadd.f32 %v4085, %v4063
      %v4087 = vadd.f32 %v4086, %v4065
      %v4088 = vadd.f32 %v4087, %v4067
      %v4089 = vadd.f32 %v4088, %v4069
      %v4090 = vadd.f32 %v4089, %v4071
      %v4091 = vadd.f32 %v4090, %v4073
      %v4092 = vadd.f32 %v4091, %v4075
      %v4093 = vadd.f32 %v4092, %v4077
      %v4094 = vadd.f32 %v4093, %v4079
      %v4095 = vadd.f32 %v4094, %v4081
      %v4096 = vsel %vm856, %v4083, 0.0
      %v4097 = vadd.f32 %v4095, %v4096
      %v4098 = vrot.slane %v4097, 4
      %v4099 = vadd.f32 %v4097, %v4098
      %v4100 = vrot.slane %v4099, 2
      %v4101 = vadd.f32 %v4099, %v4100
      %v4102 = vrot.slane %v4101, 1
      %v4103 = vadd.f32 %v4101, %v4102
      %v4104 = vadd.f32 %v4060, %v4062
      %v4105 = vadd.f32 %v4104, %v4064
      %v4106 = vadd.f32 %v4105, %v4066
      %v4107 = vadd.f32 %v4106, %v4068
      %v4108 = vadd.f32 %v4107, %v4070
      %v4109 = vadd.f32 %v4108, %v4072
      %v4110 = vadd.f32 %v4109, %v4074
      %v4111 = vadd.f32 %v4110, %v4076
      %v4112 = vadd.f32 %v4111, %v4078
      %v4113 = vadd.f32 %v4112, %v4080
      %v4114 = vadd.f32 %v4113, %v4082
      %v4115 = vsel %vm856, %v4084, 0.0
      %v4116 = vadd.f32 %v4114, %v4115
      %v4117 = vrot.slane %v4116, 4
      %v4118 = vadd.f32 %v4116, %v4117
      %v4119 = vrot.slane %v4118, 2
      %v4120 = vadd.f32 %v4118, %v4119
      %v4121 = vrot.slane %v4120, 1
      %v4122 = vadd.f32 %v4120, %v4121
      %v4123 = vxor.u32 %v4103, 2147483648
      %v4124 = vxor.u32 %v4122, 2147483648
      %v4125 = vmul.f32 %v4123, 1.442695
      %v4126 = vpow.pop %v4125
      %v4127 = vmul.f32 %v4124, 1.442695
      %v4128 = vpow.pop %v4127
      %v4129 = vadd.f32 %v4126, 1.0
      %v4130 = vadd.f32 %v4128, 1.0
      %v4131 = vrcp.pop %v4129
      %v4132 = vmul.f32 1.0, %v4131
      %v4133 = vrcp.pop %v4130
      %v4134 = vmul.f32 1.0, %v4133
      %v4135 = vmul.f32 %v3094, %v4132
      %v4136 = vmul.f32 %v3095, %v4134
      %v4137 = vmul.f32 %v3096, %v4132
      %v4138 = vmul.f32 %v3097, %v4134
      %v4139 = vmul.f32 %v3098, %v4132
      %v4140 = vmul.f32 %v3099, %v4134
      %v4141 = vmul.f32 %v3100, %v4132
      %v4142 = vmul.f32 %v3101, %v4134
      %4143 = vst [vmem:[%s413] sm:$0xff] %v4135
      %4144 = vst [vmem:[%s413 + $0x8] sm:$0xff] %v4136
      %4145 = vst [vmem:[%s413 + $0x10] sm:$0xff] %v4137
      %4146 = vst [vmem:[%s413 + $0x18] sm:$0xff] %v4138
      %4147 = vst [vmem:[%s413 + $0x20] sm:$0xff] %v4139
      %4148 = vst [vmem:[%s413 + $0x28] sm:$0xff] %v4140
      %4149 = vst [vmem:[%s413 + $0x30] sm:$0xff] %v4141
      %4150 = vst [vmem:[%s413 + $0x38] sm:$0xff] %v4142
      %p4151 = scmp.lt.s32.totalorder %s23, 1
      %s4152 = scalar_select %p4151, %s23, 1
      %s4153 = smul.addr %s4152, 8
      %s4154 = smul.addr %s4153, 8
      %s4155 = scalar_lea.vmem %s12, %s4154
      // Predicated region
      $region69: #{double_conv_cbam_forward.1} parent=67 // pred_check
        %p4156 = pneg %p298
      $region70: #{double_conv_cbam_forward.1} parent=67 // pred_check_branch
        %4158 = sbr.rel (%p4156) target = $region72
      $region71: #{double_conv_cbam_forward.1} parent=67 // pred_region
        _
      $region72: #{double_conv_cbam_forward.1} parent=67 // pred_fallthru
        _
    $region68: #{double_conv_cbam_forward.1} parent=5 // pred_fallthru
      _
    %p4159 = scmp.le.s32.totalorder 2, %s18
    // Predicated region
    $region73: #{double_conv_cbam_forward.1} parent=5 // pred_check
      %p4160 = pneg %p4159
    $region74: #{double_conv_cbam_forward.1} parent=5 // pred_check_branch
      %4162 = sbr.rel (%p4160) target = $region76
    $region75: #{double_conv_cbam_forward.1} parent=5 // pred_region
      %s4163 = ssub.s32 %s18, 2
      // Predicated region
      $region77: #{double_conv_cbam_forward.1} parent=75 // pred_check
        %p4164 = pneg %p304
      $region78: #{double_conv_cbam_forward.1} parent=75 // pred_check_branch
        %4166 = sbr.rel (%p4164) target = $region80
      $region79: #{double_conv_cbam_forward.1} parent=75 // pred_region
        %p4167 = scmp.lt.s32.totalorder %s24, 1
        %s4168 = scalar_select %p4167, %s24, 1
        %s4169 = smul.addr %s4168, 8
        %s4170 = smul.addr %s4169, 8
        %s4171 = scalar_lea.vmem %s12, %s4170
      $region80: #{double_conv_cbam_forward.1} parent=75 // pred_fallthru
        _
    $region76: #{double_conv_cbam_forward.1} parent=5 // pred_fallthru
      _
  $region6: #{double_conv_cbam_forward.1} parent=0 // loop_footer
    %s22 = sadd.s32 1, %s18
  $region7: #{double_conv_cbam_forward.1} parent=0 // loop_footer_branch
    %17 = sbr.rel target = $region3
  $region8: #{double_conv_cbam_forward.1} parent=0 // loop_exit
    _

</llo_original>
